<compile_context>
chip_gen: v5e
topology: v5e:2x2
jax: 0.10.0
libtpu: 0.0.40
codegen_flags: <defaults>
</compile_context>

<pallas_src>
import functools

import numpy as np
import jax
import jax.numpy as jnp
from jax import lax
from jax.experimental import pallas as pl
from jax.experimental.pallas import tpu as pltpu

NEG_SLOPE = 0.01          # nn.LeakyReLU default negative_slope
LANE = 128                # pad every channel dim up to the 128-lane width


def _lossnet_fused_kernel(x_ref, w_ref, sc_ref, bi_ref, cw_ref, dist_ref,
                          *, nseq, nbatch, lens, strides, couts):
    """Entire lossnet forward (all layers, both branches) in one invocation.

    x_ref   : (nseq*L0, cpad)        rows = [xref_0..xref_{B-1}, xper_0..xper_{B-1}]
    w_ref   : (nconv, 3*cpad, cpad)  im2col weights, rows ordered (tap k, cin)
    sc_ref  : (nconv, 1, cpad)       folded BatchNorm scale (0 on padded lanes)
    bi_ref  : (nconv, 1, cpad)       folded conv-bias + BatchNorm bias
    cw_ref  : (nconv, 1, cpad)       chan_w (0 on padded lanes)
    dist_ref: (nbatch, cpad)         per-lane partial sums of dist
    """
    cpad = x_ref.shape[-1]
    L0 = lens[0]
    x_all = x_ref[...]                                        # (nseq*L0, cpad)
    xs = [x_all[s * L0:(s + 1) * L0, :] for s in range(nseq)]
    dist_rows = [jnp.zeros((1, cpad), jnp.float32) for _ in range(nbatch)]
    zrow = jnp.zeros((1, cpad), jnp.float32)

    for i, (stride, cout) in enumerate(zip(strides, couts)):
        lin, lout = lens[i], lens[i + 1]
        w = w_ref[i]                                          # (3*cpad, cpad)
        sc = sc_ref[i]                                        # (1, cpad)
        bi = bi_ref[i]
        cw = cw_ref[i]

        # --- im2col taps; conv zero-padding done with a VMEM zero row ---
        taps = []
        for s in range(nseq):
            x_s = xs[s]                                       # (lin, cpad)
            if lin == 1:
                left, right = zrow, zrow
            else:
                left = jnp.concatenate([zrow, x_s[:lin - 1, :]], axis=0)
                right = jnp.concatenate([x_s[1:, :], zrow], axis=0)
            taps.append(jnp.concatenate([left, x_s, right], axis=1))
        taps = jnp.concatenate(taps, axis=0)                  # (nseq*lin, 3*cpad)

        # --- conv: one MXU matmul, batch+branch folded into M, taps into K ---
        y = jnp.dot(taps, w, preferred_element_type=jnp.float32)
        y = y * sc + bi                                       # conv bias + eval BN
        y = jnp.where(y >= 0.0, y, NEG_SLOPE * y)             # LeakyReLU

        # --- stride-2 subsample via a small selection matmul (no strided loads) ---
        if stride == 2 and lin > 1:
            sel = (lax.broadcasted_iota(jnp.int32, (lout, lin), 0) * 2 ==
                   lax.broadcasted_iota(jnp.int32, (lout, lin), 1)
                   ).astype(jnp.float32)                      # sel[o, 2o] = 1
            xs = [jnp.dot(sel, y[s * lin:(s + 1) * lin, :],
                          preferred_element_type=jnp.float32)
                  for s in range(nseq)]
        else:
            xs = [y[s * lin:(s + 1) * lin, :] for s in range(nseq)]

        # --- per-layer mean(|(xref - xper) * chan_w|); padded lanes have cw==0 ---
        inv = 1.0 / float(lout * cout)
        for b in range(nbatch):
            d = jnp.abs((xs[b] - xs[nbatch + b]) * cw)        # (lout, cpad)
            dist_rows[b] = dist_rows[b] + inv * jnp.sum(d, axis=0, keepdims=True)

    dist_ref[...] = jnp.concatenate(dist_rows, axis=0)        # (nbatch, cpad)


def _pack_params(params, cpad):
    """Pad channels to `cpad` lanes and pack all layers into stacked arrays."""
    w_l, sc_l, bi_l, cw_l, couts = [], [], [], [], []
    for layer in params:
        w = layer["w"].astype(jnp.float32)                    # (3, cin, cout)
        _, cin, cout = w.shape
        wp = jnp.zeros((3, cpad, cpad), jnp.float32).at[:, :cin, :cout].set(w)
        w_l.append(wp.reshape(3 * cpad, cpad))                # rows = (tap k, cin)
        sc_l.append(jnp.zeros((1, cpad), jnp.float32).at[:, :cout].set(layer["sb"][0:1]))
        bi_l.append(jnp.zeros((1, cpad), jnp.float32).at[:, :cout].set(layer["sb"][1:2]))
        cw_l.append(jnp.zeros((1, cpad), jnp.float32).at[:, :cout].set(layer["cw"]))
        couts.append(int(cout))
    return (jnp.stack(w_l), jnp.stack(sc_l), jnp.stack(bi_l), jnp.stack(cw_l),
            tuple(couts))


def lossnet_forward(xref, xper, params, dist_act="no"):
    """xref, xper: (B, L) float32 (== torch inputs before unsqueeze(1))."""
    B, L = xref.shape
    strides = tuple(int(p["stride"]) for p in params)
    max_c = max(int(p["w"].shape[2]) for p in params)
    cpad = max(LANE, ((max_c + LANE - 1) // LANE) * LANE)
    lens = [L]
    for s in strides:
        lens.append((lens[-1] - 1) // s + 1)                  # Conv1d(k=3, pad=1)
    lens = tuple(lens)

    w_all, sc_all, bi_all, cw_all, couts = _pack_params(params, cpad)

    nseq = 2 * B
    sig = jnp.concatenate([xref, xper], axis=0).astype(jnp.float32)   # (2B, L)
    x2d = jnp.pad(sig.reshape(nseq * L, 1), ((0, 0), (0, cpad - 1)))  # (2B*L, cpad)

    kern = functools.partial(_lossnet_fused_kernel, nseq=nseq, nbatch=B,
                             lens=lens, strides=strides, couts=couts)
    vmem = pl.BlockSpec(memory_space=pltpu.MemorySpace.VMEM)
    out = pl.pallas_call(
        kern,
        out_shape=jax.ShapeDtypeStruct((B, cpad), jnp.float32),
        in_specs=[vmem] * 5,
        out_specs=vmem,
    )(x2d, w_all, sc_all, bi_all, cw_all)
    dist = jnp.sum(out, axis=1)                               # (B,)

    if dist_act == "sig":
        dist = jax.nn.sigmoid(dist)
    elif dist_act == "tanh":
        dist = jnp.tanh(dist)
    elif dist_act == "tshrink":
        dist = dist - jnp.tanh(dist)
    elif dist_act == "exp":
        dist = jnp.exp(jnp.minimum(dist, 20.0)) / 10 ** 5
    # 'no' -> identity
    return dist


def init_params(key, nconv=14, nchan=32):
    """Deterministic synthetic parameters matching lossnet.__init__ shapes."""
    params = []
    for iconv in range(nconv):
        chin = 1 if iconv == 0 else nchan
        if (iconv + 1) % 5 == 0:
            nchan = nchan * 2
        stride = 2 if iconv < nconv - 1 else 1
        key, kw, kb, kg, kbe, km, kv, kc = jax.random.split(key, 8)
        w = 0.1 * jax.random.normal(kw, (3, chin, nchan), jnp.float32)
        conv_b = 0.1 * jax.random.normal(kb, (nchan,), jnp.float32)
        gamma = 1.0 + 0.1 * jax.random.normal(kg, (nchan,), jnp.float32)
        beta = 0.1 * jax.random.normal(kbe, (nchan,), jnp.float32)
        run_mean = 0.1 * jax.random.normal(km, (nchan,), jnp.float32)
        run_var = 0.5 + jnp.abs(jax.random.normal(kv, (nchan,), jnp.float32))
        chan_w = jax.random.normal(kc, (nchan,), jnp.float32)
        # fold conv bias + eval-mode BatchNorm into a single per-channel scale/bias
        scale = gamma / jnp.sqrt(run_var + 1e-5)
        bias = beta + scale * (conv_b - run_mean)
        params.append(dict(
            w=w,                                              # w[k, ci, co] == torch weight[co, ci, k]
            sb=jnp.stack([scale, bias]).astype(jnp.float32),
            cw=chan_w[None, :],
            stride=stride,
        ))
    return params


def reference_forward(xref, xper, params):
    """Pure-JAX reference mirroring the PyTorch (eval-mode) forward, NCW layout."""
    def apply_layer(x, layer):  # x: (B, C, L)
        w_oih = jnp.transpose(layer["w"], (2, 1, 0))          # (Cout, Cin, 3)
        y = lax.conv_general_dilated(
            x, w_oih, window_strides=(layer["stride"],), padding=((1, 1),),
            dimension_numbers=("NCH", "OIH", "NCH"))
        scale = layer["sb"][0][None, :, None]
        bias = layer["sb"][1][None, :, None]
        y = y * scale + bias
        return jnp.where(y >= 0.0, y, NEG_SLOPE * y)

    xr = xref[:, None, :]
    xp = xper[:, None, :]
    dist = jnp.zeros((xref.shape[0],), jnp.float32)
    for layer in params:
        xr = apply_layer(xr, layer)
        xp = apply_layer(xp, layer)
        diff = xr - xp                                        # (B, C, L)
        cw = layer["cw"][0][None, :, None]
        wd = jnp.sum(jnp.abs(diff * cw), axis=(1, 2)) / diff.shape[2] / diff.shape[1]
        dist = dist + wd
    return dist


if __name__ == "__main__":
    key = jax.random.PRNGKey(0)
    kp, kx, ky = jax.random.split(key, 3)
    params = init_params(kp, nconv=14, nchan=32)

    B, L = 2, 64
    xref = jax.random.normal(kx, (B, L), jnp.float32)
    xper = jax.random.normal(ky, (B, L), jnp.float32)

    fwd = jax.jit(lambda a, b: lossnet_forward(a, b, params, dist_act="no"))
    dist = jax.block_until_ready(fwd(xref, xper))

    ref = reference_forward(xref, xper, params)
    np.testing.assert_allclose(np.asarray(dist), np.asarray(ref),
                               rtol=5e-3, atol=1e-4)
    print("KERNEL_OK")
</pallas_src>

<mosaic_0001>
module attributes {stable_mosaic.version = 11 : i64} {
  func.func @_lossnet_fused_kernel(%arg0: memref<256x128xf32, #tpu.memory_space<vmem>>, %arg1: memref<14x384x128xf32, #tpu.memory_space<vmem>>, %arg2: memref<14x1x128xf32, #tpu.memory_space<vmem>>, %arg3: memref<14x1x128xf32, #tpu.memory_space<vmem>>, %arg4: memref<14x1x128xf32, #tpu.memory_space<vmem>>, %arg5: memref<2x128xf32, #tpu.memory_space<vmem>>) attributes {dimension_semantics = [], scalar_prefetch = 0 : i64, scratch_operands = 0 : i64, tpu.core_type = #tpu.core_type<tc>} {
    %c0 = arith.constant 0 : index
    %c0_0 = arith.constant 0 : index
    %0 = vector.load %arg0[%c0, %c0_0] : memref<256x128xf32, #tpu.memory_space<vmem>>, vector<256x128xf32>
    %1 = vector.extract_strided_slice %0 {offsets = [0, 0], sizes = [64, 128], strides = [1, 1]} : vector<256x128xf32> to vector<64x128xf32>
    %2 = vector.extract_strided_slice %0 {offsets = [64, 0], sizes = [64, 128], strides = [1, 1]} : vector<256x128xf32> to vector<64x128xf32>
    %3 = vector.extract_strided_slice %0 {offsets = [128, 0], sizes = [64, 128], strides = [1, 1]} : vector<256x128xf32> to vector<64x128xf32>
    %4 = vector.extract_strided_slice %0 {offsets = [192, 0], sizes = [64, 128], strides = [1, 1]} : vector<256x128xf32> to vector<64x128xf32>
    %cst = arith.constant 0.000000e+00 : f32
    %5 = vector.broadcast %cst : f32 to vector<1x128xf32>
    %cst_1 = arith.constant 0.000000e+00 : f32
    %6 = vector.broadcast %cst_1 : f32 to vector<1x128xf32>
    %cst_2 = arith.constant 0.000000e+00 : f32
    %7 = vector.broadcast %cst_2 : f32 to vector<1x128xf32>
    %c0_3 = arith.constant 0 : index
    %c0_4 = arith.constant 0 : index
    %c0_5 = arith.constant 0 : index
    %8 = vector.load %arg1[%c0_3, %c0_4, %c0_5] : memref<14x384x128xf32, #tpu.memory_space<vmem>>, vector<1x384x128xf32>
    %9 = vector.shape_cast %8 : vector<1x384x128xf32> to vector<384x128xf32>
    %c0_6 = arith.constant 0 : index
    %c0_7 = arith.constant 0 : index
    %c0_8 = arith.constant 0 : index
    %10 = vector.load %arg2[%c0_6, %c0_7, %c0_8] : memref<14x1x128xf32, #tpu.memory_space<vmem>>, vector<1x1x128xf32>
    %11 = vector.shape_cast %10 : vector<1x1x128xf32> to vector<1x128xf32>
    %c0_9 = arith.constant 0 : index
    %c0_10 = arith.constant 0 : index
    %c0_11 = arith.constant 0 : index
    %12 = vector.load %arg3[%c0_9, %c0_10, %c0_11] : memref<14x1x128xf32, #tpu.memory_space<vmem>>, vector<1x1x128xf32>
    %13 = vector.shape_cast %12 : vector<1x1x128xf32> to vector<1x128xf32>
    %c0_12 = arith.constant 0 : index
    %c0_13 = arith.constant 0 : index
    %c0_14 = arith.constant 0 : index
    %14 = vector.load %arg4[%c0_12, %c0_13, %c0_14] : memref<14x1x128xf32, #tpu.memory_space<vmem>>, vector<1x1x128xf32>
    %15 = vector.shape_cast %14 : vector<1x1x128xf32> to vector<1x128xf32>
    %16 = vector.extract_strided_slice %1 {offsets = [0, 0], sizes = [63, 128], strides = [1, 1]} : vector<64x128xf32> to vector<63x128xf32>
    %17 = tpu.concatenate %7, %16 in 0 : vector<1x128xf32>, vector<63x128xf32> -> vector<64x128xf32>
    %18 = vector.extract_strided_slice %1 {offsets = [1, 0], sizes = [63, 128], strides = [1, 1]} : vector<64x128xf32> to vector<63x128xf32>
    %19 = tpu.concatenate %18, %7 in 0 : vector<63x128xf32>, vector<1x128xf32> -> vector<64x128xf32>
    %20 = tpu.concatenate %17, %1, %19 in 1 : vector<64x128xf32>, vector<64x128xf32>, vector<64x128xf32> -> vector<64x384xf32>
    %21 = vector.extract_strided_slice %2 {offsets = [0, 0], sizes = [63, 128], strides = [1, 1]} : vector<64x128xf32> to vector<63x128xf32>
    %22 = tpu.concatenate %7, %21 in 0 : vector<1x128xf32>, vector<63x128xf32> -> vector<64x128xf32>
    %23 = vector.extract_strided_slice %2 {offsets = [1, 0], sizes = [63, 128], strides = [1, 1]} : vector<64x128xf32> to vector<63x128xf32>
    %24 = tpu.concatenate %23, %7 in 0 : vector<63x128xf32>, vector<1x128xf32> -> vector<64x128xf32>
    %25 = tpu.concatenate %22, %2, %24 in 1 : vector<64x128xf32>, vector<64x128xf32>, vector<64x128xf32> -> vector<64x384xf32>
    %26 = vector.extract_strided_slice %3 {offsets = [0, 0], sizes = [63, 128], strides = [1, 1]} : vector<64x128xf32> to vector<63x128xf32>
    %27 = tpu.concatenate %7, %26 in 0 : vector<1x128xf32>, vector<63x128xf32> -> vector<64x128xf32>
    %28 = vector.extract_strided_slice %3 {offsets = [1, 0], sizes = [63, 128], strides = [1, 1]} : vector<64x128xf32> to vector<63x128xf32>
    %29 = tpu.concatenate %28, %7 in 0 : vector<63x128xf32>, vector<1x128xf32> -> vector<64x128xf32>
    %30 = tpu.concatenate %27, %3, %29 in 1 : vector<64x128xf32>, vector<64x128xf32>, vector<64x128xf32> -> vector<64x384xf32>
    %31 = vector.extract_strided_slice %4 {offsets = [0, 0], sizes = [63, 128], strides = [1, 1]} : vector<64x128xf32> to vector<63x128xf32>
    %32 = tpu.concatenate %7, %31 in 0 : vector<1x128xf32>, vector<63x128xf32> -> vector<64x128xf32>
    %33 = vector.extract_strided_slice %4 {offsets = [1, 0], sizes = [63, 128], strides = [1, 1]} : vector<64x128xf32> to vector<63x128xf32>
    %34 = tpu.concatenate %33, %7 in 0 : vector<63x128xf32>, vector<1x128xf32> -> vector<64x128xf32>
    %35 = tpu.concatenate %32, %4, %34 in 1 : vector<64x128xf32>, vector<64x128xf32>, vector<64x128xf32> -> vector<64x384xf32>
    %36 = tpu.concatenate %20, %25, %30, %35 in 0 : vector<64x384xf32>, vector<64x384xf32>, vector<64x384xf32>, vector<64x384xf32> -> vector<256x384xf32>
    %cst_15 = arith.constant dense<0.000000e+00> : vector<256x128xf32>
    %37 = tpu.matmul %36, %9, %cst_15 {dimension_numbers = #tpu.dot_dimension_numbers<[1], [0], [0], [1], [0, 0, 1, 1], [], []>} : vector<256x384xf32>, vector<384x128xf32>, vector<256x128xf32> -> vector<256x128xf32>
    %38 = vector.broadcast %11 : vector<1x128xf32> to vector<256x128xf32>
    %39 = arith.mulf %37, %38 : vector<256x128xf32>
    %40 = vector.broadcast %13 : vector<1x128xf32> to vector<256x128xf32>
    %41 = arith.addf %39, %40 : vector<256x128xf32>
    %cst_16 = arith.constant 0.000000e+00 : f32
    %42 = vector.broadcast %cst_16 : f32 to vector<256x128xf32>
    %43 = arith.cmpf oge, %41, %42 : vector<256x128xf32>
    %cst_17 = arith.constant 0.00999999977 : f32
    %44 = vector.broadcast %cst_17 : f32 to vector<256x128xf32>
    %45 = arith.mulf %44, %41 : vector<256x128xf32>
    %46 = arith.select %43, %41, %45 : vector<256x128xi1>, vector<256x128xf32>
    %47 = tpu.iota {dimensions = array<i32: 0>} : vector<32x64xi32>
    %c2_i32 = arith.constant 2 : i32
    %48 = vector.broadcast %c2_i32 : i32 to vector<32x64xi32>
    %49 = arith.muli %47, %48 : vector<32x64xi32>
    %50 = tpu.iota {dimensions = array<i32: 1>} : vector<32x64xi32>
    %51 = arith.cmpi eq, %49, %50 : vector<32x64xi32>
    %52 = arith.extui %51 : vector<32x64xi1> to vector<32x64xi32>
    %53 = arith.sitofp %52 : vector<32x64xi32> to vector<32x64xf32>
    %54 = vector.extract_strided_slice %46 {offsets = [0, 0], sizes = [64, 128], strides = [1, 1]} : vector<256x128xf32> to vector<64x128xf32>
    %cst_18 = arith.constant dense<0.000000e+00> : vector<32x128xf32>
    %55 = tpu.matmul %53, %54, %cst_18 {dimension_numbers = #tpu.dot_dimension_numbers<[1], [0], [0], [1], [0, 0, 1, 1], [], []>} : vector<32x64xf32>, vector<64x128xf32>, vector<32x128xf32> -> vector<32x128xf32>
    %56 = vector.extract_strided_slice %46 {offsets = [64, 0], sizes = [64, 128], strides = [1, 1]} : vector<256x128xf32> to vector<64x128xf32>
    %cst_19 = arith.constant dense<0.000000e+00> : vector<32x128xf32>
    %57 = tpu.matmul %53, %56, %cst_19 {dimension_numbers = #tpu.dot_dimension_numbers<[1], [0], [0], [1], [0, 0, 1, 1], [], []>} : vector<32x64xf32>, vector<64x128xf32>, vector<32x128xf32> -> vector<32x128xf32>
    %58 = vector.extract_strided_slice %46 {offsets = [128, 0], sizes = [64, 128], strides = [1, 1]} : vector<256x128xf32> to vector<64x128xf32>
    %cst_20 = arith.constant dense<0.000000e+00> : vector<32x128xf32>
    %59 = tpu.matmul %53, %58, %cst_20 {dimension_numbers = #tpu.dot_dimension_numbers<[1], [0], [0], [1], [0, 0, 1, 1], [], []>} : vector<32x64xf32>, vector<64x128xf32>, vector<32x128xf32> -> vector<32x128xf32>
    %60 = vector.extract_strided_slice %46 {offsets = [192, 0], sizes = [64, 128], strides = [1, 1]} : vector<256x128xf32> to vector<64x128xf32>
    %cst_21 = arith.constant dense<0.000000e+00> : vector<32x128xf32>
    %61 = tpu.matmul %53, %60, %cst_21 {dimension_numbers = #tpu.dot_dimension_numbers<[1], [0], [0], [1], [0, 0, 1, 1], [], []>} : vector<32x64xf32>, vector<64x128xf32>, vector<32x128xf32> -> vector<32x128xf32>
    %62 = arith.subf %55, %59 : vector<32x128xf32>
    %63 = vector.broadcast %15 : vector<1x128xf32> to vector<32x128xf32>
    %64 = arith.mulf %62, %63 : vector<32x128xf32>
    %65 = math.absf %64 : vector<32x128xf32>
    %cst_22 = arith.constant dense<0.000000e+00> : vector<128xf32>
    %66 = vector.multi_reduction <add>, %65, %cst_22 [0] : vector<32x128xf32> to vector<128xf32>
    %67 = vector.shape_cast %66 : vector<128xf32> to vector<1x128xf32>
    %cst_23 = arith.constant 9.765625E-4 : f32
    %68 = vector.broadcast %cst_23 : f32 to vector<1x128xf32>
    %69 = arith.mulf %68, %67 : vector<1x128xf32>
    %70 = arith.addf %5, %69 : vector<1x128xf32>
    %71 = arith.subf %57, %61 : vector<32x128xf32>
    %72 = vector.broadcast %15 : vector<1x128xf32> to vector<32x128xf32>
    %73 = arith.mulf %71, %72 : vector<32x128xf32>
    %74 = math.absf %73 : vector<32x128xf32>
    %cst_24 = arith.constant dense<0.000000e+00> : vector<128xf32>
    %75 = vector.multi_reduction <add>, %74, %cst_24 [0] : vector<32x128xf32> to vector<128xf32>
    %76 = vector.shape_cast %75 : vector<128xf32> to vector<1x128xf32>
    %cst_25 = arith.constant 9.765625E-4 : f32
    %77 = vector.broadcast %cst_25 : f32 to vector<1x128xf32>
    %78 = arith.mulf %77, %76 : vector<1x128xf32>
    %79 = arith.addf %6, %78 : vector<1x128xf32>
    %c1 = arith.constant 1 : index
    %c0_26 = arith.constant 0 : index
    %c0_27 = arith.constant 0 : index
    %80 = vector.load %arg1[%c1, %c0_26, %c0_27] : memref<14x384x128xf32, #tpu.memory_space<vmem>>, vector<1x384x128xf32>
    %81 = vector.shape_cast %80 : vector<1x384x128xf32> to vector<384x128xf32>
    %c1_28 = arith.constant 1 : index
    %c0_29 = arith.constant 0 : index
    %c0_30 = arith.constant 0 : index
    %82 = vector.load %arg2[%c1_28, %c0_29, %c0_30] : memref<14x1x128xf32, #tpu.memory_space<vmem>>, vector<1x1x128xf32>
    %83 = vector.shape_cast %82 : vector<1x1x128xf32> to vector<1x128xf32>
    %c1_31 = arith.constant 1 : index
    %c0_32 = arith.constant 0 : index
    %c0_33 = arith.constant 0 : index
    %84 = vector.load %arg3[%c1_31, %c0_32, %c0_33] : memref<14x1x128xf32, #tpu.memory_space<vmem>>, vector<1x1x128xf32>
    %85 = vector.shape_cast %84 : vector<1x1x128xf32> to vector<1x128xf32>
    %c1_34 = arith.constant 1 : index
    %c0_35 = arith.constant 0 : index
    %c0_36 = arith.constant 0 : index
    %86 = vector.load %arg4[%c1_34, %c0_35, %c0_36] : memref<14x1x128xf32, #tpu.memory_space<vmem>>, vector<1x1x128xf32>
    %87 = vector.shape_cast %86 : vector<1x1x128xf32> to vector<1x128xf32>
    %88 = vector.extract_strided_slice %55 {offsets = [0, 0], sizes = [31, 128], strides = [1, 1]} : vector<32x128xf32> to vector<31x128xf32>
    %89 = tpu.concatenate %7, %88 in 0 : vector<1x128xf32>, vector<31x128xf32> -> vector<32x128xf32>
    %90 = vector.extract_strided_slice %55 {offsets = [1, 0], sizes = [31, 128], strides = [1, 1]} : vector<32x128xf32> to vector<31x128xf32>
    %91 = tpu.concatenate %90, %7 in 0 : vector<31x128xf32>, vector<1x128xf32> -> vector<32x128xf32>
    %92 = tpu.concatenate %89, %55, %91 in 1 : vector<32x128xf32>, vector<32x128xf32>, vector<32x128xf32> -> vector<32x384xf32>
    %93 = vector.extract_strided_slice %57 {offsets = [0, 0], sizes = [31, 128], strides = [1, 1]} : vector<32x128xf32> to vector<31x128xf32>
    %94 = tpu.concatenate %7, %93 in 0 : vector<1x128xf32>, vector<31x128xf32> -> vector<32x128xf32>
    %95 = vector.extract_strided_slice %57 {offsets = [1, 0], sizes = [31, 128], strides = [1, 1]} : vector<32x128xf32> to vector<31x128xf32>
    %96 = tpu.concatenate %95, %7 in 0 : vector<31x128xf32>, vector<1x128xf32> -> vector<32x128xf32>
    %97 = tpu.concatenate %94, %57, %96 in 1 : vector<32x128xf32>, vector<32x128xf32>, vector<32x128xf32> -> vector<32x384xf32>
    %98 = vector.extract_strided_slice %59 {offsets = [0, 0], sizes = [31, 128], strides = [1, 1]} : vector<32x128xf32> to vector<31x128xf32>
    %99 = tpu.concatenate %7, %98 in 0 : vector<1x128xf32>, vector<31x128xf32> -> vector<32x128xf32>
    %100 = vector.extract_strided_slice %59 {offsets = [1, 0], sizes = [31, 128], strides = [1, 1]} : vector<32x128xf32> to vector<31x128xf32>
    %101 = tpu.concatenate %100, %7 in 0 : vector<31x128xf32>, vector<1x128xf32> -> vector<32x128xf32>
    %102 = tpu.concatenate %99, %59, %101 in 1 : vector<32x128xf32>, vector<32x128xf32>, vector<32x128xf32> -> vector<32x384xf32>
    %103 = vector.extract_strided_slice %61 {offsets = [0, 0], sizes = [31, 128], strides = [1, 1]} : vector<32x128xf32> to vector<31x128xf32>
    %104 = tpu.concatenate %7, %103 in 0 : vector<1x128xf32>, vector<31x128xf32> -> vector<32x128xf32>
    %105 = vector.extract_strided_slice %61 {offsets = [1, 0], sizes = [31, 128], strides = [1, 1]} : vector<32x128xf32> to vector<31x128xf32>
    %106 = tpu.concatenate %105, %7 in 0 : vector<31x128xf32>, vector<1x128xf32> -> vector<32x128xf32>
    %107 = tpu.concatenate %104, %61, %106 in 1 : vector<32x128xf32>, vector<32x128xf32>, vector<32x128xf32> -> vector<32x384xf32>
    %108 = tpu.concatenate %92, %97, %102, %107 in 0 : vector<32x384xf32>, vector<32x384xf32>, vector<32x384xf32>, vector<32x384xf32> -> vector<128x384xf32>
    %cst_37 = arith.constant dense<0.000000e+00> : vector<128x128xf32>
    %109 = tpu.matmul %108, %81, %cst_37 {dimension_numbers = #tpu.dot_dimension_numbers<[1], [0], [0], [1], [0, 0, 1, 1], [], []>} : vector<128x384xf32>, vector<384x128xf32>, vector<128x128xf32> -> vector<128x128xf32>
    %110 = vector.broadcast %83 : vector<1x128xf32> to vector<128x128xf32>
    %111 = arith.mulf %109, %110 : vector<128x128xf32>
    %112 = vector.broadcast %85 : vector<1x128xf32> to vector<128x128xf32>
    %113 = arith.addf %111, %112 : vector<128x128xf32>
    %cst_38 = arith.constant 0.000000e+00 : f32
    %114 = vector.broadcast %cst_38 : f32 to vector<128x128xf32>
    %115 = arith.cmpf oge, %113, %114 : vector<128x128xf32>
    %cst_39 = arith.constant 0.00999999977 : f32
    %116 = vector.broadcast %cst_39 : f32 to vector<128x128xf32>
    %117 = arith.mulf %116, %113 : vector<128x128xf32>
    %118 = arith.select %115, %113, %117 : vector<128x128xi1>, vector<128x128xf32>
    %119 = tpu.iota {dimensions = array<i32: 0>} : vector<16x32xi32>
    %c2_i32_40 = arith.constant 2 : i32
    %120 = vector.broadcast %c2_i32_40 : i32 to vector<16x32xi32>
    %121 = arith.muli %119, %120 : vector<16x32xi32>
    %122 = tpu.iota {dimensions = array<i32: 1>} : vector<16x32xi32>
    %123 = arith.cmpi eq, %121, %122 : vector<16x32xi32>
    %124 = arith.extui %123 : vector<16x32xi1> to vector<16x32xi32>
    %125 = arith.sitofp %124 : vector<16x32xi32> to vector<16x32xf32>
    %126 = vector.extract_strided_slice %118 {offsets = [0, 0], sizes = [32, 128], strides = [1, 1]} : vector<128x128xf32> to vector<32x128xf32>
    %cst_41 = arith.constant dense<0.000000e+00> : vector<16x128xf32>
    %127 = tpu.matmul %125, %126, %cst_41 {dimension_numbers = #tpu.dot_dimension_numbers<[1], [0], [0], [1], [0, 0, 1, 1], [], []>} : vector<16x32xf32>, vector<32x128xf32>, vector<16x128xf32> -> vector<16x128xf32>
    %128 = vector.extract_strided_slice %118 {offsets = [32, 0], sizes = [32, 128], strides = [1, 1]} : vector<128x128xf32> to vector<32x128xf32>
    %cst_42 = arith.constant dense<0.000000e+00> : vector<16x128xf32>
    %129 = tpu.matmul %125, %128, %cst_42 {dimension_numbers = #tpu.dot_dimension_numbers<[1], [0], [0], [1], [0, 0, 1, 1], [], []>} : vector<16x32xf32>, vector<32x128xf32>, vector<16x128xf32> -> vector<16x128xf32>
    %130 = vector.extract_strided_slice %118 {offsets = [64, 0], sizes = [32, 128], strides = [1, 1]} : vector<128x128xf32> to vector<32x128xf32>
    %cst_43 = arith.constant dense<0.000000e+00> : vector<16x128xf32>
    %131 = tpu.matmul %125, %130, %cst_43 {dimension_numbers = #tpu.dot_dimension_numbers<[1], [0], [0], [1], [0, 0, 1, 1], [], []>} : vector<16x32xf32>, vector<32x128xf32>, vector<16x128xf32> -> vector<16x128xf32>
    %132 = vector.extract_strided_slice %118 {offsets = [96, 0], sizes = [32, 128], strides = [1, 1]} : vector<128x128xf32> to vector<32x128xf32>
    %cst_44 = arith.constant dense<0.000000e+00> : vector<16x128xf32>
    %133 = tpu.matmul %125, %132, %cst_44 {dimension_numbers = #tpu.dot_dimension_numbers<[1], [0], [0], [1], [0, 0, 1, 1], [], []>} : vector<16x32xf32>, vector<32x128xf32>, vector<16x128xf32> -> vector<16x128xf32>
    %134 = arith.subf %127, %131 : vector<16x128xf32>
    %135 = vector.broadcast %87 : vector<1x128xf32> to vector<16x128xf32>
    %136 = arith.mulf %134, %135 : vector<16x128xf32>
    %137 = math.absf %136 : vector<16x128xf32>
    %cst_45 = arith.constant dense<0.000000e+00> : vector<128xf32>
    %138 = vector.multi_reduction <add>, %137, %cst_45 [0] : vector<16x128xf32> to vector<128xf32>
    %139 = vector.shape_cast %138 : vector<128xf32> to vector<1x128xf32>
    %cst_46 = arith.constant 0.001953125 : f32
    %140 = vector.broadcast %cst_46 : f32 to vector<1x128xf32>
    %141 = arith.mulf %140, %139 : vector<1x128xf32>
    %142 = arith.addf %70, %141 : vector<1x128xf32>
    %143 = arith.subf %129, %133 : vector<16x128xf32>
    %144 = vector.broadcast %87 : vector<1x128xf32> to vector<16x128xf32>
    %145 = arith.mulf %143, %144 : vector<16x128xf32>
    %146 = math.absf %145 : vector<16x128xf32>
    %cst_47 = arith.constant dense<0.000000e+00> : vector<128xf32>
    %147 = vector.multi_reduction <add>, %146, %cst_47 [0] : vector<16x128xf32> to vector<128xf32>
    %148 = vector.shape_cast %147 : vector<128xf32> to vector<1x128xf32>
    %cst_48 = arith.constant 0.001953125 : f32
    %149 = vector.broadcast %cst_48 : f32 to vector<1x128xf32>
    %150 = arith.mulf %149, %148 : vector<1x128xf32>
    %151 = arith.addf %79, %150 : vector<1x128xf32>
    %c2 = arith.constant 2 : index
    %c0_49 = arith.constant 0 : index
    %c0_50 = arith.constant 0 : index
    %152 = vector.load %arg1[%c2, %c0_49, %c0_50] : memref<14x384x128xf32, #tpu.memory_space<vmem>>, vector<1x384x128xf32>
    %153 = vector.shape_cast %152 : vector<1x384x128xf32> to vector<384x128xf32>
    %c2_51 = arith.constant 2 : index
    %c0_52 = arith.constant 0 : index
    %c0_53 = arith.constant 0 : index
    %154 = vector.load %arg2[%c2_51, %c0_52, %c0_53] : memref<14x1x128xf32, #tpu.memory_space<vmem>>, vector<1x1x128xf32>
    %155 = vector.shape_cast %154 : vector<1x1x128xf32> to vector<1x128xf32>
    %c2_54 = arith.constant 2 : index
    %c0_55 = arith.constant 0 : index
    %c0_56 = arith.constant 0 : index
    %156 = vector.load %arg3[%c2_54, %c0_55, %c0_56] : memref<14x1x128xf32, #tpu.memory_space<vmem>>, vector<1x1x128xf32>
    %157 = vector.shape_cast %156 : vector<1x1x128xf32> to vector<1x128xf32>
    %c2_57 = arith.constant 2 : index
    %c0_58 = arith.constant 0 : index
    %c0_59 = arith.constant 0 : index
    %158 = vector.load %arg4[%c2_57, %c0_58, %c0_59] : memref<14x1x128xf32, #tpu.memory_space<vmem>>, vector<1x1x128xf32>
    %159 = vector.shape_cast %158 : vector<1x1x128xf32> to vector<1x128xf32>
    %160 = vector.extract_strided_slice %127 {offsets = [0, 0], sizes = [15, 128], strides = [1, 1]} : vector<16x128xf32> to vector<15x128xf32>
    %161 = tpu.concatenate %7, %160 in 0 : vector<1x128xf32>, vector<15x128xf32> -> vector<16x128xf32>
    %162 = vector.extract_strided_slice %127 {offsets = [1, 0], sizes = [15, 128], strides = [1, 1]} : vector<16x128xf32> to vector<15x128xf32>
    %163 = tpu.concatenate %162, %7 in 0 : vector<15x128xf32>, vector<1x128xf32> -> vector<16x128xf32>
    %164 = tpu.concatenate %161, %127, %163 in 1 : vector<16x128xf32>, vector<16x128xf32>, vector<16x128xf32> -> vector<16x384xf32>
    %165 = vector.extract_strided_slice %129 {offsets = [0, 0], sizes = [15, 128], strides = [1, 1]} : vector<16x128xf32> to vector<15x128xf32>
    %166 = tpu.concatenate %7, %165 in 0 : vector<1x128xf32>, vector<15x128xf32> -> vector<16x128xf32>
    %167 = vector.extract_strided_slice %129 {offsets = [1, 0], sizes = [15, 128], strides = [1, 1]} : vector<16x128xf32> to vector<15x128xf32>
    %168 = tpu.concatenate %167, %7 in 0 : vector<15x128xf32>, vector<1x128xf32> -> vector<16x128xf32>
    %169 = tpu.concatenate %166, %129, %168 in 1 : vector<16x128xf32>, vector<16x128xf32>, vector<16x128xf32> -> vector<16x384xf32>
    %170 = vector.extract_strided_slice %131 {offsets = [0, 0], sizes = [15, 128], strides = [1, 1]} : vector<16x128xf32> to vector<15x128xf32>
    %171 = tpu.concatenate %7, %170 in 0 : vector<1x128xf32>, vector<15x128xf32> -> vector<16x128xf32>
    %172 = vector.extract_strided_slice %131 {offsets = [1, 0], sizes = [15, 128], strides = [1, 1]} : vector<16x128xf32> to vector<15x128xf32>
    %173 = tpu.concatenate %172, %7 in 0 : vector<15x128xf32>, vector<1x128xf32> -> vector<16x128xf32>
    %174 = tpu.concatenate %171, %131, %173 in 1 : vector<16x128xf32>, vector<16x128xf32>, vector<16x128xf32> -> vector<16x384xf32>
    %175 = vector.extract_strided_slice %133 {offsets = [0, 0], sizes = [15, 128], strides = [1, 1]} : vector<16x128xf32> to vector<15x128xf32>
    %176 = tpu.concatenate %7, %175 in 0 : vector<1x128xf32>, vector<15x128xf32> -> vector<16x128xf32>
    %177 = vector.extract_strided_slice %133 {offsets = [1, 0], sizes = [15, 128], strides = [1, 1]} : vector<16x128xf32> to vector<15x128xf32>
    %178 = tpu.concatenate %177, %7 in 0 : vector<15x128xf32>, vector<1x128xf32> -> vector<16x128xf32>
    %179 = tpu.concatenate %176, %133, %178 in 1 : vector<16x128xf32>, vector<16x128xf32>, vector<16x128xf32> -> vector<16x384xf32>
    %180 = tpu.concatenate %164, %169, %174, %179 in 0 : vector<16x384xf32>, vector<16x384xf32>, vector<16x384xf32>, vector<16x384xf32> -> vector<64x384xf32>
    %cst_60 = arith.constant dense<0.000000e+00> : vector<64x128xf32>
    %181 = tpu.matmul %180, %153, %cst_60 {dimension_numbers = #tpu.dot_dimension_numbers<[1], [0], [0], [1], [0, 0, 1, 1], [], []>} : vector<64x384xf32>, vector<384x128xf32>, vector<64x128xf32> -> vector<64x128xf32>
    %182 = vector.broadcast %155 : vector<1x128xf32> to vector<64x128xf32>
    %183 = arith.mulf %181, %182 : vector<64x128xf32>
    %184 = vector.broadcast %157 : vector<1x128xf32> to vector<64x128xf32>
    %185 = arith.addf %183, %184 : vector<64x128xf32>
    %cst_61 = arith.constant 0.000000e+00 : f32
    %186 = vector.broadcast %cst_61 : f32 to vector<64x128xf32>
    %187 = arith.cmpf oge, %185, %186 : vector<64x128xf32>
    %cst_62 = arith.constant 0.00999999977 : f32
    %188 = vector.broadcast %cst_62 : f32 to vector<64x128xf32>
    %189 = arith.mulf %188, %185 : vector<64x128xf32>
    %190 = arith.select %187, %185, %189 : vector<64x128xi1>, vector<64x128xf32>
    %191 = tpu.iota {dimensions = array<i32: 0>} : vector<8x16xi32>
    %c2_i32_63 = arith.constant 2 : i32
    %192 = vector.broadcast %c2_i32_63 : i32 to vector<8x16xi32>
    %193 = arith.muli %191, %192 : vector<8x16xi32>
    %194 = tpu.iota {dimensions = array<i32: 1>} : vector<8x16xi32>
    %195 = arith.cmpi eq, %193, %194 : vector<8x16xi32>
    %196 = arith.extui %195 : vector<8x16xi1> to vector<8x16xi32>
    %197 = arith.sitofp %196 : vector<8x16xi32> to vector<8x16xf32>
    %198 = vector.extract_strided_slice %190 {offsets = [0, 0], sizes = [16, 128], strides = [1, 1]} : vector<64x128xf32> to vector<16x128xf32>
    %cst_64 = arith.constant dense<0.000000e+00> : vector<8x128xf32>
    %199 = tpu.matmul %197, %198, %cst_64 {dimension_numbers = #tpu.dot_dimension_numbers<[1], [0], [0], [1], [0, 0, 1, 1], [], []>} : vector<8x16xf32>, vector<16x128xf32>, vector<8x128xf32> -> vector<8x128xf32>
    %200 = vector.extract_strided_slice %190 {offsets = [16, 0], sizes = [16, 128], strides = [1, 1]} : vector<64x128xf32> to vector<16x128xf32>
    %cst_65 = arith.constant dense<0.000000e+00> : vector<8x128xf32>
    %201 = tpu.matmul %197, %200, %cst_65 {dimension_numbers = #tpu.dot_dimension_numbers<[1], [0], [0], [1], [0, 0, 1, 1], [], []>} : vector<8x16xf32>, vector<16x128xf32>, vector<8x128xf32> -> vector<8x128xf32>
    %202 = vector.extract_strided_slice %190 {offsets = [32, 0], sizes = [16, 128], strides = [1, 1]} : vector<64x128xf32> to vector<16x128xf32>
    %cst_66 = arith.constant dense<0.000000e+00> : vector<8x128xf32>
    %203 = tpu.matmul %197, %202, %cst_66 {dimension_numbers = #tpu.dot_dimension_numbers<[1], [0], [0], [1], [0, 0, 1, 1], [], []>} : vector<8x16xf32>, vector<16x128xf32>, vector<8x128xf32> -> vector<8x128xf32>
    %204 = vector.extract_strided_slice %190 {offsets = [48, 0], sizes = [16, 128], strides = [1, 1]} : vector<64x128xf32> to vector<16x128xf32>
    %cst_67 = arith.constant dense<0.000000e+00> : vector<8x128xf32>
    %205 = tpu.matmul %197, %204, %cst_67 {dimension_numbers = #tpu.dot_dimension_numbers<[1], [0], [0], [1], [0, 0, 1, 1], [], []>} : vector<8x16xf32>, vector<16x128xf32>, vector<8x128xf32> -> vector<8x128xf32>
    %206 = arith.subf %199, %203 : vector<8x128xf32>
    %207 = vector.broadcast %159 : vector<1x128xf32> to vector<8x128xf32>
    %208 = arith.mulf %206, %207 : vector<8x128xf32>
    %209 = math.absf %208 : vector<8x128xf32>
    %cst_68 = arith.constant dense<0.000000e+00> : vector<128xf32>
    %210 = vector.multi_reduction <add>, %209, %cst_68 [0] : vector<8x128xf32> to vector<128xf32>
    %211 = vector.shape_cast %210 : vector<128xf32> to vector<1x128xf32>
    %cst_69 = arith.constant 3.906250e-03 : f32
    %212 = vector.broadcast %cst_69 : f32 to vector<1x128xf32>
    %213 = arith.mulf %212, %211 : vector<1x128xf32>
    %214 = arith.addf %142, %213 : vector<1x128xf32>
    %215 = arith.subf %201, %205 : vector<8x128xf32>
    %216 = vector.broadcast %159 : vector<1x128xf32> to vector<8x128xf32>
    %217 = arith.mulf %215, %216 : vector<8x128xf32>
    %218 = math.absf %217 : vector<8x128xf32>
    %cst_70 = arith.constant dense<0.000000e+00> : vector<128xf32>
    %219 = vector.multi_reduction <add>, %218, %cst_70 [0] : vector<8x128xf32> to vector<128xf32>
    %220 = vector.shape_cast %219 : vector<128xf32> to vector<1x128xf32>
    %cst_71 = arith.constant 3.906250e-03 : f32
    %221 = vector.broadcast %cst_71 : f32 to vector<1x128xf32>
    %222 = arith.mulf %221, %220 : vector<1x128xf32>
    %223 = arith.addf %151, %222 : vector<1x128xf32>
    %c3 = arith.constant 3 : index
    %c0_72 = arith.constant 0 : index
    %c0_73 = arith.constant 0 : index
    %224 = vector.load %arg1[%c3, %c0_72, %c0_73] : memref<14x384x128xf32, #tpu.memory_space<vmem>>, vector<1x384x128xf32>
    %225 = vector.shape_cast %224 : vector<1x384x128xf32> to vector<384x128xf32>
    %c3_74 = arith.constant 3 : index
    %c0_75 = arith.constant 0 : index
    %c0_76 = arith.constant 0 : index
    %226 = vector.load %arg2[%c3_74, %c0_75, %c0_76] : memref<14x1x128xf32, #tpu.memory_space<vmem>>, vector<1x1x128xf32>
    %227 = vector.shape_cast %226 : vector<1x1x128xf32> to vector<1x128xf32>
    %c3_77 = arith.constant 3 : index
    %c0_78 = arith.constant 0 : index
    %c0_79 = arith.constant 0 : index
    %228 = vector.load %arg3[%c3_77, %c0_78, %c0_79] : memref<14x1x128xf32, #tpu.memory_space<vmem>>, vector<1x1x128xf32>
    %229 = vector.shape_cast %228 : vector<1x1x128xf32> to vector<1x128xf32>
    %c3_80 = arith.constant 3 : index
    %c0_81 = arith.constant 0 : index
    %c0_82 = arith.constant 0 : index
    %230 = vector.load %arg4[%c3_80, %c0_81, %c0_82] : memref<14x1x128xf32, #tpu.memory_space<vmem>>, vector<1x1x128xf32>
    %231 = vector.shape_cast %230 : vector<1x1x128xf32> to vector<1x128xf32>
    %232 = vector.extract_strided_slice %199 {offsets = [0, 0], sizes = [7, 128], strides = [1, 1]} : vector<8x128xf32> to vector<7x128xf32>
    %233 = tpu.concatenate %7, %232 in 0 : vector<1x128xf32>, vector<7x128xf32> -> vector<8x128xf32>
    %234 = vector.extract_strided_slice %199 {offsets = [1, 0], sizes = [7, 128], strides = [1, 1]} : vector<8x128xf32> to vector<7x128xf32>
    %235 = tpu.concatenate %234, %7 in 0 : vector<7x128xf32>, vector<1x128xf32> -> vector<8x128xf32>
    %236 = tpu.concatenate %233, %199, %235 in 1 : vector<8x128xf32>, vector<8x128xf32>, vector<8x128xf32> -> vector<8x384xf32>
    %237 = vector.extract_strided_slice %201 {offsets = [0, 0], sizes = [7, 128], strides = [1, 1]} : vector<8x128xf32> to vector<7x128xf32>
    %238 = tpu.concatenate %7, %237 in 0 : vector<1x128xf32>, vector<7x128xf32> -> vector<8x128xf32>
    %239 = vector.extract_strided_slice %201 {offsets = [1, 0], sizes = [7, 128], strides = [1, 1]} : vector<8x128xf32> to vector<7x128xf32>
    %240 = tpu.concatenate %239, %7 in 0 : vector<7x128xf32>, vector<1x128xf32> -> vector<8x128xf32>
    %241 = tpu.concatenate %238, %201, %240 in 1 : vector<8x128xf32>, vector<8x128xf32>, vector<8x128xf32> -> vector<8x384xf32>
    %242 = vector.extract_strided_slice %203 {offsets = [0, 0], sizes = [7, 128], strides = [1, 1]} : vector<8x128xf32> to vector<7x128xf32>
    %243 = tpu.concatenate %7, %242 in 0 : vector<1x128xf32>, vector<7x128xf32> -> vector<8x128xf32>
    %244 = vector.extract_strided_slice %203 {offsets = [1, 0], sizes = [7, 128], strides = [1, 1]} : vector<8x128xf32> to vector<7x128xf32>
    %245 = tpu.concatenate %244, %7 in 0 : vector<7x128xf32>, vector<1x128xf32> -> vector<8x128xf32>
    %246 = tpu.concatenate %243, %203, %245 in 1 : vector<8x128xf32>, vector<8x128xf32>, vector<8x128xf32> -> vector<8x384xf32>
    %247 = vector.extract_strided_slice %205 {offsets = [0, 0], sizes = [7, 128], strides = [1, 1]} : vector<8x128xf32> to vector<7x128xf32>
    %248 = tpu.concatenate %7, %247 in 0 : vector<1x128xf32>, vector<7x128xf32> -> vector<8x128xf32>
    %249 = vector.extract_strided_slice %205 {offsets = [1, 0], sizes = [7, 128], strides = [1, 1]} : vector<8x128xf32> to vector<7x128xf32>
    %250 = tpu.concatenate %249, %7 in 0 : vector<7x128xf32>, vector<1x128xf32> -> vector<8x128xf32>
    %251 = tpu.concatenate %248, %205, %250 in 1 : vector<8x128xf32>, vector<8x128xf32>, vector<8x128xf32> -> vector<8x384xf32>
    %252 = tpu.concatenate %236, %241, %246, %251 in 0 : vector<8x384xf32>, vector<8x384xf32>, vector<8x384xf32>, vector<8x384xf32> -> vector<32x384xf32>
    %cst_83 = arith.constant dense<0.000000e+00> : vector<32x128xf32>
    %253 = tpu.matmul %252, %225, %cst_83 {dimension_numbers = #tpu.dot_dimension_numbers<[1], [0], [0], [1], [0, 0, 1, 1], [], []>} : vector<32x384xf32>, vector<384x128xf32>, vector<32x128xf32> -> vector<32x128xf32>
    %254 = vector.broadcast %227 : vector<1x128xf32> to vector<32x128xf32>
    %255 = arith.mulf %253, %254 : vector<32x128xf32>
    %256 = vector.broadcast %229 : vector<1x128xf32> to vector<32x128xf32>
    %257 = arith.addf %255, %256 : vector<32x128xf32>
    %cst_84 = arith.constant 0.000000e+00 : f32
    %258 = vector.broadcast %cst_84 : f32 to vector<32x128xf32>
    %259 = arith.cmpf oge, %257, %258 : vector<32x128xf32>
    %cst_85 = arith.constant 0.00999999977 : f32
    %260 = vector.broadcast %cst_85 : f32 to vector<32x128xf32>
    %261 = arith.mulf %260, %257 : vector<32x128xf32>
    %262 = arith.select %259, %257, %261 : vector<32x128xi1>, vector<32x128xf32>
    %263 = tpu.iota {dimensions = array<i32: 0>} : vector<4x8xi32>
    %c2_i32_86 = arith.constant 2 : i32
    %264 = vector.broadcast %c2_i32_86 : i32 to vector<4x8xi32>
    %265 = arith.muli %263, %264 : vector<4x8xi32>
    %266 = tpu.iota {dimensions = array<i32: 1>} : vector<4x8xi32>
    %267 = arith.cmpi eq, %265, %266 : vector<4x8xi32>
    %268 = arith.extui %267 : vector<4x8xi1> to vector<4x8xi32>
    %269 = arith.sitofp %268 : vector<4x8xi32> to vector<4x8xf32>
    %270 = vector.extract_strided_slice %262 {offsets = [0, 0], sizes = [8, 128], strides = [1, 1]} : vector<32x128xf32> to vector<8x128xf32>
    %cst_87 = arith.constant dense<0.000000e+00> : vector<4x128xf32>
    %271 = tpu.matmul %269, %270, %cst_87 {dimension_numbers = #tpu.dot_dimension_numbers<[1], [0], [0], [1], [0, 0, 1, 1], [], []>} : vector<4x8xf32>, vector<8x128xf32>, vector<4x128xf32> -> vector<4x128xf32>
    %272 = vector.extract_strided_slice %262 {offsets = [8, 0], sizes = [8, 128], strides = [1, 1]} : vector<32x128xf32> to vector<8x128xf32>
    %cst_88 = arith.constant dense<0.000000e+00> : vector<4x128xf32>
    %273 = tpu.matmul %269, %272, %cst_88 {dimension_numbers = #tpu.dot_dimension_numbers<[1], [0], [0], [1], [0, 0, 1, 1], [], []>} : vector<4x8xf32>, vector<8x128xf32>, vector<4x128xf32> -> vector<4x128xf32>
    %274 = vector.extract_strided_slice %262 {offsets = [16, 0], sizes = [8, 128], strides = [1, 1]} : vector<32x128xf32> to vector<8x128xf32>
    %cst_89 = arith.constant dense<0.000000e+00> : vector<4x128xf32>
    %275 = tpu.matmul %269, %274, %cst_89 {dimension_numbers = #tpu.dot_dimension_numbers<[1], [0], [0], [1], [0, 0, 1, 1], [], []>} : vector<4x8xf32>, vector<8x128xf32>, vector<4x128xf32> -> vector<4x128xf32>
    %276 = vector.extract_strided_slice %262 {offsets = [24, 0], sizes = [8, 128], strides = [1, 1]} : vector<32x128xf32> to vector<8x128xf32>
    %cst_90 = arith.constant dense<0.000000e+00> : vector<4x128xf32>
    %277 = tpu.matmul %269, %276, %cst_90 {dimension_numbers = #tpu.dot_dimension_numbers<[1], [0], [0], [1], [0, 0, 1, 1], [], []>} : vector<4x8xf32>, vector<8x128xf32>, vector<4x128xf32> -> vector<4x128xf32>
    %278 = arith.subf %271, %275 : vector<4x128xf32>
    %279 = vector.broadcast %231 : vector<1x128xf32> to vector<4x128xf32>
    %280 = arith.mulf %278, %279 : vector<4x128xf32>
    %281 = math.absf %280 : vector<4x128xf32>
    %cst_91 = arith.constant dense<0.000000e+00> : vector<128xf32>
    %282 = vector.multi_reduction <add>, %281, %cst_91 [0] : vector<4x128xf32> to vector<128xf32>
    %283 = vector.shape_cast %282 : vector<128xf32> to vector<1x128xf32>
    %cst_92 = arith.constant 7.812500e-03 : f32
    %284 = vector.broadcast %cst_92 : f32 to vector<1x128xf32>
    %285 = arith.mulf %284, %283 : vector<1x128xf32>
    %286 = arith.addf %214, %285 : vector<1x128xf32>
    %287 = arith.subf %273, %277 : vector<4x128xf32>
    %288 = vector.broadcast %231 : vector<1x128xf32> to vector<4x128xf32>
    %289 = arith.mulf %287, %288 : vector<4x128xf32>
    %290 = math.absf %289 : vector<4x128xf32>
    %cst_93 = arith.constant dense<0.000000e+00> : vector<128xf32>
    %291 = vector.multi_reduction <add>, %290, %cst_93 [0] : vector<4x128xf32> to vector<128xf32>
    %292 = vector.shape_cast %291 : vector<128xf32> to vector<1x128xf32>
    %cst_94 = arith.constant 7.812500e-03 : f32
    %293 = vector.broadcast %cst_94 : f32 to vector<1x128xf32>
    %294 = arith.mulf %293, %292 : vector<1x128xf32>
    %295 = arith.addf %223, %294 : vector<1x128xf32>
    %c4 = arith.constant 4 : index
    %c0_95 = arith.constant 0 : index
    %c0_96 = arith.constant 0 : index
    %296 = vector.load %arg1[%c4, %c0_95, %c0_96] : memref<14x384x128xf32, #tpu.memory_space<vmem>>, vector<1x384x128xf32>
    %297 = vector.shape_cast %296 : vector<1x384x128xf32> to vector<384x128xf32>
    %c4_97 = arith.constant 4 : index
    %c0_98 = arith.constant 0 : index
    %c0_99 = arith.constant 0 : index
    %298 = vector.load %arg2[%c4_97, %c0_98, %c0_99] : memref<14x1x128xf32, #tpu.memory_space<vmem>>, vector<1x1x128xf32>
    %299 = vector.shape_cast %298 : vector<1x1x128xf32> to vector<1x128xf32>
    %c4_100 = arith.constant 4 : index
    %c0_101 = arith.constant 0 : index
    %c0_102 = arith.constant 0 : index
    %300 = vector.load %arg3[%c4_100, %c0_101, %c0_102] : memref<14x1x128xf32, #tpu.memory_space<vmem>>, vector<1x1x128xf32>
    %301 = vector.shape_cast %300 : vector<1x1x128xf32> to vector<1x128xf32>
    %c4_103 = arith.constant 4 : index
    %c0_104 = arith.constant 0 : index
    %c0_105 = arith.constant 0 : index
    %302 = vector.load %arg4[%c4_103, %c0_104, %c0_105] : memref<14x1x128xf32, #tpu.memory_space<vmem>>, vector<1x1x128xf32>
    %303 = vector.shape_cast %302 : vector<1x1x128xf32> to vector<1x128xf32>
    %304 = vector.extract_strided_slice %271 {offsets = [0, 0], sizes = [3, 128], strides = [1, 1]} : vector<4x128xf32> to vector<3x128xf32>
    %305 = tpu.concatenate %7, %304 in 0 : vector<1x128xf32>, vector<3x128xf32> -> vector<4x128xf32>
    %306 = vector.extract_strided_slice %271 {offsets = [1, 0], sizes = [3, 128], strides = [1, 1]} : vector<4x128xf32> to vector<3x128xf32>
    %307 = tpu.concatenate %306, %7 in 0 : vector<3x128xf32>, vector<1x128xf32> -> vector<4x128xf32>
    %308 = tpu.concatenate %305, %271, %307 in 1 : vector<4x128xf32>, vector<4x128xf32>, vector<4x128xf32> -> vector<4x384xf32>
    %309 = vector.extract_strided_slice %273 {offsets = [0, 0], sizes = [3, 128], strides = [1, 1]} : vector<4x128xf32> to vector<3x128xf32>
    %310 = tpu.concatenate %7, %309 in 0 : vector<1x128xf32>, vector<3x128xf32> -> vector<4x128xf32>
    %311 = vector.extract_strided_slice %273 {offsets = [1, 0], sizes = [3, 128], strides = [1, 1]} : vector<4x128xf32> to vector<3x128xf32>
    %312 = tpu.concatenate %311, %7 in 0 : vector<3x128xf32>, vector<1x128xf32> -> vector<4x128xf32>
    %313 = tpu.concatenate %310, %273, %312 in 1 : vector<4x128xf32>, vector<4x128xf32>, vector<4x128xf32> -> vector<4x384xf32>
    %314 = vector.extract_strided_slice %275 {offsets = [0, 0], sizes = [3, 128], strides = [1, 1]} : vector<4x128xf32> to vector<3x128xf32>
    %315 = tpu.concatenate %7, %314 in 0 : vector<1x128xf32>, vector<3x128xf32> -> vector<4x128xf32>
    %316 = vector.extract_strided_slice %275 {offsets = [1, 0], sizes = [3, 128], strides = [1, 1]} : vector<4x128xf32> to vector<3x128xf32>
    %317 = tpu.concatenate %316, %7 in 0 : vector<3x128xf32>, vector<1x128xf32> -> vector<4x128xf32>
    %318 = tpu.concatenate %315, %275, %317 in 1 : vector<4x128xf32>, vector<4x128xf32>, vector<4x128xf32> -> vector<4x384xf32>
    %319 = vector.extract_strided_slice %277 {offsets = [0, 0], sizes = [3, 128], strides = [1, 1]} : vector<4x128xf32> to vector<3x128xf32>
    %320 = tpu.concatenate %7, %319 in 0 : vector<1x128xf32>, vector<3x128xf32> -> vector<4x128xf32>
    %321 = vector.extract_strided_slice %277 {offsets = [1, 0], sizes = [3, 128], strides = [1, 1]} : vector<4x128xf32> to vector<3x128xf32>
    %322 = tpu.concatenate %321, %7 in 0 : vector<3x128xf32>, vector<1x128xf32> -> vector<4x128xf32>
    %323 = tpu.concatenate %320, %277, %322 in 1 : vector<4x128xf32>, vector<4x128xf32>, vector<4x128xf32> -> vector<4x384xf32>
    %324 = tpu.concatenate %308, %313, %318, %323 in 0 : vector<4x384xf32>, vector<4x384xf32>, vector<4x384xf32>, vector<4x384xf32> -> vector<16x384xf32>
    %cst_106 = arith.constant dense<0.000000e+00> : vector<16x128xf32>
    %325 = tpu.matmul %324, %297, %cst_106 {dimension_numbers = #tpu.dot_dimension_numbers<[1], [0], [0], [1], [0, 0, 1, 1], [], []>} : vector<16x384xf32>, vector<384x128xf32>, vector<16x128xf32> -> vector<16x128xf32>
    %326 = vector.broadcast %299 : vector<1x128xf32> to vector<16x128xf32>
    %327 = arith.mulf %325, %326 : vector<16x128xf32>
    %328 = vector.broadcast %301 : vector<1x128xf32> to vector<16x128xf32>
    %329 = arith.addf %327, %328 : vector<16x128xf32>
    %cst_107 = arith.constant 0.000000e+00 : f32
    %330 = vector.broadcast %cst_107 : f32 to vector<16x128xf32>
    %331 = arith.cmpf oge, %329, %330 : vector<16x128xf32>
    %cst_108 = arith.constant 0.00999999977 : f32
    %332 = vector.broadcast %cst_108 : f32 to vector<16x128xf32>
    %333 = arith.mulf %332, %329 : vector<16x128xf32>
    %334 = arith.select %331, %329, %333 : vector<16x128xi1>, vector<16x128xf32>
    %335 = tpu.iota {dimensions = array<i32: 0>} : vector<2x4xi32>
    %c2_i32_109 = arith.constant 2 : i32
    %336 = vector.broadcast %c2_i32_109 : i32 to vector<2x4xi32>
    %337 = arith.muli %335, %336 : vector<2x4xi32>
    %338 = tpu.iota {dimensions = array<i32: 1>} : vector<2x4xi32>
    %339 = arith.cmpi eq, %337, %338 : vector<2x4xi32>
    %340 = arith.extui %339 : vector<2x4xi1> to vector<2x4xi32>
    %341 = arith.sitofp %340 : vector<2x4xi32> to vector<2x4xf32>
    %342 = vector.extract_strided_slice %334 {offsets = [0, 0], sizes = [4, 128], strides = [1, 1]} : vector<16x128xf32> to vector<4x128xf32>
    %cst_110 = arith.constant dense<0.000000e+00> : vector<2x128xf32>
    %343 = tpu.matmul %341, %342, %cst_110 {dimension_numbers = #tpu.dot_dimension_numbers<[1], [0], [0], [1], [0, 0, 1, 1], [], []>} : vector<2x4xf32>, vector<4x128xf32>, vector<2x128xf32> -> vector<2x128xf32>
    %344 = vector.extract_strided_slice %334 {offsets = [4, 0], sizes = [4, 128], strides = [1, 1]} : vector<16x128xf32> to vector<4x128xf32>
    %cst_111 = arith.constant dense<0.000000e+00> : vector<2x128xf32>
    %345 = tpu.matmul %341, %344, %cst_111 {dimension_numbers = #tpu.dot_dimension_numbers<[1], [0], [0], [1], [0, 0, 1, 1], [], []>} : vector<2x4xf32>, vector<4x128xf32>, vector<2x128xf32> -> vector<2x128xf32>
    %346 = vector.extract_strided_slice %334 {offsets = [8, 0], sizes = [4, 128], strides = [1, 1]} : vector<16x128xf32> to vector<4x128xf32>
    %cst_112 = arith.constant dense<0.000000e+00> : vector<2x128xf32>
    %347 = tpu.matmul %341, %346, %cst_112 {dimension_numbers = #tpu.dot_dimension_numbers<[1], [0], [0], [1], [0, 0, 1, 1], [], []>} : vector<2x4xf32>, vector<4x128xf32>, vector<2x128xf32> -> vector<2x128xf32>
    %348 = vector.extract_strided_slice %334 {offsets = [12, 0], sizes = [4, 128], strides = [1, 1]} : vector<16x128xf32> to vector<4x128xf32>
    %cst_113 = arith.constant dense<0.000000e+00> : vector<2x128xf32>
    %349 = tpu.matmul %341, %348, %cst_113 {dimension_numbers = #tpu.dot_dimension_numbers<[1], [0], [0], [1], [0, 0, 1, 1], [], []>} : vector<2x4xf32>, vector<4x128xf32>, vector<2x128xf32> -> vector<2x128xf32>
    %350 = arith.subf %343, %347 : vector<2x128xf32>
    %351 = vector.broadcast %303 : vector<1x128xf32> to vector<2x128xf32>
    %352 = arith.mulf %350, %351 : vector<2x128xf32>
    %353 = math.absf %352 : vector<2x128xf32>
    %cst_114 = arith.constant dense<0.000000e+00> : vector<128xf32>
    %354 = vector.multi_reduction <add>, %353, %cst_114 [0] : vector<2x128xf32> to vector<128xf32>
    %355 = vector.shape_cast %354 : vector<128xf32> to vector<1x128xf32>
    %cst_115 = arith.constant 7.812500e-03 : f32
    %356 = vector.broadcast %cst_115 : f32 to vector<1x128xf32>
    %357 = arith.mulf %356, %355 : vector<1x128xf32>
    %358 = arith.addf %286, %357 : vector<1x128xf32>
    %359 = arith.subf %345, %349 : vector<2x128xf32>
    %360 = vector.broadcast %303 : vector<1x128xf32> to vector<2x128xf32>
    %361 = arith.mulf %359, %360 : vector<2x128xf32>
    %362 = math.absf %361 : vector<2x128xf32>
    %cst_116 = arith.constant dense<0.000000e+00> : vector<128xf32>
    %363 = vector.multi_reduction <add>, %362, %cst_116 [0] : vector<2x128xf32> to vector<128xf32>
    %364 = vector.shape_cast %363 : vector<128xf32> to vector<1x128xf32>
    %cst_117 = arith.constant 7.812500e-03 : f32
    %365 = vector.broadcast %cst_117 : f32 to vector<1x128xf32>
    %366 = arith.mulf %365, %364 : vector<1x128xf32>
    %367 = arith.addf %295, %366 : vector<1x128xf32>
    %c5 = arith.constant 5 : index
    %c0_118 = arith.constant 0 : index
    %c0_119 = arith.constant 0 : index
    %368 = vector.load %arg1[%c5, %c0_118, %c0_119] : memref<14x384x128xf32, #tpu.memory_space<vmem>>, vector<1x384x128xf32>
    %369 = vector.shape_cast %368 : vector<1x384x128xf32> to vector<384x128xf32>
    %c5_120 = arith.constant 5 : index
    %c0_121 = arith.constant 0 : index
    %c0_122 = arith.constant 0 : index
    %370 = vector.load %arg2[%c5_120, %c0_121, %c0_122] : memref<14x1x128xf32, #tpu.memory_space<vmem>>, vector<1x1x128xf32>
    %371 = vector.shape_cast %370 : vector<1x1x128xf32> to vector<1x128xf32>
    %c5_123 = arith.constant 5 : index
    %c0_124 = arith.constant 0 : index
    %c0_125 = arith.constant 0 : index
    %372 = vector.load %arg3[%c5_123, %c0_124, %c0_125] : memref<14x1x128xf32, #tpu.memory_space<vmem>>, vector<1x1x128xf32>
    %373 = vector.shape_cast %372 : vector<1x1x128xf32> to vector<1x128xf32>
    %c5_126 = arith.constant 5 : index
    %c0_127 = arith.constant 0 : index
    %c0_128 = arith.constant 0 : index
    %374 = vector.load %arg4[%c5_126, %c0_127, %c0_128] : memref<14x1x128xf32, #tpu.memory_space<vmem>>, vector<1x1x128xf32>
    %375 = vector.shape_cast %374 : vector<1x1x128xf32> to vector<1x128xf32>
    %376 = vector.extract_strided_slice %343 {offsets = [0, 0], sizes = [1, 128], strides = [1, 1]} : vector<2x128xf32> to vector<1x128xf32>
    %377 = tpu.concatenate %7, %376 in 0 : vector<1x128xf32>, vector<1x128xf32> -> vector<2x128xf32>
    %378 = vector.extract_strided_slice %343 {offsets = [1, 0], sizes = [1, 128], strides = [1, 1]} : vector<2x128xf32> to vector<1x128xf32>
    %379 = tpu.concatenate %378, %7 in 0 : vector<1x128xf32>, vector<1x128xf32> -> vector<2x128xf32>
    %380 = tpu.concatenate %377, %343, %379 in 1 : vector<2x128xf32>, vector<2x128xf32>, vector<2x128xf32> -> vector<2x384xf32>
    %381 = vector.extract_strided_slice %345 {offsets = [0, 0], sizes = [1, 128], strides = [1, 1]} : vector<2x128xf32> to vector<1x128xf32>
    %382 = tpu.concatenate %7, %381 in 0 : vector<1x128xf32>, vector<1x128xf32> -> vector<2x128xf32>
    %383 = vector.extract_strided_slice %345 {offsets = [1, 0], sizes = [1, 128], strides = [1, 1]} : vector<2x128xf32> to vector<1x128xf32>
    %384 = tpu.concatenate %383, %7 in 0 : vector<1x128xf32>, vector<1x128xf32> -> vector<2x128xf32>
    %385 = tpu.concatenate %382, %345, %384 in 1 : vector<2x128xf32>, vector<2x128xf32>, vector<2x128xf32> -> vector<2x384xf32>
    %386 = vector.extract_strided_slice %347 {offsets = [0, 0], sizes = [1, 128], strides = [1, 1]} : vector<2x128xf32> to vector<1x128xf32>
    %387 = tpu.concatenate %7, %386 in 0 : vector<1x128xf32>, vector<1x128xf32> -> vector<2x128xf32>
    %388 = vector.extract_strided_slice %347 {offsets = [1, 0], sizes = [1, 128], strides = [1, 1]} : vector<2x128xf32> to vector<1x128xf32>
    %389 = tpu.concatenate %388, %7 in 0 : vector<1x128xf32>, vector<1x128xf32> -> vector<2x128xf32>
    %390 = tpu.concatenate %387, %347, %389 in 1 : vector<2x128xf32>, vector<2x128xf32>, vector<2x128xf32> -> vector<2x384xf32>
    %391 = vector.extract_strided_slice %349 {offsets = [0, 0], sizes = [1, 128], strides = [1, 1]} : vector<2x128xf32> to vector<1x128xf32>
    %392 = tpu.concatenate %7, %391 in 0 : vector<1x128xf32>, vector<1x128xf32> -> vector<2x128xf32>
    %393 = vector.extract_strided_slice %349 {offsets = [1, 0], sizes = [1, 128], strides = [1, 1]} : vector<2x128xf32> to vector<1x128xf32>
    %394 = tpu.concatenate %393, %7 in 0 : vector<1x128xf32>, vector<1x128xf32> -> vector<2x128xf32>
    %395 = tpu.concatenate %392, %349, %394 in 1 : vector<2x128xf32>, vector<2x128xf32>, vector<2x128xf32> -> vector<2x384xf32>
    %396 = tpu.concatenate %380, %385, %390, %395 in 0 : vector<2x384xf32>, vector<2x384xf32>, vector<2x384xf32>, vector<2x384xf32> -> vector<8x384xf32>
    %cst_129 = arith.constant dense<0.000000e+00> : vector<8x128xf32>
    %397 = tpu.matmul %396, %369, %cst_129 {dimension_numbers = #tpu.dot_dimension_numbers<[1], [0], [0], [1], [0, 0, 1, 1], [], []>} : vector<8x384xf32>, vector<384x128xf32>, vector<8x128xf32> -> vector<8x128xf32>
    %398 = vector.broadcast %371 : vector<1x128xf32> to vector<8x128xf32>
    %399 = arith.mulf %397, %398 : vector<8x128xf32>
    %400 = vector.broadcast %373 : vector<1x128xf32> to vector<8x128xf32>
    %401 = arith.addf %399, %400 : vector<8x128xf32>
    %cst_130 = arith.constant 0.000000e+00 : f32
    %402 = vector.broadcast %cst_130 : f32 to vector<8x128xf32>
    %403 = arith.cmpf oge, %401, %402 : vector<8x128xf32>
    %cst_131 = arith.constant 0.00999999977 : f32
    %404 = vector.broadcast %cst_131 : f32 to vector<8x128xf32>
    %405 = arith.mulf %404, %401 : vector<8x128xf32>
    %406 = arith.select %403, %401, %405 : vector<8x128xi1>, vector<8x128xf32>
    %407 = tpu.iota {dimensions = array<i32: 0>} : vector<1x2xi32>
    %c2_i32_132 = arith.constant 2 : i32
    %408 = vector.broadcast %c2_i32_132 : i32 to vector<1x2xi32>
    %409 = arith.muli %407, %408 : vector<1x2xi32>
    %410 = tpu.iota {dimensions = array<i32: 1>} : vector<1x2xi32>
    %411 = arith.cmpi eq, %409, %410 : vector<1x2xi32>
    %412 = arith.extui %411 : vector<1x2xi1> to vector<1x2xi32>
    %413 = arith.sitofp %412 : vector<1x2xi32> to vector<1x2xf32>
    %414 = vector.extract_strided_slice %406 {offsets = [0, 0], sizes = [2, 128], strides = [1, 1]} : vector<8x128xf32> to vector<2x128xf32>
    %cst_133 = arith.constant dense<0.000000e+00> : vector<1x128xf32>
    %415 = tpu.matmul %413, %414, %cst_133 {dimension_numbers = #tpu.dot_dimension_numbers<[1], [0], [0], [1], [0, 0, 1, 1], [], []>} : vector<1x2xf32>, vector<2x128xf32>, vector<1x128xf32> -> vector<1x128xf32>
    %416 = vector.extract_strided_slice %406 {offsets = [2, 0], sizes = [2, 128], strides = [1, 1]} : vector<8x128xf32> to vector<2x128xf32>
    %cst_134 = arith.constant dense<0.000000e+00> : vector<1x128xf32>
    %417 = tpu.matmul %413, %416, %cst_134 {dimension_numbers = #tpu.dot_dimension_numbers<[1], [0], [0], [1], [0, 0, 1, 1], [], []>} : vector<1x2xf32>, vector<2x128xf32>, vector<1x128xf32> -> vector<1x128xf32>
    %418 = vector.extract_strided_slice %406 {offsets = [4, 0], sizes = [2, 128], strides = [1, 1]} : vector<8x128xf32> to vector<2x128xf32>
    %cst_135 = arith.constant dense<0.000000e+00> : vector<1x128xf32>
    %419 = tpu.matmul %413, %418, %cst_135 {dimension_numbers = #tpu.dot_dimension_numbers<[1], [0], [0], [1], [0, 0, 1, 1], [], []>} : vector<1x2xf32>, vector<2x128xf32>, vector<1x128xf32> -> vector<1x128xf32>
    %420 = vector.extract_strided_slice %406 {offsets = [6, 0], sizes = [2, 128], strides = [1, 1]} : vector<8x128xf32> to vector<2x128xf32>
    %cst_136 = arith.constant dense<0.000000e+00> : vector<1x128xf32>
    %421 = tpu.matmul %413, %420, %cst_136 {dimension_numbers = #tpu.dot_dimension_numbers<[1], [0], [0], [1], [0, 0, 1, 1], [], []>} : vector<1x2xf32>, vector<2x128xf32>, vector<1x128xf32> -> vector<1x128xf32>
    %422 = arith.subf %415, %419 : vector<1x128xf32>
    %423 = arith.mulf %422, %375 : vector<1x128xf32>
    %424 = math.absf %423 : vector<1x128xf32>
    %cst_137 = arith.constant dense<0.000000e+00> : vector<128xf32>
    %425 = vector.multi_reduction <add>, %424, %cst_137 [0] : vector<1x128xf32> to vector<128xf32>
    %426 = vector.shape_cast %425 : vector<128xf32> to vector<1x128xf32>
    %cst_138 = arith.constant 1.562500e-02 : f32
    %427 = vector.broadcast %cst_138 : f32 to vector<1x128xf32>
    %428 = arith.mulf %427, %426 : vector<1x128xf32>
    %429 = arith.addf %358, %428 : vector<1x128xf32>
    %430 = arith.subf %417, %421 : vector<1x128xf32>
    %431 = arith.mulf %430, %375 : vector<1x128xf32>
    %432 = math.absf %431 : vector<1x128xf32>
    %cst_139 = arith.constant dense<0.000000e+00> : vector<128xf32>
    %433 = vector.multi_reduction <add>, %432, %cst_139 [0] : vector<1x128xf32> to vector<128xf32>
    %434 = vector.shape_cast %433 : vector<128xf32> to vector<1x128xf32>
    %cst_140 = arith.constant 1.562500e-02 : f32
    %435 = vector.broadcast %cst_140 : f32 to vector<1x128xf32>
    %436 = arith.mulf %435, %434 : vector<1x128xf32>
    %437 = arith.addf %367, %436 : vector<1x128xf32>
    %c6 = arith.constant 6 : index
    %c0_141 = arith.constant 0 : index
    %c0_142 = arith.constant 0 : index
    %438 = vector.load %arg1[%c6, %c0_141, %c0_142] : memref<14x384x128xf32, #tpu.memory_space<vmem>>, vector<1x384x128xf32>
    %439 = vector.shape_cast %438 : vector<1x384x128xf32> to vector<384x128xf32>
    %c6_143 = arith.constant 6 : index
    %c0_144 = arith.constant 0 : index
    %c0_145 = arith.constant 0 : index
    %440 = vector.load %arg2[%c6_143, %c0_144, %c0_145] : memref<14x1x128xf32, #tpu.memory_space<vmem>>, vector<1x1x128xf32>
    %441 = vector.shape_cast %440 : vector<1x1x128xf32> to vector<1x128xf32>
    %c6_146 = arith.constant 6 : index
    %c0_147 = arith.constant 0 : index
    %c0_148 = arith.constant 0 : index
    %442 = vector.load %arg3[%c6_146, %c0_147, %c0_148] : memref<14x1x128xf32, #tpu.memory_space<vmem>>, vector<1x1x128xf32>
    %443 = vector.shape_cast %442 : vector<1x1x128xf32> to vector<1x128xf32>
    %c6_149 = arith.constant 6 : index
    %c0_150 = arith.constant 0 : index
    %c0_151 = arith.constant 0 : index
    %444 = vector.load %arg4[%c6_149, %c0_150, %c0_151] : memref<14x1x128xf32, #tpu.memory_space<vmem>>, vector<1x1x128xf32>
    %445 = vector.shape_cast %444 : vector<1x1x128xf32> to vector<1x128xf32>
    %446 = tpu.concatenate %7, %415, %7 in 1 : vector<1x128xf32>, vector<1x128xf32>, vector<1x128xf32> -> vector<1x384xf32>
    %447 = tpu.concatenate %7, %417, %7 in 1 : vector<1x128xf32>, vector<1x128xf32>, vector<1x128xf32> -> vector<1x384xf32>
    %448 = tpu.concatenate %7, %419, %7 in 1 : vector<1x128xf32>, vector<1x128xf32>, vector<1x128xf32> -> vector<1x384xf32>
    %449 = tpu.concatenate %7, %421, %7 in 1 : vector<1x128xf32>, vector<1x128xf32>, vector<1x128xf32> -> vector<1x384xf32>
    %450 = tpu.concatenate %446, %447, %448, %449 in 0 : vector<1x384xf32>, vector<1x384xf32>, vector<1x384xf32>, vector<1x384xf32> -> vector<4x384xf32>
    %cst_152 = arith.constant dense<0.000000e+00> : vector<4x128xf32>
    %451 = tpu.matmul %450, %439, %cst_152 {dimension_numbers = #tpu.dot_dimension_numbers<[1], [0], [0], [1], [0, 0, 1, 1], [], []>} : vector<4x384xf32>, vector<384x128xf32>, vector<4x128xf32> -> vector<4x128xf32>
    %452 = vector.broadcast %441 : vector<1x128xf32> to vector<4x128xf32>
    %453 = arith.mulf %451, %452 : vector<4x128xf32>
    %454 = vector.broadcast %443 : vector<1x128xf32> to vector<4x128xf32>
    %455 = arith.addf %453, %454 : vector<4x128xf32>
    %cst_153 = arith.constant 0.000000e+00 : f32
    %456 = vector.broadcast %cst_153 : f32 to vector<4x128xf32>
    %457 = arith.cmpf oge, %455, %456 : vector<4x128xf32>
    %cst_154 = arith.constant 0.00999999977 : f32
    %458 = vector.broadcast %cst_154 : f32 to vector<4x128xf32>
    %459 = arith.mulf %458, %455 : vector<4x128xf32>
    %460 = arith.select %457, %455, %459 : vector<4x128xi1>, vector<4x128xf32>
    %461 = vector.extract_strided_slice %460 {offsets = [0, 0], sizes = [1, 128], strides = [1, 1]} : vector<4x128xf32> to vector<1x128xf32>
    %462 = vector.extract_strided_slice %460 {offsets = [1, 0], sizes = [1, 128], strides = [1, 1]} : vector<4x128xf32> to vector<1x128xf32>
    %463 = vector.extract_strided_slice %460 {offsets = [2, 0], sizes = [1, 128], strides = [1, 1]} : vector<4x128xf32> to vector<1x128xf32>
    %464 = vector.extract_strided_slice %460 {offsets = [3, 0], sizes = [1, 128], strides = [1, 1]} : vector<4x128xf32> to vector<1x128xf32>
    %465 = arith.subf %461, %463 : vector<1x128xf32>
    %466 = arith.mulf %465, %445 : vector<1x128xf32>
    %467 = math.absf %466 : vector<1x128xf32>
    %cst_155 = arith.constant dense<0.000000e+00> : vector<128xf32>
    %468 = vector.multi_reduction <add>, %467, %cst_155 [0] : vector<1x128xf32> to vector<128xf32>
    %469 = vector.shape_cast %468 : vector<128xf32> to vector<1x128xf32>
    %cst_156 = arith.constant 1.562500e-02 : f32
    %470 = vector.broadcast %cst_156 : f32 to vector<1x128xf32>
    %471 = arith.mulf %470, %469 : vector<1x128xf32>
    %472 = arith.addf %429, %471 : vector<1x128xf32>
    %473 = arith.subf %462, %464 : vector<1x128xf32>
    %474 = arith.mulf %473, %445 : vector<1x128xf32>
    %475 = math.absf %474 : vector<1x128xf32>
    %cst_157 = arith.constant dense<0.000000e+00> : vector<128xf32>
    %476 = vector.multi_reduction <add>, %475, %cst_157 [0] : vector<1x128xf32> to vector<128xf32>
    %477 = vector.shape_cast %476 : vector<128xf32> to vector<1x128xf32>
    %cst_158 = arith.constant 1.562500e-02 : f32
    %478 = vector.broadcast %cst_158 : f32 to vector<1x128xf32>
    %479 = arith.mulf %478, %477 : vector<1x128xf32>
    %480 = arith.addf %437, %479 : vector<1x128xf32>
    %c7 = arith.constant 7 : index
    %c0_159 = arith.constant 0 : index
    %c0_160 = arith.constant 0 : index
    %481 = vector.load %arg1[%c7, %c0_159, %c0_160] : memref<14x384x128xf32, #tpu.memory_space<vmem>>, vector<1x384x128xf32>
    %482 = vector.shape_cast %481 : vector<1x384x128xf32> to vector<384x128xf32>
    %c7_161 = arith.constant 7 : index
    %c0_162 = arith.constant 0 : index
    %c0_163 = arith.constant 0 : index
    %483 = vector.load %arg2[%c7_161, %c0_162, %c0_163] : memref<14x1x128xf32, #tpu.memory_space<vmem>>, vector<1x1x128xf32>
    %484 = vector.shape_cast %483 : vector<1x1x128xf32> to vector<1x128xf32>
    %c7_164 = arith.constant 7 : index
    %c0_165 = arith.constant 0 : index
    %c0_166 = arith.constant 0 : index
    %485 = vector.load %arg3[%c7_164, %c0_165, %c0_166] : memref<14x1x128xf32, #tpu.memory_space<vmem>>, vector<1x1x128xf32>
    %486 = vector.shape_cast %485 : vector<1x1x128xf32> to vector<1x128xf32>
    %c7_167 = arith.constant 7 : index
    %c0_168 = arith.constant 0 : index
    %c0_169 = arith.constant 0 : index
    %487 = vector.load %arg4[%c7_167, %c0_168, %c0_169] : memref<14x1x128xf32, #tpu.memory_space<vmem>>, vector<1x1x128xf32>
    %488 = vector.shape_cast %487 : vector<1x1x128xf32> to vector<1x128xf32>
    %489 = tpu.concatenate %7, %461, %7 in 1 : vector<1x128xf32>, vector<1x128xf32>, vector<1x128xf32> -> vector<1x384xf32>
    %490 = tpu.concatenate %7, %462, %7 in 1 : vector<1x128xf32>, vector<1x128xf32>, vector<1x128xf32> -> vector<1x384xf32>
    %491 = tpu.concatenate %7, %463, %7 in 1 : vector<1x128xf32>, vector<1x128xf32>, vector<1x128xf32> -> vector<1x384xf32>
    %492 = tpu.concatenate %7, %464, %7 in 1 : vector<1x128xf32>, vector<1x128xf32>, vector<1x128xf32> -> vector<1x384xf32>
    %493 = tpu.concatenate %489, %490, %491, %492 in 0 : vector<1x384xf32>, vector<1x384xf32>, vector<1x384xf32>, vector<1x384xf32> -> vector<4x384xf32>
    %cst_170 = arith.constant dense<0.000000e+00> : vector<4x128xf32>
    %494 = tpu.matmul %493, %482, %cst_170 {dimension_numbers = #tpu.dot_dimension_numbers<[1], [0], [0], [1], [0, 0, 1, 1], [], []>} : vector<4x384xf32>, vector<384x128xf32>, vector<4x128xf32> -> vector<4x128xf32>
    %495 = vector.broadcast %484 : vector<1x128xf32> to vector<4x128xf32>
    %496 = arith.mulf %494, %495 : vector<4x128xf32>
    %497 = vector.broadcast %486 : vector<1x128xf32> to vector<4x128xf32>
    %498 = arith.addf %496, %497 : vector<4x128xf32>
    %cst_171 = arith.constant 0.000000e+00 : f32
    %499 = vector.broadcast %cst_171 : f32 to vector<4x128xf32>
    %500 = arith.cmpf oge, %498, %499 : vector<4x128xf32>
    %cst_172 = arith.constant 0.00999999977 : f32
    %501 = vector.broadcast %cst_172 : f32 to vector<4x128xf32>
    %502 = arith.mulf %501, %498 : vector<4x128xf32>
    %503 = arith.select %500, %498, %502 : vector<4x128xi1>, vector<4x128xf32>
    %504 = vector.extract_strided_slice %503 {offsets = [0, 0], sizes = [1, 128], strides = [1, 1]} : vector<4x128xf32> to vector<1x128xf32>
    %505 = vector.extract_strided_slice %503 {offsets = [1, 0], sizes = [1, 128], strides = [1, 1]} : vector<4x128xf32> to vector<1x128xf32>
    %506 = vector.extract_strided_slice %503 {offsets = [2, 0], sizes = [1, 128], strides = [1, 1]} : vector<4x128xf32> to vector<1x128xf32>
    %507 = vector.extract_strided_slice %503 {offsets = [3, 0], sizes = [1, 128], strides = [1, 1]} : vector<4x128xf32> to vector<1x128xf32>
    %508 = arith.subf %504, %506 : vector<1x128xf32>
    %509 = arith.mulf %508, %488 : vector<1x128xf32>
    %510 = math.absf %509 : vector<1x128xf32>
    %cst_173 = arith.constant dense<0.000000e+00> : vector<128xf32>
    %511 = vector.multi_reduction <add>, %510, %cst_173 [0] : vector<1x128xf32> to vector<128xf32>
    %512 = vector.shape_cast %511 : vector<128xf32> to vector<1x128xf32>
    %cst_174 = arith.constant 1.562500e-02 : f32
    %513 = vector.broadcast %cst_174 : f32 to vector<1x128xf32>
    %514 = arith.mulf %513, %512 : vector<1x128xf32>
    %515 = arith.addf %472, %514 : vector<1x128xf32>
    %516 = arith.subf %505, %507 : vector<1x128xf32>
    %517 = arith.mulf %516, %488 : vector<1x128xf32>
    %518 = math.absf %517 : vector<1x128xf32>
    %cst_175 = arith.constant dense<0.000000e+00> : vector<128xf32>
    %519 = vector.multi_reduction <add>, %518, %cst_175 [0] : vector<1x128xf32> to vector<128xf32>
    %520 = vector.shape_cast %519 : vector<128xf32> to vector<1x128xf32>
    %cst_176 = arith.constant 1.562500e-02 : f32
    %521 = vector.broadcast %cst_176 : f32 to vector<1x128xf32>
    %522 = arith.mulf %521, %520 : vector<1x128xf32>
    %523 = arith.addf %480, %522 : vector<1x128xf32>
    %c8 = arith.constant 8 : index
    %c0_177 = arith.constant 0 : index
    %c0_178 = arith.constant 0 : index
    %524 = vector.load %arg1[%c8, %c0_177, %c0_178] : memref<14x384x128xf32, #tpu.memory_space<vmem>>, vector<1x384x128xf32>
    %525 = vector.shape_cast %524 : vector<1x384x128xf32> to vector<384x128xf32>
    %c8_179 = arith.constant 8 : index
    %c0_180 = arith.constant 0 : index
    %c0_181 = arith.constant 0 : index
    %526 = vector.load %arg2[%c8_179, %c0_180, %c0_181] : memref<14x1x128xf32, #tpu.memory_space<vmem>>, vector<1x1x128xf32>
    %527 = vector.shape_cast %526 : vector<1x1x128xf32> to vector<1x128xf32>
    %c8_182 = arith.constant 8 : index
    %c0_183 = arith.constant 0 : index
    %c0_184 = arith.constant 0 : index
    %528 = vector.load %arg3[%c8_182, %c0_183, %c0_184] : memref<14x1x128xf32, #tpu.memory_space<vmem>>, vector<1x1x128xf32>
    %529 = vector.shape_cast %528 : vector<1x1x128xf32> to vector<1x128xf32>
    %c8_185 = arith.constant 8 : index
    %c0_186 = arith.constant 0 : index
    %c0_187 = arith.constant 0 : index
    %530 = vector.load %arg4[%c8_185, %c0_186, %c0_187] : memref<14x1x128xf32, #tpu.memory_space<vmem>>, vector<1x1x128xf32>
    %531 = vector.shape_cast %530 : vector<1x1x128xf32> to vector<1x128xf32>
    %532 = tpu.concatenate %7, %504, %7 in 1 : vector<1x128xf32>, vector<1x128xf32>, vector<1x128xf32> -> vector<1x384xf32>
    %533 = tpu.concatenate %7, %505, %7 in 1 : vector<1x128xf32>, vector<1x128xf32>, vector<1x128xf32> -> vector<1x384xf32>
    %534 = tpu.concatenate %7, %506, %7 in 1 : vector<1x128xf32>, vector<1x128xf32>, vector<1x128xf32> -> vector<1x384xf32>
    %535 = tpu.concatenate %7, %507, %7 in 1 : vector<1x128xf32>, vector<1x128xf32>, vector<1x128xf32> -> vector<1x384xf32>
    %536 = tpu.concatenate %532, %533, %534, %535 in 0 : vector<1x384xf32>, vector<1x384xf32>, vector<1x384xf32>, vector<1x384xf32> -> vector<4x384xf32>
    %cst_188 = arith.constant dense<0.000000e+00> : vector<4x128xf32>
    %537 = tpu.matmul %536, %525, %cst_188 {dimension_numbers = #tpu.dot_dimension_numbers<[1], [0], [0], [1], [0, 0, 1, 1], [], []>} : vector<4x384xf32>, vector<384x128xf32>, vector<4x128xf32> -> vector<4x128xf32>
    %538 = vector.broadcast %527 : vector<1x128xf32> to vector<4x128xf32>
    %539 = arith.mulf %537, %538 : vector<4x128xf32>
    %540 = vector.broadcast %529 : vector<1x128xf32> to vector<4x128xf32>
    %541 = arith.addf %539, %540 : vector<4x128xf32>
    %cst_189 = arith.constant 0.000000e+00 : f32
    %542 = vector.broadcast %cst_189 : f32 to vector<4x128xf32>
    %543 = arith.cmpf oge, %541, %542 : vector<4x128xf32>
    %cst_190 = arith.constant 0.00999999977 : f32
    %544 = vector.broadcast %cst_190 : f32 to vector<4x128xf32>
    %545 = arith.mulf %544, %541 : vector<4x128xf32>
    %546 = arith.select %543, %541, %545 : vector<4x128xi1>, vector<4x128xf32>
    %547 = vector.extract_strided_slice %546 {offsets = [0, 0], sizes = [1, 128], strides = [1, 1]} : vector<4x128xf32> to vector<1x128xf32>
    %548 = vector.extract_strided_slice %546 {offsets = [1, 0], sizes = [1, 128], strides = [1, 1]} : vector<4x128xf32> to vector<1x128xf32>
    %549 = vector.extract_strided_slice %546 {offsets = [2, 0], sizes = [1, 128], strides = [1, 1]} : vector<4x128xf32> to vector<1x128xf32>
    %550 = vector.extract_strided_slice %546 {offsets = [3, 0], sizes = [1, 128], strides = [1, 1]} : vector<4x128xf32> to vector<1x128xf32>
    %551 = arith.subf %547, %549 : vector<1x128xf32>
    %552 = arith.mulf %551, %531 : vector<1x128xf32>
    %553 = math.absf %552 : vector<1x128xf32>
    %cst_191 = arith.constant dense<0.000000e+00> : vector<128xf32>
    %554 = vector.multi_reduction <add>, %553, %cst_191 [0] : vector<1x128xf32> to vector<128xf32>
    %555 = vector.shape_cast %554 : vector<128xf32> to vector<1x128xf32>
    %cst_192 = arith.constant 1.562500e-02 : f32
    %556 = vector.broadcast %cst_192 : f32 to vector<1x128xf32>
    %557 = arith.mulf %556, %555 : vector<1x128xf32>
    %558 = arith.addf %515, %557 : vector<1x128xf32>
    %559 = arith.subf %548, %550 : vector<1x128xf32>
    %560 = arith.mulf %559, %531 : vector<1x128xf32>
    %561 = math.absf %560 : vector<1x128xf32>
    %cst_193 = arith.constant dense<0.000000e+00> : vector<128xf32>
    %562 = vector.multi_reduction <add>, %561, %cst_193 [0] : vector<1x128xf32> to vector<128xf32>
    %563 = vector.shape_cast %562 : vector<128xf32> to vector<1x128xf32>
    %cst_194 = arith.constant 1.562500e-02 : f32
    %564 = vector.broadcast %cst_194 : f32 to vector<1x128xf32>
    %565 = arith.mulf %564, %563 : vector<1x128xf32>
    %566 = arith.addf %523, %565 : vector<1x128xf32>
    %c9 = arith.constant 9 : index
    %c0_195 = arith.constant 0 : index
    %c0_196 = arith.constant 0 : index
    %567 = vector.load %arg1[%c9, %c0_195, %c0_196] : memref<14x384x128xf32, #tpu.memory_space<vmem>>, vector<1x384x128xf32>
    %568 = vector.shape_cast %567 : vector<1x384x128xf32> to vector<384x128xf32>
    %c9_197 = arith.constant 9 : index
    %c0_198 = arith.constant 0 : index
    %c0_199 = arith.constant 0 : index
    %569 = vector.load %arg2[%c9_197, %c0_198, %c0_199] : memref<14x1x128xf32, #tpu.memory_space<vmem>>, vector<1x1x128xf32>
    %570 = vector.shape_cast %569 : vector<1x1x128xf32> to vector<1x128xf32>
    %c9_200 = arith.constant 9 : index
    %c0_201 = arith.constant 0 : index
    %c0_202 = arith.constant 0 : index
    %571 = vector.load %arg3[%c9_200, %c0_201, %c0_202] : memref<14x1x128xf32, #tpu.memory_space<vmem>>, vector<1x1x128xf32>
    %572 = vector.shape_cast %571 : vector<1x1x128xf32> to vector<1x128xf32>
    %c9_203 = arith.constant 9 : index
    %c0_204 = arith.constant 0 : index
    %c0_205 = arith.constant 0 : index
    %573 = vector.load %arg4[%c9_203, %c0_204, %c0_205] : memref<14x1x128xf32, #tpu.memory_space<vmem>>, vector<1x1x128xf32>
    %574 = vector.shape_cast %573 : vector<1x1x128xf32> to vector<1x128xf32>
    %575 = tpu.concatenate %7, %547, %7 in 1 : vector<1x128xf32>, vector<1x128xf32>, vector<1x128xf32> -> vector<1x384xf32>
    %576 = tpu.concatenate %7, %548, %7 in 1 : vector<1x128xf32>, vector<1x128xf32>, vector<1x128xf32> -> vector<1x384xf32>
    %577 = tpu.concatenate %7, %549, %7 in 1 : vector<1x128xf32>, vector<1x128xf32>, vector<1x128xf32> -> vector<1x384xf32>
    %578 = tpu.concatenate %7, %550, %7 in 1 : vector<1x128xf32>, vector<1x128xf32>, vector<1x128xf32> -> vector<1x384xf32>
    %579 = tpu.concatenate %575, %576, %577, %578 in 0 : vector<1x384xf32>, vector<1x384xf32>, vector<1x384xf32>, vector<1x384xf32> -> vector<4x384xf32>
    %cst_206 = arith.constant dense<0.000000e+00> : vector<4x128xf32>
    %580 = tpu.matmul %579, %568, %cst_206 {dimension_numbers = #tpu.dot_dimension_numbers<[1], [0], [0], [1], [0, 0, 1, 1], [], []>} : vector<4x384xf32>, vector<384x128xf32>, vector<4x128xf32> -> vector<4x128xf32>
    %581 = vector.broadcast %570 : vector<1x128xf32> to vector<4x128xf32>
    %582 = arith.mulf %580, %581 : vector<4x128xf32>
    %583 = vector.broadcast %572 : vector<1x128xf32> to vector<4x128xf32>
    %584 = arith.addf %582, %583 : vector<4x128xf32>
    %cst_207 = arith.constant 0.000000e+00 : f32
    %585 = vector.broadcast %cst_207 : f32 to vector<4x128xf32>
    %586 = arith.cmpf oge, %584, %585 : vector<4x128xf32>
    %cst_208 = arith.constant 0.00999999977 : f32
    %587 = vector.broadcast %cst_208 : f32 to vector<4x128xf32>
    %588 = arith.mulf %587, %584 : vector<4x128xf32>
    %589 = arith.select %586, %584, %588 : vector<4x128xi1>, vector<4x128xf32>
    %590 = vector.extract_strided_slice %589 {offsets = [0, 0], sizes = [1, 128], strides = [1, 1]} : vector<4x128xf32> to vector<1x128xf32>
    %591 = vector.extract_strided_slice %589 {offsets = [1, 0], sizes = [1, 128], strides = [1, 1]} : vector<4x128xf32> to vector<1x128xf32>
    %592 = vector.extract_strided_slice %589 {offsets = [2, 0], sizes = [1, 128], strides = [1, 1]} : vector<4x128xf32> to vector<1x128xf32>
    %593 = vector.extract_strided_slice %589 {offsets = [3, 0], sizes = [1, 128], strides = [1, 1]} : vector<4x128xf32> to vector<1x128xf32>
    %594 = arith.subf %590, %592 : vector<1x128xf32>
    %595 = arith.mulf %594, %574 : vector<1x128xf32>
    %596 = math.absf %595 : vector<1x128xf32>
    %cst_209 = arith.constant dense<0.000000e+00> : vector<128xf32>
    %597 = vector.multi_reduction <add>, %596, %cst_209 [0] : vector<1x128xf32> to vector<128xf32>
    %598 = vector.shape_cast %597 : vector<128xf32> to vector<1x128xf32>
    %cst_210 = arith.constant 7.812500e-03 : f32
    %599 = vector.broadcast %cst_210 : f32 to vector<1x128xf32>
    %600 = arith.mulf %599, %598 : vector<1x128xf32>
    %601 = arith.addf %558, %600 : vector<1x128xf32>
    %602 = arith.subf %591, %593 : vector<1x128xf32>
    %603 = arith.mulf %602, %574 : vector<1x128xf32>
    %604 = math.absf %603 : vector<1x128xf32>
    %cst_211 = arith.constant dense<0.000000e+00> : vector<128xf32>
    %605 = vector.multi_reduction <add>, %604, %cst_211 [0] : vector<1x128xf32> to vector<128xf32>
    %606 = vector.shape_cast %605 : vector<128xf32> to vector<1x128xf32>
    %cst_212 = arith.constant 7.812500e-03 : f32
    %607 = vector.broadcast %cst_212 : f32 to vector<1x128xf32>
    %608 = arith.mulf %607, %606 : vector<1x128xf32>
    %609 = arith.addf %566, %608 : vector<1x128xf32>
    %c10 = arith.constant 10 : index
    %c0_213 = arith.constant 0 : index
    %c0_214 = arith.constant 0 : index
    %610 = vector.load %arg1[%c10, %c0_213, %c0_214] : memref<14x384x128xf32, #tpu.memory_space<vmem>>, vector<1x384x128xf32>
    %611 = vector.shape_cast %610 : vector<1x384x128xf32> to vector<384x128xf32>
    %c10_215 = arith.constant 10 : index
    %c0_216 = arith.constant 0 : index
    %c0_217 = arith.constant 0 : index
    %612 = vector.load %arg2[%c10_215, %c0_216, %c0_217] : memref<14x1x128xf32, #tpu.memory_space<vmem>>, vector<1x1x128xf32>
    %613 = vector.shape_cast %612 : vector<1x1x128xf32> to vector<1x128xf32>
    %c10_218 = arith.constant 10 : index
    %c0_219 = arith.constant 0 : index
    %c0_220 = arith.constant 0 : index
    %614 = vector.load %arg3[%c10_218, %c0_219, %c0_220] : memref<14x1x128xf32, #tpu.memory_space<vmem>>, vector<1x1x128xf32>
    %615 = vector.shape_cast %614 : vector<1x1x128xf32> to vector<1x128xf32>
    %c10_221 = arith.constant 10 : index
    %c0_222 = arith.constant 0 : index
    %c0_223 = arith.constant 0 : index
    %616 = vector.load %arg4[%c10_221, %c0_222, %c0_223] : memref<14x1x128xf32, #tpu.memory_space<vmem>>, vector<1x1x128xf32>
    %617 = vector.shape_cast %616 : vector<1x1x128xf32> to vector<1x128xf32>
    %618 = tpu.concatenate %7, %590, %7 in 1 : vector<1x128xf32>, vector<1x128xf32>, vector<1x128xf32> -> vector<1x384xf32>
    %619 = tpu.concatenate %7, %591, %7 in 1 : vector<1x128xf32>, vector<1x128xf32>, vector<1x128xf32> -> vector<1x384xf32>
    %620 = tpu.concatenate %7, %592, %7 in 1 : vector<1x128xf32>, vector<1x128xf32>, vector<1x128xf32> -> vector<1x384xf32>
    %621 = tpu.concatenate %7, %593, %7 in 1 : vector<1x128xf32>, vector<1x128xf32>, vector<1x128xf32> -> vector<1x384xf32>
    %622 = tpu.concatenate %618, %619, %620, %621 in 0 : vector<1x384xf32>, vector<1x384xf32>, vector<1x384xf32>, vector<1x384xf32> -> vector<4x384xf32>
    %cst_224 = arith.constant dense<0.000000e+00> : vector<4x128xf32>
    %623 = tpu.matmul %622, %611, %cst_224 {dimension_numbers = #tpu.dot_dimension_numbers<[1], [0], [0], [1], [0, 0, 1, 1], [], []>} : vector<4x384xf32>, vector<384x128xf32>, vector<4x128xf32> -> vector<4x128xf32>
    %624 = vector.broadcast %613 : vector<1x128xf32> to vector<4x128xf32>
    %625 = arith.mulf %623, %624 : vector<4x128xf32>
    %626 = vector.broadcast %615 : vector<1x128xf32> to vector<4x128xf32>
    %627 = arith.addf %625, %626 : vector<4x128xf32>
    %cst_225 = arith.constant 0.000000e+00 : f32
    %628 = vector.broadcast %cst_225 : f32 to vector<4x128xf32>
    %629 = arith.cmpf oge, %627, %628 : vector<4x128xf32>
    %cst_226 = arith.constant 0.00999999977 : f32
    %630 = vector.broadcast %cst_226 : f32 to vector<4x128xf32>
    %631 = arith.mulf %630, %627 : vector<4x128xf32>
    %632 = arith.select %629, %627, %631 : vector<4x128xi1>, vector<4x128xf32>
    %633 = vector.extract_strided_slice %632 {offsets = [0, 0], sizes = [1, 128], strides = [1, 1]} : vector<4x128xf32> to vector<1x128xf32>
    %634 = vector.extract_strided_slice %632 {offsets = [1, 0], sizes = [1, 128], strides = [1, 1]} : vector<4x128xf32> to vector<1x128xf32>
    %635 = vector.extract_strided_slice %632 {offsets = [2, 0], sizes = [1, 128], strides = [1, 1]} : vector<4x128xf32> to vector<1x128xf32>
    %636 = vector.extract_strided_slice %632 {offsets = [3, 0], sizes = [1, 128], strides = [1, 1]} : vector<4x128xf32> to vector<1x128xf32>
    %637 = arith.subf %633, %635 : vector<1x128xf32>
    %638 = arith.mulf %637, %617 : vector<1x128xf32>
    %639 = math.absf %638 : vector<1x128xf32>
    %cst_227 = arith.constant dense<0.000000e+00> : vector<128xf32>
    %640 = vector.multi_reduction <add>, %639, %cst_227 [0] : vector<1x128xf32> to vector<128xf32>
    %641 = vector.shape_cast %640 : vector<128xf32> to vector<1x128xf32>
    %cst_228 = arith.constant 7.812500e-03 : f32
    %642 = vector.broadcast %cst_228 : f32 to vector<1x128xf32>
    %643 = arith.mulf %642, %641 : vector<1x128xf32>
    %644 = arith.addf %601, %643 : vector<1x128xf32>
    %645 = arith.subf %634, %636 : vector<1x128xf32>
    %646 = arith.mulf %645, %617 : vector<1x128xf32>
    %647 = math.absf %646 : vector<1x128xf32>
    %cst_229 = arith.constant dense<0.000000e+00> : vector<128xf32>
    %648 = vector.multi_reduction <add>, %647, %cst_229 [0] : vector<1x128xf32> to vector<128xf32>
    %649 = vector.shape_cast %648 : vector<128xf32> to vector<1x128xf32>
    %cst_230 = arith.constant 7.812500e-03 : f32
    %650 = vector.broadcast %cst_230 : f32 to vector<1x128xf32>
    %651 = arith.mulf %650, %649 : vector<1x128xf32>
    %652 = arith.addf %609, %651 : vector<1x128xf32>
    %c11 = arith.constant 11 : index
    %c0_231 = arith.constant 0 : index
    %c0_232 = arith.constant 0 : index
    %653 = vector.load %arg1[%c11, %c0_231, %c0_232] : memref<14x384x128xf32, #tpu.memory_space<vmem>>, vector<1x384x128xf32>
    %654 = vector.shape_cast %653 : vector<1x384x128xf32> to vector<384x128xf32>
    %c11_233 = arith.constant 11 : index
    %c0_234 = arith.constant 0 : index
    %c0_235 = arith.constant 0 : index
    %655 = vector.load %arg2[%c11_233, %c0_234, %c0_235] : memref<14x1x128xf32, #tpu.memory_space<vmem>>, vector<1x1x128xf32>
    %656 = vector.shape_cast %655 : vector<1x1x128xf32> to vector<1x128xf32>
    %c11_236 = arith.constant 11 : index
    %c0_237 = arith.constant 0 : index
    %c0_238 = arith.constant 0 : index
    %657 = vector.load %arg3[%c11_236, %c0_237, %c0_238] : memref<14x1x128xf32, #tpu.memory_space<vmem>>, vector<1x1x128xf32>
    %658 = vector.shape_cast %657 : vector<1x1x128xf32> to vector<1x128xf32>
    %c11_239 = arith.constant 11 : index
    %c0_240 = arith.constant 0 : index
    %c0_241 = arith.constant 0 : index
    %659 = vector.load %arg4[%c11_239, %c0_240, %c0_241] : memref<14x1x128xf32, #tpu.memory_space<vmem>>, vector<1x1x128xf32>
    %660 = vector.shape_cast %659 : vector<1x1x128xf32> to vector<1x128xf32>
    %661 = tpu.concatenate %7, %633, %7 in 1 : vector<1x128xf32>, vector<1x128xf32>, vector<1x128xf32> -> vector<1x384xf32>
    %662 = tpu.concatenate %7, %634, %7 in 1 : vector<1x128xf32>, vector<1x128xf32>, vector<1x128xf32> -> vector<1x384xf32>
    %663 = tpu.concatenate %7, %635, %7 in 1 : vector<1x128xf32>, vector<1x128xf32>, vector<1x128xf32> -> vector<1x384xf32>
    %664 = tpu.concatenate %7, %636, %7 in 1 : vector<1x128xf32>, vector<1x128xf32>, vector<1x128xf32> -> vector<1x384xf32>
    %665 = tpu.concatenate %661, %662, %663, %664 in 0 : vector<1x384xf32>, vector<1x384xf32>, vector<1x384xf32>, vector<1x384xf32> -> vector<4x384xf32>
    %cst_242 = arith.constant dense<0.000000e+00> : vector<4x128xf32>
    %666 = tpu.matmul %665, %654, %cst_242 {dimension_numbers = #tpu.dot_dimension_numbers<[1], [0], [0], [1], [0, 0, 1, 1], [], []>} : vector<4x384xf32>, vector<384x128xf32>, vector<4x128xf32> -> vector<4x128xf32>
    %667 = vector.broadcast %656 : vector<1x128xf32> to vector<4x128xf32>
    %668 = arith.mulf %666, %667 : vector<4x128xf32>
    %669 = vector.broadcast %658 : vector<1x128xf32> to vector<4x128xf32>
    %670 = arith.addf %668, %669 : vector<4x128xf32>
    %cst_243 = arith.constant 0.000000e+00 : f32
    %671 = vector.broadcast %cst_243 : f32 to vector<4x128xf32>
    %672 = arith.cmpf oge, %670, %671 : vector<4x128xf32>
    %cst_244 = arith.constant 0.00999999977 : f32
    %673 = vector.broadcast %cst_244 : f32 to vector<4x128xf32>
    %674 = arith.mulf %673, %670 : vector<4x128xf32>
    %675 = arith.select %672, %670, %674 : vector<4x128xi1>, vector<4x128xf32>
    %676 = vector.extract_strided_slice %675 {offsets = [0, 0], sizes = [1, 128], strides = [1, 1]} : vector<4x128xf32> to vector<1x128xf32>
    %677 = vector.extract_strided_slice %675 {offsets = [1, 0], sizes = [1, 128], strides = [1, 1]} : vector<4x128xf32> to vector<1x128xf32>
    %678 = vector.extract_strided_slice %675 {offsets = [2, 0], sizes = [1, 128], strides = [1, 1]} : vector<4x128xf32> to vector<1x128xf32>
    %679 = vector.extract_strided_slice %675 {offsets = [3, 0], sizes = [1, 128], strides = [1, 1]} : vector<4x128xf32> to vector<1x128xf32>
    %680 = arith.subf %676, %678 : vector<1x128xf32>
    %681 = arith.mulf %680, %660 : vector<1x128xf32>
    %682 = math.absf %681 : vector<1x128xf32>
    %cst_245 = arith.constant dense<0.000000e+00> : vector<128xf32>
    %683 = vector.multi_reduction <add>, %682, %cst_245 [0] : vector<1x128xf32> to vector<128xf32>
    %684 = vector.shape_cast %683 : vector<128xf32> to vector<1x128xf32>
    %cst_246 = arith.constant 7.812500e-03 : f32
    %685 = vector.broadcast %cst_246 : f32 to vector<1x128xf32>
    %686 = arith.mulf %685, %684 : vector<1x128xf32>
    %687 = arith.addf %644, %686 : vector<1x128xf32>
    %688 = arith.subf %677, %679 : vector<1x128xf32>
    %689 = arith.mulf %688, %660 : vector<1x128xf32>
    %690 = math.absf %689 : vector<1x128xf32>
    %cst_247 = arith.constant dense<0.000000e+00> : vector<128xf32>
    %691 = vector.multi_reduction <add>, %690, %cst_247 [0] : vector<1x128xf32> to vector<128xf32>
    %692 = vector.shape_cast %691 : vector<128xf32> to vector<1x128xf32>
    %cst_248 = arith.constant 7.812500e-03 : f32
    %693 = vector.broadcast %cst_248 : f32 to vector<1x128xf32>
    %694 = arith.mulf %693, %692 : vector<1x128xf32>
    %695 = arith.addf %652, %694 : vector<1x128xf32>
    %c12 = arith.constant 12 : index
    %c0_249 = arith.constant 0 : index
    %c0_250 = arith.constant 0 : index
    %696 = vector.load %arg1[%c12, %c0_249, %c0_250] : memref<14x384x128xf32, #tpu.memory_space<vmem>>, vector<1x384x128xf32>
    %697 = vector.shape_cast %696 : vector<1x384x128xf32> to vector<384x128xf32>
    %c12_251 = arith.constant 12 : index
    %c0_252 = arith.constant 0 : index
    %c0_253 = arith.constant 0 : index
    %698 = vector.load %arg2[%c12_251, %c0_252, %c0_253] : memref<14x1x128xf32, #tpu.memory_space<vmem>>, vector<1x1x128xf32>
    %699 = vector.shape_cast %698 : vector<1x1x128xf32> to vector<1x128xf32>
    %c12_254 = arith.constant 12 : index
    %c0_255 = arith.constant 0 : index
    %c0_256 = arith.constant 0 : index
    %700 = vector.load %arg3[%c12_254, %c0_255, %c0_256] : memref<14x1x128xf32, #tpu.memory_space<vmem>>, vector<1x1x128xf32>
    %701 = vector.shape_cast %700 : vector<1x1x128xf32> to vector<1x128xf32>
    %c12_257 = arith.constant 12 : index
    %c0_258 = arith.constant 0 : index
    %c0_259 = arith.constant 0 : index
    %702 = vector.load %arg4[%c12_257, %c0_258, %c0_259] : memref<14x1x128xf32, #tpu.memory_space<vmem>>, vector<1x1x128xf32>
    %703 = vector.shape_cast %702 : vector<1x1x128xf32> to vector<1x128xf32>
    %704 = tpu.concatenate %7, %676, %7 in 1 : vector<1x128xf32>, vector<1x128xf32>, vector<1x128xf32> -> vector<1x384xf32>
    %705 = tpu.concatenate %7, %677, %7 in 1 : vector<1x128xf32>, vector<1x128xf32>, vector<1x128xf32> -> vector<1x384xf32>
    %706 = tpu.concatenate %7, %678, %7 in 1 : vector<1x128xf32>, vector<1x128xf32>, vector<1x128xf32> -> vector<1x384xf32>
    %707 = tpu.concatenate %7, %679, %7 in 1 : vector<1x128xf32>, vector<1x128xf32>, vector<1x128xf32> -> vector<1x384xf32>
    %708 = tpu.concatenate %704, %705, %706, %707 in 0 : vector<1x384xf32>, vector<1x384xf32>, vector<1x384xf32>, vector<1x384xf32> -> vector<4x384xf32>
    %cst_260 = arith.constant dense<0.000000e+00> : vector<4x128xf32>
    %709 = tpu.matmul %708, %697, %cst_260 {dimension_numbers = #tpu.dot_dimension_numbers<[1], [0], [0], [1], [0, 0, 1, 1], [], []>} : vector<4x384xf32>, vector<384x128xf32>, vector<4x128xf32> -> vector<4x128xf32>
    %710 = vector.broadcast %699 : vector<1x128xf32> to vector<4x128xf32>
    %711 = arith.mulf %709, %710 : vector<4x128xf32>
    %712 = vector.broadcast %701 : vector<1x128xf32> to vector<4x128xf32>
    %713 = arith.addf %711, %712 : vector<4x128xf32>
    %cst_261 = arith.constant 0.000000e+00 : f32
    %714 = vector.broadcast %cst_261 : f32 to vector<4x128xf32>
    %715 = arith.cmpf oge, %713, %714 : vector<4x128xf32>
    %cst_262 = arith.constant 0.00999999977 : f32
    %716 = vector.broadcast %cst_262 : f32 to vector<4x128xf32>
    %717 = arith.mulf %716, %713 : vector<4x128xf32>
    %718 = arith.select %715, %713, %717 : vector<4x128xi1>, vector<4x128xf32>
    %719 = vector.extract_strided_slice %718 {offsets = [0, 0], sizes = [1, 128], strides = [1, 1]} : vector<4x128xf32> to vector<1x128xf32>
    %720 = vector.extract_strided_slice %718 {offsets = [1, 0], sizes = [1, 128], strides = [1, 1]} : vector<4x128xf32> to vector<1x128xf32>
    %721 = vector.extract_strided_slice %718 {offsets = [2, 0], sizes = [1, 128], strides = [1, 1]} : vector<4x128xf32> to vector<1x128xf32>
    %722 = vector.extract_strided_slice %718 {offsets = [3, 0], sizes = [1, 128], strides = [1, 1]} : vector<4x128xf32> to vector<1x128xf32>
    %723 = arith.subf %719, %721 : vector<1x128xf32>
    %724 = arith.mulf %723, %703 : vector<1x128xf32>
    %725 = math.absf %724 : vector<1x128xf32>
    %cst_263 = arith.constant dense<0.000000e+00> : vector<128xf32>
    %726 = vector.multi_reduction <add>, %725, %cst_263 [0] : vector<1x128xf32> to vector<128xf32>
    %727 = vector.shape_cast %726 : vector<128xf32> to vector<1x128xf32>
    %cst_264 = arith.constant 7.812500e-03 : f32
    %728 = vector.broadcast %cst_264 : f32 to vector<1x128xf32>
    %729 = arith.mulf %728, %727 : vector<1x128xf32>
    %730 = arith.addf %687, %729 : vector<1x128xf32>
    %731 = arith.subf %720, %722 : vector<1x128xf32>
    %732 = arith.mulf %731, %703 : vector<1x128xf32>
    %733 = math.absf %732 : vector<1x128xf32>
    %cst_265 = arith.constant dense<0.000000e+00> : vector<128xf32>
    %734 = vector.multi_reduction <add>, %733, %cst_265 [0] : vector<1x128xf32> to vector<128xf32>
    %735 = vector.shape_cast %734 : vector<128xf32> to vector<1x128xf32>
    %cst_266 = arith.constant 7.812500e-03 : f32
    %736 = vector.broadcast %cst_266 : f32 to vector<1x128xf32>
    %737 = arith.mulf %736, %735 : vector<1x128xf32>
    %738 = arith.addf %695, %737 : vector<1x128xf32>
    %c13 = arith.constant 13 : index
    %c0_267 = arith.constant 0 : index
    %c0_268 = arith.constant 0 : index
    %739 = vector.load %arg1[%c13, %c0_267, %c0_268] : memref<14x384x128xf32, #tpu.memory_space<vmem>>, vector<1x384x128xf32>
    %740 = vector.shape_cast %739 : vector<1x384x128xf32> to vector<384x128xf32>
    %c13_269 = arith.constant 13 : index
    %c0_270 = arith.constant 0 : index
    %c0_271 = arith.constant 0 : index
    %741 = vector.load %arg2[%c13_269, %c0_270, %c0_271] : memref<14x1x128xf32, #tpu.memory_space<vmem>>, vector<1x1x128xf32>
    %742 = vector.shape_cast %741 : vector<1x1x128xf32> to vector<1x128xf32>
    %c13_272 = arith.constant 13 : index
    %c0_273 = arith.constant 0 : index
    %c0_274 = arith.constant 0 : index
    %743 = vector.load %arg3[%c13_272, %c0_273, %c0_274] : memref<14x1x128xf32, #tpu.memory_space<vmem>>, vector<1x1x128xf32>
    %744 = vector.shape_cast %743 : vector<1x1x128xf32> to vector<1x128xf32>
    %c13_275 = arith.constant 13 : index
    %c0_276 = arith.constant 0 : index
    %c0_277 = arith.constant 0 : index
    %745 = vector.load %arg4[%c13_275, %c0_276, %c0_277] : memref<14x1x128xf32, #tpu.memory_space<vmem>>, vector<1x1x128xf32>
    %746 = vector.shape_cast %745 : vector<1x1x128xf32> to vector<1x128xf32>
    %747 = tpu.concatenate %7, %719, %7 in 1 : vector<1x128xf32>, vector<1x128xf32>, vector<1x128xf32> -> vector<1x384xf32>
    %748 = tpu.concatenate %7, %720, %7 in 1 : vector<1x128xf32>, vector<1x128xf32>, vector<1x128xf32> -> vector<1x384xf32>
    %749 = tpu.concatenate %7, %721, %7 in 1 : vector<1x128xf32>, vector<1x128xf32>, vector<1x128xf32> -> vector<1x384xf32>
    %750 = tpu.concatenate %7, %722, %7 in 1 : vector<1x128xf32>, vector<1x128xf32>, vector<1x128xf32> -> vector<1x384xf32>
    %751 = tpu.concatenate %747, %748, %749, %750 in 0 : vector<1x384xf32>, vector<1x384xf32>, vector<1x384xf32>, vector<1x384xf32> -> vector<4x384xf32>
    %cst_278 = arith.constant dense<0.000000e+00> : vector<4x128xf32>
    %752 = tpu.matmul %751, %740, %cst_278 {dimension_numbers = #tpu.dot_dimension_numbers<[1], [0], [0], [1], [0, 0, 1, 1], [], []>} : vector<4x384xf32>, vector<384x128xf32>, vector<4x128xf32> -> vector<4x128xf32>
    %753 = vector.broadcast %742 : vector<1x128xf32> to vector<4x128xf32>
    %754 = arith.mulf %752, %753 : vector<4x128xf32>
    %755 = vector.broadcast %744 : vector<1x128xf32> to vector<4x128xf32>
    %756 = arith.addf %754, %755 : vector<4x128xf32>
    %cst_279 = arith.constant 0.000000e+00 : f32
    %757 = vector.broadcast %cst_279 : f32 to vector<4x128xf32>
    %758 = arith.cmpf oge, %756, %757 : vector<4x128xf32>
    %cst_280 = arith.constant 0.00999999977 : f32
    %759 = vector.broadcast %cst_280 : f32 to vector<4x128xf32>
    %760 = arith.mulf %759, %756 : vector<4x128xf32>
    %761 = arith.select %758, %756, %760 : vector<4x128xi1>, vector<4x128xf32>
    %762 = vector.extract_strided_slice %761 {offsets = [0, 0], sizes = [1, 128], strides = [1, 1]} : vector<4x128xf32> to vector<1x128xf32>
    %763 = vector.extract_strided_slice %761 {offsets = [1, 0], sizes = [1, 128], strides = [1, 1]} : vector<4x128xf32> to vector<1x128xf32>
    %764 = vector.extract_strided_slice %761 {offsets = [2, 0], sizes = [1, 128], strides = [1, 1]} : vector<4x128xf32> to vector<1x128xf32>
    %765 = vector.extract_strided_slice %761 {offsets = [3, 0], sizes = [1, 128], strides = [1, 1]} : vector<4x128xf32> to vector<1x128xf32>
    %766 = arith.subf %762, %764 : vector<1x128xf32>
    %767 = arith.mulf %766, %746 : vector<1x128xf32>
    %768 = math.absf %767 : vector<1x128xf32>
    %cst_281 = arith.constant dense<0.000000e+00> : vector<128xf32>
    %769 = vector.multi_reduction <add>, %768, %cst_281 [0] : vector<1x128xf32> to vector<128xf32>
    %770 = vector.shape_cast %769 : vector<128xf32> to vector<1x128xf32>
    %cst_282 = arith.constant 7.812500e-03 : f32
    %771 = vector.broadcast %cst_282 : f32 to vector<1x128xf32>
    %772 = arith.mulf %771, %770 : vector<1x128xf32>
    %773 = arith.addf %730, %772 : vector<1x128xf32>
    %774 = arith.subf %763, %765 : vector<1x128xf32>
    %775 = arith.mulf %774, %746 : vector<1x128xf32>
    %776 = math.absf %775 : vector<1x128xf32>
    %cst_283 = arith.constant dense<0.000000e+00> : vector<128xf32>
    %777 = vector.multi_reduction <add>, %776, %cst_283 [0] : vector<1x128xf32> to vector<128xf32>
    %778 = vector.shape_cast %777 : vector<128xf32> to vector<1x128xf32>
    %cst_284 = arith.constant 7.812500e-03 : f32
    %779 = vector.broadcast %cst_284 : f32 to vector<1x128xf32>
    %780 = arith.mulf %779, %778 : vector<1x128xf32>
    %781 = arith.addf %738, %780 : vector<1x128xf32>
    %782 = tpu.concatenate %773, %781 in 0 : vector<1x128xf32>, vector<1x128xf32> -> vector<2x128xf32>
    %c0_285 = arith.constant 0 : index
    %c0_286 = arith.constant 0 : index
    %783 = vector.load %arg5[%c0_285, %c0_286] : memref<2x128xf32, #tpu.memory_space<vmem>>, vector<2x128xf32>
    tpu.vector_store %arg5[%c0_285, %c0_286], %782 {strides = array<i32>} : memref<2x128xf32, #tpu.memory_space<vmem>>, vector<2x128xf32>,
    return
  }
}

</mosaic_0001>

<llo_original>
// kernel: _lambda_.1
$region0: #{_lambda_.1}
  #allocation0 [shape = 'u32[]', space=smem, size = 0x4, offset = 0x4, fixed_abs, tag = 'smem constant byte address 0x4 - core index']
  #allocation1 [shape = 'u32[72,128]{1,0:T(1,128)}', space=vmem, size = 0x9000, scoped, tag = 'internal scratch']
  %s0 = inlined_call_operand.vmem [shape: f32[256,128], index: 0, kind: input, shape index: {}]
  %s1 = inlined_call_operand.hbm [shape: f32[14,384,128], index: 1, kind: input, shape index: {}]
  %s2 = inlined_call_operand.vmem [shape: f32[14,1,128], index: 2, kind: input, shape index: {}]
  %s3 = inlined_call_operand.vmem [shape: f32[14,1,128], index: 3, kind: input, shape index: {}]
  %s4 = inlined_call_operand.vmem [shape: f32[14,1,128], index: 4, kind: input, shape index: {}]
  %s5 = inlined_call_operand.vmem [shape: f32[2,128], index: 5, kind: output, shape index: {}]
  %s6 = sld [smem:[#allocation0]]
  $region34: #{_lambda_.1} parent=0
    _
  %s8 = ssub.s32 1, %s6
  %s9 = scalar_select 0, %s8, %s6
  $region1: #{_lambda_.1} parent=0
    #allocation2 [shape = 'u8[2752512]{0}', space=vmem, size = 0x2a0000, scoped, tag = 'input window, operand 1, single buffered']
    #allocation3 [shape = 's32[1]{0}', space=sflag, size = 0x4, scoped, tag = 'scoped memory for _lambda_.1']
    %10 = vsyncpa [#allocation3], 0
    // Predicated region
    $region2: #{_lambda_.1} parent=1 // pred_check
      _
    $region3: #{_lambda_.1} parent=1 // pred_check_branch
      %12 = sbr.rel (0) target = $region5
    $region4: #{_lambda_.1} parent=1 // pred_region
      _
    $region5: #{_lambda_.1} parent=1 // pred_fallthru
      _
    // Predicated region
    $region6: #{_lambda_.1} parent=1 // pred_check
      _
    $region7: #{_lambda_.1} parent=1 // pred_check_branch
      %14 = sbr.rel (0) target = $region9
    $region8: #{_lambda_.1} parent=1 // pred_region
      %16 = vsyncadd [#allocation3], 0
      %s17 = sshll.u32 %s1, 4
      %s18 = int_to_ptr.hbm [resolvable:$true] %s17
      %s19 = sshll.u32 [#allocation2], 4
      %s20 = int_to_ptr.vmem [resolvable:$true] %s19
      %25 = dma.hbm_to_vmem [thread:$0]  %s18, 86016, %s20, [#allocation3], 128, 128, 8
    $region9: #{_lambda_.1} parent=1 // pred_fallthru
      _
    // Predicated region
    $region10: #{_lambda_.1} parent=1 // pred_check
      _
    $region11: #{_lambda_.1} parent=1 // pred_check_branch
      %27 = sbr.rel (0) target = $region13
    $region12: #{_lambda_.1} parent=1 // pred_region
      _
    $region13: #{_lambda_.1} parent=1 // pred_fallthru
      _
    // Predicated region
    $region14: #{_lambda_.1} parent=1 // pred_check
      _
    $region15: #{_lambda_.1} parent=1 // pred_check_branch
      %29 = sbr.rel (0) target = $region17
    $region16: #{_lambda_.1} parent=1 // pred_region
      _
    $region17: #{_lambda_.1} parent=1 // pred_fallthru
      _
    // Predicated region
    $region18: #{_lambda_.1} parent=1 // pred_check
      _
    $region19: #{_lambda_.1} parent=1 // pred_check_branch
      %31 = sbr.rel (0) target = $region21
    $region20: #{_lambda_.1} parent=1 // pred_region
      _
    $region21: #{_lambda_.1} parent=1 // pred_fallthru
      _
    // Predicated region
    $region22: #{_lambda_.1} parent=1 // pred_check
      _
    $region23: #{_lambda_.1} parent=1 // pred_check_branch
      %33 = sbr.rel (0) target = $region25
    $region24: #{_lambda_.1} parent=1 // pred_region
      %35 = dma.done [#allocation3], 86016
    $region25: #{_lambda_.1} parent=1 // pred_fallthru
      _
    %v36 = vld [vmem:[%s0] sm:$0xff]
    %v37 = vld [vmem:[%s0 + $0x8] sm:$0xff]
    %v38 = vld [vmem:[%s0 + $0x10] sm:$0xff]
    %v39 = vld [vmem:[%s0 + $0x18] sm:$0xff]
    %v40 = vld [vmem:[%s0 + $0x20] sm:$0xff]
    %v41 = vld [vmem:[%s0 + $0x28] sm:$0xff]
    %v42 = vld [vmem:[%s0 + $0x30] sm:$0xff]
    %v43 = vld [vmem:[%s0 + $0x38] sm:$0xff]
    %v44 = vld [vmem:[%s0 + $0x40] sm:$0xff]
    %v45 = vld [vmem:[%s0 + $0x48] sm:$0xff]
    %v46 = vld [vmem:[%s0 + $0x50] sm:$0xff]
    %v47 = vld [vmem:[%s0 + $0x58] sm:$0xff]
    %v48 = vld [vmem:[%s0 + $0x60] sm:$0xff]
    %v49 = vld [vmem:[%s0 + $0x68] sm:$0xff]
    %v50 = vld [vmem:[%s0 + $0x70] sm:$0xff]
    %v51 = vld [vmem:[%s0 + $0x78] sm:$0xff]
    %v52 = vld [vmem:[%s0 + $0x80] sm:$0xff]
    %v53 = vld [vmem:[%s0 + $0x88] sm:$0xff]
    %v54 = vld [vmem:[%s0 + $0x90] sm:$0xff]
    %v55 = vld [vmem:[%s0 + $0x98] sm:$0xff]
    %v56 = vld [vmem:[%s0 + $0xa0] sm:$0xff]
    %v57 = vld [vmem:[%s0 + $0xa8] sm:$0xff]
    %v58 = vld [vmem:[%s0 + $0xb0] sm:$0xff]
    %v59 = vld [vmem:[%s0 + $0xb8] sm:$0xff]
    %v60 = vld [vmem:[%s0 + $0xc0] sm:$0xff]
    %v61 = vld [vmem:[%s0 + $0xc8] sm:$0xff]
    %v62 = vld [vmem:[%s0 + $0xd0] sm:$0xff]
    %v63 = vld [vmem:[%s0 + $0xd8] sm:$0xff]
    %v64 = vld [vmem:[%s0 + $0xe0] sm:$0xff]
    %v65 = vld [vmem:[%s0 + $0xe8] sm:$0xff]
    %v66 = vld [vmem:[%s0 + $0xf0] sm:$0xff]
    %v67 = vld [vmem:[%s0 + $0xf8] sm:$0xff]
    %v68 = vld [vmem:[#allocation2] sm:$0xff]
    %v69 = vld [vmem:[#allocation2 + $0x8] sm:$0xff]
    %v70 = vld [vmem:[#allocation2 + $0x10] sm:$0xff]
    %v71 = vld [vmem:[#allocation2 + $0x18] sm:$0xff]
    %v72 = vld [vmem:[#allocation2 + $0x20] sm:$0xff]
    %v73 = vld [vmem:[#allocation2 + $0x28] sm:$0xff]
    %v74 = vld [vmem:[#allocation2 + $0x30] sm:$0xff]
    %v75 = vld [vmem:[#allocation2 + $0x38] sm:$0xff]
    %v76 = vld [vmem:[#allocation2 + $0x40] sm:$0xff]
    %v77 = vld [vmem:[#allocation2 + $0x48] sm:$0xff]
    %v78 = vld [vmem:[#allocation2 + $0x50] sm:$0xff]
    %v79 = vld [vmem:[#allocation2 + $0x58] sm:$0xff]
    %v80 = vld [vmem:[#allocation2 + $0x60] sm:$0xff]
    %v81 = vld [vmem:[#allocation2 + $0x68] sm:$0xff]
    %v82 = vld [vmem:[#allocation2 + $0x70] sm:$0xff]
    %v83 = vld [vmem:[#allocation2 + $0x78] sm:$0xff]
    %v84 = vld [vmem:[#allocation2 + $0x80] sm:$0xff]
    %v85 = vld [vmem:[#allocation2 + $0x88] sm:$0xff]
    %v86 = vld [vmem:[#allocation2 + $0x90] sm:$0xff]
    %v87 = vld [vmem:[#allocation2 + $0x98] sm:$0xff]
    %v88 = vld [vmem:[#allocation2 + $0xa0] sm:$0xff]
    %v89 = vld [vmem:[#allocation2 + $0xa8] sm:$0xff]
    %v90 = vld [vmem:[#allocation2 + $0xb0] sm:$0xff]
    %v91 = vld [vmem:[#allocation2 + $0xb8] sm:$0xff]
    %v92 = vld [vmem:[#allocation2 + $0xc0] sm:$0xff]
    %v93 = vld [vmem:[#allocation2 + $0xc8] sm:$0xff]
    %v94 = vld [vmem:[#allocation2 + $0xd0] sm:$0xff]
    %v95 = vld [vmem:[#allocation2 + $0xd8] sm:$0xff]
    %v96 = vld [vmem:[#allocation2 + $0xe0] sm:$0xff]
    %v97 = vld [vmem:[#allocation2 + $0xe8] sm:$0xff]
    %v98 = vld [vmem:[#allocation2 + $0xf0] sm:$0xff]
    %v99 = vld [vmem:[#allocation2 + $0xf8] sm:$0xff]
    %v100 = vld [vmem:[#allocation2 + $0x100] sm:$0xff]
    %v101 = vld [vmem:[#allocation2 + $0x108] sm:$0xff]
    %v102 = vld [vmem:[#allocation2 + $0x110] sm:$0xff]
    %v103 = vld [vmem:[#allocation2 + $0x118] sm:$0xff]
    %v104 = vld [vmem:[#allocation2 + $0x120] sm:$0xff]
    %v105 = vld [vmem:[#allocation2 + $0x128] sm:$0xff]
    %v106 = vld [vmem:[#allocation2 + $0x130] sm:$0xff]
    %v107 = vld [vmem:[#allocation2 + $0x138] sm:$0xff]
    %v108 = vld [vmem:[#allocation2 + $0x140] sm:$0xff]
    %v109 = vld [vmem:[#allocation2 + $0x148] sm:$0xff]
    %v110 = vld [vmem:[#allocation2 + $0x150] sm:$0xff]
    %v111 = vld [vmem:[#allocation2 + $0x158] sm:$0xff]
    %v112 = vld [vmem:[#allocation2 + $0x160] sm:$0xff]
    %v113 = vld [vmem:[#allocation2 + $0x168] sm:$0xff]
    %v114 = vld [vmem:[#allocation2 + $0x170] sm:$0xff]
    %v115 = vld [vmem:[#allocation2 + $0x178] sm:$0xff]
    %v116 = vld [vmem:[%s2] sm:$0x1]
    %v117 = vld [vmem:[%s3] sm:$0x1]
    %v118 = vld [vmem:[%s4] sm:$0x1]
    %vm127 = vcmask 1040384
    %v128 = vrot.slane %v36, 7
    %v129 = vrot.slane %v37, 7
    %v130 = vsel %vm127, %v128, %v129
    %v131 = vrot.slane %v38, 7
    %v132 = vsel %vm127, %v129, %v131
    %v133 = vrot.slane %v39, 7
    %v134 = vsel %vm127, %v131, %v133
    %v135 = vrot.slane %v40, 7
    %v136 = vsel %vm127, %v133, %v135
    %v137 = vrot.slane %v41, 7
    %v138 = vsel %vm127, %v135, %v137
    %v139 = vrot.slane %v42, 7
    %v140 = vsel %vm127, %v137, %v139
    %v141 = vrot.slane %v43, 7
    %v142 = vsel %vm127, %v139, %v141
    %v151 = vsel %vm127, 0.0, %v128
    %vm152 = vcmask 1046528
    %v153 = vrot.slane %v36, 1
    %v154 = vrot.slane %v37, 1
    %v155 = vsel %vm152, %v153, %v154
    %v156 = vrot.slane %v38, 1
    %v157 = vsel %vm152, %v154, %v156
    %v158 = vrot.slane %v39, 1
    %v159 = vsel %vm152, %v156, %v158
    %v160 = vrot.slane %v40, 1
    %v161 = vsel %vm152, %v158, %v160
    %v162 = vrot.slane %v41, 1
    %v163 = vsel %vm152, %v160, %v162
    %v164 = vrot.slane %v42, 1
    %v165 = vsel %vm152, %v162, %v164
    %v166 = vrot.slane %v43, 1
    %v167 = vsel %vm152, %v164, %v166
    %v176 = vsel %vm152, %v166, 0.0
    %v185 = vrot.slane %v44, 7
    %v186 = vrot.slane %v45, 7
    %v187 = vsel %vm127, %v185, %v186
    %v188 = vrot.slane %v46, 7
    %v189 = vsel %vm127, %v186, %v188
    %v190 = vrot.slane %v47, 7
    %v191 = vsel %vm127, %v188, %v190
    %v192 = vrot.slane %v48, 7
    %v193 = vsel %vm127, %v190, %v192
    %v194 = vrot.slane %v49, 7
    %v195 = vsel %vm127, %v192, %v194
    %v196 = vrot.slane %v50, 7
    %v197 = vsel %vm127, %v194, %v196
    %v198 = vrot.slane %v51, 7
    %v199 = vsel %vm127, %v196, %v198
    %v208 = vsel %vm127, 0.0, %v185
    %v209 = vrot.slane %v44, 1
    %v210 = vrot.slane %v45, 1
    %v211 = vsel %vm152, %v209, %v210
    %v212 = vrot.slane %v46, 1
    %v213 = vsel %vm152, %v210, %v212
    %v214 = vrot.slane %v47, 1
    %v215 = vsel %vm152, %v212, %v214
    %v216 = vrot.slane %v48, 1
    %v217 = vsel %vm152, %v214, %v216
    %v218 = vrot.slane %v49, 1
    %v219 = vsel %vm152, %v216, %v218
    %v220 = vrot.slane %v50, 1
    %v221 = vsel %vm152, %v218, %v220
    %v222 = vrot.slane %v51, 1
    %v223 = vsel %vm152, %v220, %v222
    %v232 = vsel %vm152, %v222, 0.0
    %v241 = vrot.slane %v52, 7
    %v242 = vrot.slane %v53, 7
    %v243 = vsel %vm127, %v241, %v242
    %v244 = vrot.slane %v54, 7
    %v245 = vsel %vm127, %v242, %v244
    %v246 = vrot.slane %v55, 7
    %v247 = vsel %vm127, %v244, %v246
    %v248 = vrot.slane %v56, 7
    %v249 = vsel %vm127, %v246, %v248
    %v250 = vrot.slane %v57, 7
    %v251 = vsel %vm127, %v248, %v250
    %v252 = vrot.slane %v58, 7
    %v253 = vsel %vm127, %v250, %v252
    %v254 = vrot.slane %v59, 7
    %v255 = vsel %vm127, %v252, %v254
    %v264 = vsel %vm127, 0.0, %v241
    %v265 = vrot.slane %v52, 1
    %v266 = vrot.slane %v53, 1
    %v267 = vsel %vm152, %v265, %v266
    %v268 = vrot.slane %v54, 1
    %v269 = vsel %vm152, %v266, %v268
    %v270 = vrot.slane %v55, 1
    %v271 = vsel %vm152, %v268, %v270
    %v272 = vrot.slane %v56, 1
    %v273 = vsel %vm152, %v270, %v272
    %v274 = vrot.slane %v57, 1
    %v275 = vsel %vm152, %v272, %v274
    %v276 = vrot.slane %v58, 1
    %v277 = vsel %vm152, %v274, %v276
    %v278 = vrot.slane %v59, 1
    %v279 = vsel %vm152, %v276, %v278
    %v288 = vsel %vm152, %v278, 0.0
    %v297 = vrot.slane %v60, 7
    %v298 = vrot.slane %v61, 7
    %v299 = vsel %vm127, %v297, %v298
    %v300 = vrot.slane %v62, 7
    %v301 = vsel %vm127, %v298, %v300
    %v302 = vrot.slane %v63, 7
    %v303 = vsel %vm127, %v300, %v302
    %v304 = vrot.slane %v64, 7
    %v305 = vsel %vm127, %v302, %v304
    %v306 = vrot.slane %v65, 7
    %v307 = vsel %vm127, %v304, %v306
    %v308 = vrot.slane %v66, 7
    %v309 = vsel %vm127, %v306, %v308
    %v310 = vrot.slane %v67, 7
    %v311 = vsel %vm127, %v308, %v310
    %v320 = vsel %vm127, 0.0, %v297
    %v321 = vrot.slane %v60, 1
    %v322 = vrot.slane %v61, 1
    %v323 = vsel %vm152, %v321, %v322
    %v324 = vrot.slane %v62, 1
    %v325 = vsel %vm152, %v322, %v324
    %v326 = vrot.slane %v63, 1
    %v327 = vsel %vm152, %v324, %v326
    %v328 = vrot.slane %v64, 1
    %v329 = vsel %vm152, %v326, %v328
    %v330 = vrot.slane %v65, 1
    %v331 = vsel %vm152, %v328, %v330
    %v332 = vrot.slane %v66, 1
    %v333 = vsel %vm152, %v330, %v332
    %v334 = vrot.slane %v67, 1
    %v335 = vsel %vm152, %v332, %v334
    %v344 = vsel %vm152, %v334, 0.0
    %345 = vmatpush.msra.mxu0 %v83
    %346 = vmatpush.msra.mxu0 %v82
    %347 = vmatpush.msra.mxu0 %v81
    %348 = vmatpush.msra.mxu0 %v80
    %349 = vmatpush.msra.mxu0 %v79
    %350 = vmatpush.msra.mxu0 %v78
    %351 = vmatpush.msra.mxu0 %v77
    %352 = vmatpush.msra.mxu0 %v76
    %353 = vmatpush.msra.mxu0 %v75
    %354 = vmatpush.msra.mxu0 %v74
    %355 = vmatpush.msra.mxu0 %v73
    %356 = vmatpush.msra.mxu0 %v72
    %357 = vmatpush.msra.mxu0 %v71
    %358 = vmatpush.msra.mxu0 %v70
    %359 = vmatpush.msra.mxu0 %v69
    %360 = vmatpush.msra.mxu0 %v68
    %361 = vmatmul.f32.gmra.mxu0 %v151
    %v362 = vpop.f32.mrf.mxu0
    %v363 = vadd.f32 0.0, %v362
    %364 = vmatmul.f32.gmra.mxu0 %v130
    %v365 = vpop.f32.mrf.mxu0
    %v366 = vadd.f32 0.0, %v365
    %367 = vmatmul.f32.gmra.mxu0 %v132
    %v368 = vpop.f32.mrf.mxu0
    %v369 = vadd.f32 0.0, %v368
    %370 = vmatmul.f32.gmra.mxu0 %v134
    %v371 = vpop.f32.mrf.mxu0
    %v372 = vadd.f32 0.0, %v371
    %373 = vmatmul.f32.gmra.mxu0 %v136
    %v374 = vpop.f32.mrf.mxu0
    %v375 = vadd.f32 0.0, %v374
    %376 = vmatmul.f32.gmra.mxu0 %v138
    %v377 = vpop.f32.mrf.mxu0
    %v378 = vadd.f32 0.0, %v377
    %379 = vmatmul.f32.gmra.mxu0 %v140
    %v380 = vpop.f32.mrf.mxu0
    %v381 = vadd.f32 0.0, %v380
    %382 = vmatmul.f32.gmra.mxu0 %v142
    %v383 = vpop.f32.mrf.mxu0
    %v384 = vadd.f32 0.0, %v383
    %385 = vmatmul.f32.gmra.mxu0 %v208
    %v386 = vpop.f32.mrf.mxu0
    %v387 = vadd.f32 0.0, %v386
    %388 = vmatmul.f32.gmra.mxu0 %v187
    %v389 = vpop.f32.mrf.mxu0
    %v390 = vadd.f32 0.0, %v389
    %391 = vmatmul.f32.gmra.mxu0 %v189
    %v392 = vpop.f32.mrf.mxu0
    %v393 = vadd.f32 0.0, %v392
    %394 = vmatmul.f32.gmra.mxu0 %v191
    %v395 = vpop.f32.mrf.mxu0
    %v396 = vadd.f32 0.0, %v395
    %397 = vmatmul.f32.gmra.mxu0 %v193
    %v398 = vpop.f32.mrf.mxu0
    %v399 = vadd.f32 0.0, %v398
    %400 = vmatmul.f32.gmra.mxu0 %v195
    %v401 = vpop.f32.mrf.mxu0
    %v402 = vadd.f32 0.0, %v401
    %403 = vmatmul.f32.gmra.mxu0 %v197
    %v404 = vpop.f32.mrf.mxu0
    %v405 = vadd.f32 0.0, %v404
    %406 = vmatmul.f32.gmra.mxu0 %v199
    %v407 = vpop.f32.mrf.mxu0
    %v408 = vadd.f32 0.0, %v407
    %409 = vmatmul.f32.gmra.mxu0 %v264
    %v410 = vpop.f32.mrf.mxu0
    %v411 = vadd.f32 0.0, %v410
    %412 = vmatmul.f32.gmra.mxu0 %v243
    %v413 = vpop.f32.mrf.mxu0
    %v414 = vadd.f32 0.0, %v413
    %415 = vmatmul.f32.gmra.mxu0 %v245
    %v416 = vpop.f32.mrf.mxu0
    %v417 = vadd.f32 0.0, %v416
    %418 = vmatmul.f32.gmra.mxu0 %v247
    %v419 = vpop.f32.mrf.mxu0
    %v420 = vadd.f32 0.0, %v419
    %421 = vmatmul.f32.gmra.mxu0 %v249
    %v422 = vpop.f32.mrf.mxu0
    %v423 = vadd.f32 0.0, %v422
    %424 = vmatmul.f32.gmra.mxu0 %v251
    %v425 = vpop.f32.mrf.mxu0
    %v426 = vadd.f32 0.0, %v425
    %427 = vmatmul.f32.gmra.mxu0 %v253
    %v428 = vpop.f32.mrf.mxu0
    %v429 = vadd.f32 0.0, %v428
    %430 = vmatmul.f32.gmra.mxu0 %v255
    %v431 = vpop.f32.mrf.mxu0
    %v432 = vadd.f32 0.0, %v431
    %433 = vmatmul.f32.gmra.mxu0 %v320
    %v434 = vpop.f32.mrf.mxu0
    %v435 = vadd.f32 0.0, %v434
    %436 = vmatmul.f32.gmra.mxu0 %v299
    %v437 = vpop.f32.mrf.mxu0
    %v438 = vadd.f32 0.0, %v437
    %439 = vmatmul.f32.gmra.mxu0 %v301
    %v440 = vpop.f32.mrf.mxu0
    %v441 = vadd.f32 0.0, %v440
    %442 = vmatmul.f32.gmra.mxu0 %v303
    %v443 = vpop.f32.mrf.mxu0
    %v444 = vadd.f32 0.0, %v443
    %445 = vmatmul.f32.gmra.mxu0 %v305
    %v446 = vpop.f32.mrf.mxu0
    %v447 = vadd.f32 0.0, %v446
    %448 = vmatmul.f32.gmra.mxu0 %v307
    %v449 = vpop.f32.mrf.mxu0
    %v450 = vadd.f32 0.0, %v449
    %451 = vmatmul.f32.gmra.mxu0 %v309
    %v452 = vpop.f32.mrf.mxu0
    %v453 = vadd.f32 0.0, %v452
    %454 = vmatmul.f32.gmra.mxu0 %v311
    %v455 = vpop.f32.mrf.mxu0
    %v456 = vadd.f32 0.0, %v455
    %457 = vdwg.mxu0
    %458 = vmatpush.msra.mxu0 %v99
    %459 = vmatpush.msra.mxu0 %v98
    %460 = vmatpush.msra.mxu0 %v97
    %461 = vmatpush.msra.mxu0 %v96
    %462 = vmatpush.msra.mxu0 %v95
    %463 = vmatpush.msra.mxu0 %v94
    %464 = vmatpush.msra.mxu0 %v93
    %465 = vmatpush.msra.mxu0 %v92
    %466 = vmatpush.msra.mxu0 %v91
    %467 = vmatpush.msra.mxu0 %v90
    %468 = vmatpush.msra.mxu0 %v89
    %469 = vmatpush.msra.mxu0 %v88
    %470 = vmatpush.msra.mxu0 %v87
    %471 = vmatpush.msra.mxu0 %v86
    %472 = vmatpush.msra.mxu0 %v85
    %473 = vmatpush.msra.mxu0 %v84
    %474 = vmatmul.f32.gmra.mxu0 %v36
    %v475 = vpop.f32.mrf.mxu0
    %v476 = vadd.f32 %v363, %v475
    %477 = vmatmul.f32.gmra.mxu0 %v37
    %v478 = vpop.f32.mrf.mxu0
    %v479 = vadd.f32 %v366, %v478
    %480 = vmatmul.f32.gmra.mxu0 %v38
    %v481 = vpop.f32.mrf.mxu0
    %v482 = vadd.f32 %v369, %v481
    %483 = vmatmul.f32.gmra.mxu0 %v39
    %v484 = vpop.f32.mrf.mxu0
    %v485 = vadd.f32 %v372, %v484
    %486 = vmatmul.f32.gmra.mxu0 %v40
    %v487 = vpop.f32.mrf.mxu0
    %v488 = vadd.f32 %v375, %v487
    %489 = vmatmul.f32.gmra.mxu0 %v41
    %v490 = vpop.f32.mrf.mxu0
    %v491 = vadd.f32 %v378, %v490
    %492 = vmatmul.f32.gmra.mxu0 %v42
    %v493 = vpop.f32.mrf.mxu0
    %v494 = vadd.f32 %v381, %v493
    %495 = vmatmul.f32.gmra.mxu0 %v43
    %v496 = vpop.f32.mrf.mxu0
    %v497 = vadd.f32 %v384, %v496
    %498 = vmatmul.f32.gmra.mxu0 %v44
    %v499 = vpop.f32.mrf.mxu0
    %v500 = vadd.f32 %v387, %v499
    %501 = vmatmul.f32.gmra.mxu0 %v45
    %v502 = vpop.f32.mrf.mxu0
    %v503 = vadd.f32 %v390, %v502
    %504 = vmatmul.f32.gmra.mxu0 %v46
    %v505 = vpop.f32.mrf.mxu0
    %v506 = vadd.f32 %v393, %v505
    %507 = vmatmul.f32.gmra.mxu0 %v47
    %v508 = vpop.f32.mrf.mxu0
    %v509 = vadd.f32 %v396, %v508
    %510 = vmatmul.f32.gmra.mxu0 %v48
    %v511 = vpop.f32.mrf.mxu0
    %v512 = vadd.f32 %v399, %v511
    %513 = vmatmul.f32.gmra.mxu0 %v49
    %v514 = vpop.f32.mrf.mxu0
    %v515 = vadd.f32 %v402, %v514
    %516 = vmatmul.f32.gmra.mxu0 %v50
    %v517 = vpop.f32.mrf.mxu0
    %v518 = vadd.f32 %v405, %v517
    %519 = vmatmul.f32.gmra.mxu0 %v51
    %v520 = vpop.f32.mrf.mxu0
    %v521 = vadd.f32 %v408, %v520
    %522 = vmatmul.f32.gmra.mxu0 %v52
    %v523 = vpop.f32.mrf.mxu0
    %v524 = vadd.f32 %v411, %v523
    %525 = vmatmul.f32.gmra.mxu0 %v53
    %v526 = vpop.f32.mrf.mxu0
    %v527 = vadd.f32 %v414, %v526
    %528 = vmatmul.f32.gmra.mxu0 %v54
    %v529 = vpop.f32.mrf.mxu0
    %v530 = vadd.f32 %v417, %v529
    %531 = vmatmul.f32.gmra.mxu0 %v55
    %v532 = vpop.f32.mrf.mxu0
    %v533 = vadd.f32 %v420, %v532
    %534 = vmatmul.f32.gmra.mxu0 %v56
    %v535 = vpop.f32.mrf.mxu0
    %v536 = vadd.f32 %v423, %v535
    %537 = vmatmul.f32.gmra.mxu0 %v57
    %v538 = vpop.f32.mrf.mxu0
    %v539 = vadd.f32 %v426, %v538
    %540 = vmatmul.f32.gmra.mxu0 %v58
    %v541 = vpop.f32.mrf.mxu0
    %v542 = vadd.f32 %v429, %v541
    %543 = vmatmul.f32.gmra.mxu0 %v59
    %v544 = vpop.f32.mrf.mxu0
    %v545 = vadd.f32 %v432, %v544
    %546 = vmatmul.f32.gmra.mxu0 %v60
    %v547 = vpop.f32.mrf.mxu0
    %v548 = vadd.f32 %v435, %v547
    %549 = vmatmul.f32.gmra.mxu0 %v61
    %v550 = vpop.f32.mrf.mxu0
    %v551 = vadd.f32 %v438, %v550
    %552 = vmatmul.f32.gmra.mxu0 %v62
    %v553 = vpop.f32.mrf.mxu0
    %v554 = vadd.f32 %v441, %v553
    %555 = vmatmul.f32.gmra.mxu0 %v63
    %v556 = vpop.f32.mrf.mxu0
    %v557 = vadd.f32 %v444, %v556
    %558 = vmatmul.f32.gmra.mxu0 %v64
    %v559 = vpop.f32.mrf.mxu0
    %v560 = vadd.f32 %v447, %v559
    %561 = vmatmul.f32.gmra.mxu0 %v65
    %v562 = vpop.f32.mrf.mxu0
    %v563 = vadd.f32 %v450, %v562
    %564 = vmatmul.f32.gmra.mxu0 %v66
    %v565 = vpop.f32.mrf.mxu0
    %v566 = vadd.f32 %v453, %v565
    %567 = vmatmul.f32.gmra.mxu0 %v67
    %v568 = vpop.f32.mrf.mxu0
    %v569 = vadd.f32 %v456, %v568
    %570 = vdwg.mxu0
    %571 = vmatpush.msra.mxu0 %v115
    %572 = vmatpush.msra.mxu0 %v114
    %573 = vmatpush.msra.mxu0 %v113
    %574 = vmatpush.msra.mxu0 %v112
    %575 = vmatpush.msra.mxu0 %v111
    %576 = vmatpush.msra.mxu0 %v110
    %577 = vmatpush.msra.mxu0 %v109
    %578 = vmatpush.msra.mxu0 %v108
    %579 = vmatpush.msra.mxu0 %v107
    %580 = vmatpush.msra.mxu0 %v106
    %581 = vmatpush.msra.mxu0 %v105
    %582 = vmatpush.msra.mxu0 %v104
    %583 = vmatpush.msra.mxu0 %v103
    %584 = vmatpush.msra.mxu0 %v102
    %585 = vmatpush.msra.mxu0 %v101
    %586 = vmatpush.msra.mxu0 %v100
    %587 = vmatmul.f32.gmra.mxu0 %v155
    %v588 = vpop.f32.mrf.mxu0
    %v589 = vadd.f32 %v476, %v588
    %590 = vmatmul.f32.gmra.mxu0 %v157
    %v591 = vpop.f32.mrf.mxu0
    %v592 = vadd.f32 %v479, %v591
    %593 = vmatmul.f32.gmra.mxu0 %v159
    %v594 = vpop.f32.mrf.mxu0
    %v595 = vadd.f32 %v482, %v594
    %596 = vmatmul.f32.gmra.mxu0 %v161
    %v597 = vpop.f32.mrf.mxu0
    %v598 = vadd.f32 %v485, %v597
    %599 = vmatmul.f32.gmra.mxu0 %v163
    %v600 = vpop.f32.mrf.mxu0
    %v601 = vadd.f32 %v488, %v600
    %602 = vmatmul.f32.gmra.mxu0 %v165
    %v603 = vpop.f32.mrf.mxu0
    %v604 = vadd.f32 %v491, %v603
    %605 = vmatmul.f32.gmra.mxu0 %v167
    %v606 = vpop.f32.mrf.mxu0
    %v607 = vadd.f32 %v494, %v606
    %608 = vmatmul.f32.gmra.mxu0 %v176
    %v609 = vpop.f32.mrf.mxu0
    %v610 = vadd.f32 %v497, %v609
    %611 = vmatmul.f32.gmra.mxu0 %v211
    %v612 = vpop.f32.mrf.mxu0
    %v613 = vadd.f32 %v500, %v612
    %614 = vmatmul.f32.gmra.mxu0 %v213
    %v615 = vpop.f32.mrf.mxu0
    %v616 = vadd.f32 %v503, %v615
    %617 = vmatmul.f32.gmra.mxu0 %v215
    %v618 = vpop.f32.mrf.mxu0
    %v619 = vadd.f32 %v506, %v618
    %620 = vmatmul.f32.gmra.mxu0 %v217
    %v621 = vpop.f32.mrf.mxu0
    %v622 = vadd.f32 %v509, %v621
    %623 = vmatmul.f32.gmra.mxu0 %v219
    %v624 = vpop.f32.mrf.mxu0
    %v625 = vadd.f32 %v512, %v624
    %626 = vmatmul.f32.gmra.mxu0 %v221
    %v627 = vpop.f32.mrf.mxu0
    %v628 = vadd.f32 %v515, %v627
    %629 = vmatmul.f32.gmra.mxu0 %v223
    %v630 = vpop.f32.mrf.mxu0
    %v631 = vadd.f32 %v518, %v630
    %632 = vmatmul.f32.gmra.mxu0 %v232
    %v633 = vpop.f32.mrf.mxu0
    %v634 = vadd.f32 %v521, %v633
    %635 = vmatmul.f32.gmra.mxu0 %v267
    %v636 = vpop.f32.mrf.mxu0
    %v637 = vadd.f32 %v524, %v636
    %638 = vmatmul.f32.gmra.mxu0 %v269
    %v639 = vpop.f32.mrf.mxu0
    %v640 = vadd.f32 %v527, %v639
    %641 = vmatmul.f32.gmra.mxu0 %v271
    %v642 = vpop.f32.mrf.mxu0
    %v643 = vadd.f32 %v530, %v642
    %644 = vmatmul.f32.gmra.mxu0 %v273
    %v645 = vpop.f32.mrf.mxu0
    %v646 = vadd.f32 %v533, %v645
    %647 = vmatmul.f32.gmra.mxu0 %v275
    %v648 = vpop.f32.mrf.mxu0
    %v649 = vadd.f32 %v536, %v648
    %650 = vmatmul.f32.gmra.mxu0 %v277
    %v651 = vpop.f32.mrf.mxu0
    %v652 = vadd.f32 %v539, %v651
    %653 = vmatmul.f32.gmra.mxu0 %v279
    %v654 = vpop.f32.mrf.mxu0
    %v655 = vadd.f32 %v542, %v654
    %656 = vmatmul.f32.gmra.mxu0 %v288
    %v657 = vpop.f32.mrf.mxu0
    %v658 = vadd.f32 %v545, %v657
    %659 = vmatmul.f32.gmra.mxu0 %v323
    %v660 = vpop.f32.mrf.mxu0
    %v661 = vadd.f32 %v548, %v660
    %662 = vmatmul.f32.gmra.mxu0 %v325
    %v663 = vpop.f32.mrf.mxu0
    %v664 = vadd.f32 %v551, %v663
    %665 = vmatmul.f32.gmra.mxu0 %v327
    %v666 = vpop.f32.mrf.mxu0
    %v667 = vadd.f32 %v554, %v666
    %668 = vmatmul.f32.gmra.mxu0 %v329
    %v669 = vpop.f32.mrf.mxu0
    %v670 = vadd.f32 %v557, %v669
    %671 = vmatmul.f32.gmra.mxu0 %v331
    %v672 = vpop.f32.mrf.mxu0
    %v673 = vadd.f32 %v560, %v672
    %674 = vmatmul.f32.gmra.mxu0 %v333
    %v675 = vpop.f32.mrf.mxu0
    %v676 = vadd.f32 %v563, %v675
    %677 = vmatmul.f32.gmra.mxu0 %v335
    %v678 = vpop.f32.mrf.mxu0
    %v679 = vadd.f32 %v566, %v678
    %680 = vmatmul.f32.gmra.mxu0 %v344
    %v681 = vpop.f32.mrf.mxu0
    %v682 = vadd.f32 %v569, %v681
    %683 = vdwg.mxu0
    %v685 = vperm.slane %v116, 0
    %v687 = vmul.f32 %v589, %v685
    %v688 = vmul.f32 %v592, %v685
    %v689 = vmul.f32 %v595, %v685
    %v690 = vmul.f32 %v598, %v685
    %v691 = vmul.f32 %v601, %v685
    %v692 = vmul.f32 %v604, %v685
    %v693 = vmul.f32 %v607, %v685
    %v694 = vmul.f32 %v610, %v685
    %v695 = vmul.f32 %v613, %v685
    %v696 = vmul.f32 %v616, %v685
    %v697 = vmul.f32 %v619, %v685
    %v698 = vmul.f32 %v622, %v685
    %v699 = vmul.f32 %v625, %v685
    %v700 = vmul.f32 %v628, %v685
    %v701 = vmul.f32 %v631, %v685
    %v702 = vmul.f32 %v634, %v685
    %v703 = vmul.f32 %v637, %v685
    %v704 = vmul.f32 %v640, %v685
    %v705 = vmul.f32 %v643, %v685
    %v706 = vmul.f32 %v646, %v685
    %v707 = vmul.f32 %v649, %v685
    %v708 = vmul.f32 %v652, %v685
    %v709 = vmul.f32 %v655, %v685
    %v710 = vmul.f32 %v658, %v685
    %v711 = vmul.f32 %v661, %v685
    %v712 = vmul.f32 %v664, %v685
    %v713 = vmul.f32 %v667, %v685
    %v714 = vmul.f32 %v670, %v685
    %v715 = vmul.f32 %v673, %v685
    %v716 = vmul.f32 %v676, %v685
    %v717 = vmul.f32 %v679, %v685
    %v718 = vmul.f32 %v682, %v685
    %v720 = vperm.slane %v117, 0
    %v722 = vadd.f32 %v687, %v720
    %v723 = vadd.f32 %v688, %v720
    %v724 = vadd.f32 %v689, %v720
    %v725 = vadd.f32 %v690, %v720
    %v726 = vadd.f32 %v691, %v720
    %v727 = vadd.f32 %v692, %v720
    %v728 = vadd.f32 %v693, %v720
    %v729 = vadd.f32 %v694, %v720
    %v730 = vadd.f32 %v695, %v720
    %v731 = vadd.f32 %v696, %v720
    %v732 = vadd.f32 %v697, %v720
    %v733 = vadd.f32 %v698, %v720
    %v734 = vadd.f32 %v699, %v720
    %v735 = vadd.f32 %v700, %v720
    %v736 = vadd.f32 %v701, %v720
    %v737 = vadd.f32 %v702, %v720
    %v738 = vadd.f32 %v703, %v720
    %v739 = vadd.f32 %v704, %v720
    %v740 = vadd.f32 %v705, %v720
    %v741 = vadd.f32 %v706, %v720
    %v742 = vadd.f32 %v707, %v720
    %v743 = vadd.f32 %v708, %v720
    %v744 = vadd.f32 %v709, %v720
    %v745 = vadd.f32 %v710, %v720
    %v746 = vadd.f32 %v711, %v720
    %v747 = vadd.f32 %v712, %v720
    %v748 = vadd.f32 %v713, %v720
    %v749 = vadd.f32 %v714, %v720
    %v750 = vadd.f32 %v715, %v720
    %v751 = vadd.f32 %v716, %v720
    %v752 = vadd.f32 %v717, %v720
    %v753 = vadd.f32 %v718, %v720
    %vm754 = vcmp.ge.f32.partialorder %v722, 0.0
    %vm755 = vcmp.ge.f32.partialorder %v723, 0.0
    %vm756 = vcmp.ge.f32.partialorder %v724, 0.0
    %vm757 = vcmp.ge.f32.partialorder %v725, 0.0
    %vm758 = vcmp.ge.f32.partialorder %v726, 0.0
    %vm759 = vcmp.ge.f32.partialorder %v727, 0.0
    %vm760 = vcmp.ge.f32.partialorder %v728, 0.0
    %vm761 = vcmp.ge.f32.partialorder %v729, 0.0
    %vm762 = vcmp.ge.f32.partialorder %v730, 0.0
    %vm763 = vcmp.ge.f32.partialorder %v731, 0.0
    %vm764 = vcmp.ge.f32.partialorder %v732, 0.0
    %vm765 = vcmp.ge.f32.partialorder %v733, 0.0
    %vm766 = vcmp.ge.f32.partialorder %v734, 0.0
    %vm767 = vcmp.ge.f32.partialorder %v735, 0.0
    %vm768 = vcmp.ge.f32.partialorder %v736, 0.0
    %vm769 = vcmp.ge.f32.partialorder %v737, 0.0
    %vm770 = vcmp.ge.f32.partialorder %v738, 0.0
    %vm771 = vcmp.ge.f32.partialorder %v739, 0.0
    %vm772 = vcmp.ge.f32.partialorder %v740, 0.0
    %vm773 = vcmp.ge.f32.partialorder %v741, 0.0
    %vm774 = vcmp.ge.f32.partialorder %v742, 0.0
    %vm775 = vcmp.ge.f32.partialorder %v743, 0.0
    %vm776 = vcmp.ge.f32.partialorder %v744, 0.0
    %vm777 = vcmp.ge.f32.partialorder %v745, 0.0
    %vm778 = vcmp.ge.f32.partialorder %v746, 0.0
    %vm779 = vcmp.ge.f32.partialorder %v747, 0.0
    %vm780 = vcmp.ge.f32.partialorder %v748, 0.0
    %vm781 = vcmp.ge.f32.partialorder %v749, 0.0
    %vm782 = vcmp.ge.f32.partialorder %v750, 0.0
    %vm783 = vcmp.ge.f32.partialorder %v751, 0.0
    %vm784 = vcmp.ge.f32.partialorder %v752, 0.0
    %vm785 = vcmp.ge.f32.partialorder %v753, 0.0
    %v786 = vmul.f32 %v722, 0.01
    %v787 = vmul.f32 %v723, 0.01
    %v788 = vmul.f32 %v724, 0.01
    %v789 = vmul.f32 %v725, 0.01
    %v790 = vmul.f32 %v726, 0.01
    %v791 = vmul.f32 %v727, 0.01
    %v792 = vmul.f32 %v728, 0.01
    %v793 = vmul.f32 %v729, 0.01
    %v794 = vmul.f32 %v730, 0.01
    %v795 = vmul.f32 %v731, 0.01
    %v796 = vmul.f32 %v732, 0.01
    %v797 = vmul.f32 %v733, 0.01
    %v798 = vmul.f32 %v734, 0.01
    %v799 = vmul.f32 %v735, 0.01
    %v800 = vmul.f32 %v736, 0.01
    %v801 = vmul.f32 %v737, 0.01
    %v802 = vmul.f32 %v738, 0.01
    %v803 = vmul.f32 %v739, 0.01
    %v804 = vmul.f32 %v740, 0.01
    %v805 = vmul.f32 %v741, 0.01
    %v806 = vmul.f32 %v742, 0.01
    %v807 = vmul.f32 %v743, 0.01
    %v808 = vmul.f32 %v744, 0.01
    %v809 = vmul.f32 %v745, 0.01
    %v810 = vmul.f32 %v746, 0.01
    %v811 = vmul.f32 %v747, 0.01
    %v812 = vmul.f32 %v748, 0.01
    %v813 = vmul.f32 %v749, 0.01
    %v814 = vmul.f32 %v750, 0.01
    %v815 = vmul.f32 %v751, 0.01
    %v816 = vmul.f32 %v752, 0.01
    %v817 = vmul.f32 %v753, 0.01
    %v818 = vsel %vm754, %v722, %v786
    %v819 = vsel %vm755, %v723, %v787
    %v820 = vsel %vm756, %v724, %v788
    %v821 = vsel %vm757, %v725, %v789
    %v822 = vsel %vm758, %v726, %v790
    %v823 = vsel %vm759, %v727, %v791
    %v824 = vsel %vm760, %v728, %v792
    %v825 = vsel %vm761, %v729, %v793
    %v826 = vsel %vm762, %v730, %v794
    %v827 = vsel %vm763, %v731, %v795
    %v828 = vsel %vm764, %v732, %v796
    %v829 = vsel %vm765, %v733, %v797
    %v830 = vsel %vm766, %v734, %v798
    %v831 = vsel %vm767, %v735, %v799
    %v832 = vsel %vm768, %v736, %v800
    %v833 = vsel %vm769, %v737, %v801
    %v834 = vsel %vm770, %v738, %v802
    %v835 = vsel %vm771, %v739, %v803
    %v836 = vsel %vm772, %v740, %v804
    %v837 = vsel %vm773, %v741, %v805
    %v838 = vsel %vm774, %v742, %v806
    %v839 = vsel %vm775, %v743, %v807
    %v840 = vsel %vm776, %v744, %v808
    %v841 = vsel %vm777, %v745, %v809
    %v842 = vsel %vm778, %v746, %v810
    %v843 = vsel %vm779, %v747, %v811
    %v844 = vsel %vm780, %v748, %v812
    %v845 = vsel %vm781, %v749, %v813
    %v846 = vsel %vm782, %v750, %v814
    %v847 = vsel %vm783, %v751, %v815
    %v848 = vsel %vm784, %v752, %v816
    %v849 = vsel %vm785, %v753, %v817
    %v850 = vlaneseq
    %v851 = vshrl.u32 %v850, 7
    %v852 = vadd.s32 %v851, 8
    %v853 = vadd.s32 %v851, 16
    %v854 = vadd.s32 %v851, 24
    %v855 = vmul.u32 %v851, 2
    %v856 = vmul.u32 %v852, 2
    %v857 = vmul.u32 %v853, 2
    %v858 = vmul.u32 %v854, 2
    %v859 = vlaneseq
    %v860 = vand.u32 %v859, 127
    %vm861 = vcmp.eq.s32.totalorder %v855, %v860
    %vm862 = vcmp.eq.s32.totalorder %v856, %v860
    %vm863 = vcmp.eq.s32.totalorder %v857, %v860
    %vm864 = vcmp.eq.s32.totalorder %v858, %v860
    %v865 = vsel %vm861, 1, 0
    %v866 = vsel %vm862, 1, 0
    %v867 = vsel %vm863, 1, 0
    %v868 = vsel %vm864, 1, 0
    %v869 = vcvt.s32.f32 %v865
    %v870 = vcvt.s32.f32 %v866
    %v871 = vcvt.s32.f32 %v867
    %v872 = vcvt.s32.f32 %v868
    %vm873 = vcmask 523264
    %v875 = vsel %vm873, %v869, 0
    %v878 = vsel %vm873, %v870, 0
    %v881 = vsel %vm873, %v871, 0
    %v884 = vsel %vm873, %v872, 0
    %886 = vmatpush.msra.mxu0 0.0
    %887 = vmatpush.msra.mxu0 0.0
    %888 = vmatpush.msra.mxu0 0.0
    %889 = vmatpush.msra.mxu0 0.0
    %890 = vmatpush.msra.mxu0 0.0
    %891 = vmatpush.msra.mxu0 0.0
    %892 = vmatpush.msra.mxu0 0.0
    %893 = vmatpush.msra.mxu0 0.0
    %894 = vmatpush.msra.mxu0 %v825
    %895 = vmatpush.msra.mxu0 %v824
    %896 = vmatpush.msra.mxu0 %v823
    %897 = vmatpush.msra.mxu0 %v822
    %898 = vmatpush.msra.mxu0 %v821
    %899 = vmatpush.msra.mxu0 %v820
    %900 = vmatpush.msra.mxu0 %v819
    %901 = vmatpush.msra.mxu0 %v818
    %902 = vmatmul.f32.gmra.mxu0 %v875
    %v903 = vpop.f32.mrf.mxu0
    %v904 = vadd.f32 0.0, %v903
    %905 = vmatmul.f32.gmra.mxu0 %v878
    %v906 = vpop.f32.mrf.mxu0
    %v907 = vadd.f32 0.0, %v906
    %908 = vmatmul.f32.gmra.mxu0 %v881
    %v909 = vpop.f32.mrf.mxu0
    %v910 = vadd.f32 0.0, %v909
    %911 = vmatmul.f32.gmra.mxu0 %v884
    %v912 = vpop.f32.mrf.mxu0
    %v913 = vadd.f32 0.0, %v912
    %914 = vdwg.mxu0
    %915 = vmatpush.msra.mxu0 0.0
    %916 = vmatpush.msra.mxu0 0.0
    %917 = vmatpush.msra.mxu0 0.0
    %918 = vmatpush.msra.mxu0 0.0
    %919 = vmatpush.msra.mxu0 0.0
    %920 = vmatpush.msra.mxu0 0.0
    %921 = vmatpush.msra.mxu0 0.0
    %922 = vmatpush.msra.mxu0 0.0
    %923 = vmatpush.msra.mxu0 %v833
    %924 = vmatpush.msra.mxu0 %v832
    %925 = vmatpush.msra.mxu0 %v831
    %926 = vmatpush.msra.mxu0 %v830
    %927 = vmatpush.msra.mxu0 %v829
    %928 = vmatpush.msra.mxu0 %v828
    %929 = vmatpush.msra.mxu0 %v827
    %930 = vmatpush.msra.mxu0 %v826
    %931 = vmatmul.f32.gmra.mxu0 %v875
    %v932 = vpop.f32.mrf.mxu0
    %v933 = vadd.f32 0.0, %v932
    %934 = vmatmul.f32.gmra.mxu0 %v878
    %v935 = vpop.f32.mrf.mxu0
    %v936 = vadd.f32 0.0, %v935
    %937 = vmatmul.f32.gmra.mxu0 %v881
    %v938 = vpop.f32.mrf.mxu0
    %v939 = vadd.f32 0.0, %v938
    %940 = vmatmul.f32.gmra.mxu0 %v884
    %v941 = vpop.f32.mrf.mxu0
    %v942 = vadd.f32 0.0, %v941
    %943 = vdwg.mxu0
    %944 = vmatpush.msra.mxu0 0.0
    %945 = vmatpush.msra.mxu0 0.0
    %946 = vmatpush.msra.mxu0 0.0
    %947 = vmatpush.msra.mxu0 0.0
    %948 = vmatpush.msra.mxu0 0.0
    %949 = vmatpush.msra.mxu0 0.0
    %950 = vmatpush.msra.mxu0 0.0
    %951 = vmatpush.msra.mxu0 0.0
    %952 = vmatpush.msra.mxu0 %v841
    %953 = vmatpush.msra.mxu0 %v840
    %954 = vmatpush.msra.mxu0 %v839
    %955 = vmatpush.msra.mxu0 %v838
    %956 = vmatpush.msra.mxu0 %v837
    %957 = vmatpush.msra.mxu0 %v836
    %958 = vmatpush.msra.mxu0 %v835
    %959 = vmatpush.msra.mxu0 %v834
    %960 = vmatmul.f32.gmra.mxu0 %v875
    %v961 = vpop.f32.mrf.mxu0
    %v962 = vadd.f32 0.0, %v961
    %963 = vmatmul.f32.gmra.mxu0 %v878
    %v964 = vpop.f32.mrf.mxu0
    %v965 = vadd.f32 0.0, %v964
    %966 = vmatmul.f32.gmra.mxu0 %v881
    %v967 = vpop.f32.mrf.mxu0
    %v968 = vadd.f32 0.0, %v967
    %969 = vmatmul.f32.gmra.mxu0 %v884
    %v970 = vpop.f32.mrf.mxu0
    %v971 = vadd.f32 0.0, %v970
    %972 = vdwg.mxu0
    %973 = vmatpush.msra.mxu0 0.0
    %974 = vmatpush.msra.mxu0 0.0
    %975 = vmatpush.msra.mxu0 0.0
    %976 = vmatpush.msra.mxu0 0.0
    %977 = vmatpush.msra.mxu0 0.0
    %978 = vmatpush.msra.mxu0 0.0
    %979 = vmatpush.msra.mxu0 0.0
    %980 = vmatpush.msra.mxu0 0.0
    %981 = vmatpush.msra.mxu0 %v849
    %982 = vmatpush.msra.mxu0 %v848
    %983 = vmatpush.msra.mxu0 %v847
    %984 = vmatpush.msra.mxu0 %v846
    %985 = vmatpush.msra.mxu0 %v845
    %986 = vmatpush.msra.mxu0 %v844
    %987 = vmatpush.msra.mxu0 %v843
    %988 = vmatpush.msra.mxu0 %v842
    %989 = vmatmul.f32.gmra.mxu0 %v875
    %v990 = vpop.f32.mrf.mxu0
    %v991 = vadd.f32 0.0, %v990
    %992 = vmatmul.f32.gmra.mxu0 %v878
    %v993 = vpop.f32.mrf.mxu0
    %v994 = vadd.f32 0.0, %v993
    %995 = vmatmul.f32.gmra.mxu0 %v881
    %v996 = vpop.f32.mrf.mxu0
    %v997 = vadd.f32 0.0, %v996
    %998 = vmatmul.f32.gmra.mxu0 %v884
    %v999 = vpop.f32.mrf.mxu0
    %v1000 = vadd.f32 0.0, %v999
    %1001 = vdwg.mxu0
    %v1002 = vsub.f32 %v904, %v962
    %v1003 = vsub.f32 %v907, %v965
    %v1004 = vsub.f32 %v910, %v968
    %v1005 = vsub.f32 %v913, %v971
    %v1007 = vperm.slane %v118, 0
    %v1009 = vmul.f32 %v1002, %v1007
    %v1010 = vmul.f32 %v1003, %v1007
    %v1011 = vmul.f32 %v1004, %v1007
    %v1012 = vmul.f32 %v1005, %v1007
    %v1013 = vand.u32 2147483647, %v1009
    %v1014 = vand.u32 2147483647, %v1010
    %v1015 = vand.u32 2147483647, %v1011
    %v1016 = vand.u32 2147483647, %v1012
    %v1017 = vadd.f32 %v1013, %v1014
    %v1018 = vadd.f32 %v1017, %v1015
    %v1019 = vadd.f32 %v1018, %v1016
    %v1020 = vrot.slane %v1019, 4
    %v1021 = vadd.f32 %v1019, %v1020
    %v1022 = vrot.slane %v1021, 2
    %v1023 = vadd.f32 %v1021, %v1022
    %v1024 = vrot.slane %v1023, 1
    %v1025 = vadd.f32 %v1023, %v1024
    %v1026 = vmul.f32 %v1025, 0.0009765625
    %v1027 = vadd.f32 %v1026, 0.0
    %v1028 = vsub.f32 %v933, %v991
    %v1029 = vsub.f32 %v936, %v994
    %v1030 = vsub.f32 %v939, %v997
    %v1031 = vsub.f32 %v942, %v1000
    %v1032 = vmul.f32 %v1028, %v1007
    %v1033 = vmul.f32 %v1029, %v1007
    %v1034 = vmul.f32 %v1030, %v1007
    %v1035 = vmul.f32 %v1031, %v1007
    %v1036 = vand.u32 2147483647, %v1032
    %v1037 = vand.u32 2147483647, %v1033
    %v1038 = vand.u32 2147483647, %v1034
    %v1039 = vand.u32 2147483647, %v1035
    %v1040 = vadd.f32 %v1036, %v1037
    %v1041 = vadd.f32 %v1040, %v1038
    %v1042 = vadd.f32 %v1041, %v1039
    %v1043 = vrot.slane %v1042, 4
    %v1044 = vadd.f32 %v1042, %v1043
    %v1045 = vrot.slane %v1044, 2
    %v1046 = vadd.f32 %v1044, %v1045
    %v1047 = vrot.slane %v1046, 1
    %v1048 = vadd.f32 %v1046, %v1047
    %v1049 = vmul.f32 %v1048, 0.0009765625
    %v1050 = vadd.f32 %v1049, 0.0
    %s1051 = scalar_lea.vmem [#allocation2], 384
    %v1052 = vld [vmem:[%s1051] sm:$0xff]
    %v1053 = vld [vmem:[%s1051 + $0x8] sm:$0xff]
    %v1054 = vld [vmem:[%s1051 + $0x10] sm:$0xff]
    %v1055 = vld [vmem:[%s1051 + $0x18] sm:$0xff]
    %v1056 = vld [vmem:[%s1051 + $0x20] sm:$0xff]
    %v1057 = vld [vmem:[%s1051 + $0x28] sm:$0xff]
    %v1058 = vld [vmem:[%s1051 + $0x30] sm:$0xff]
    %v1059 = vld [vmem:[%s1051 + $0x38] sm:$0xff]
    %v1060 = vld [vmem:[%s1051 + $0x40] sm:$0xff]
    %v1061 = vld [vmem:[%s1051 + $0x48] sm:$0xff]
    %v1062 = vld [vmem:[%s1051 + $0x50] sm:$0xff]
    %v1063 = vld [vmem:[%s1051 + $0x58] sm:$0xff]
    %v1064 = vld [vmem:[%s1051 + $0x60] sm:$0xff]
    %v1065 = vld [vmem:[%s1051 + $0x68] sm:$0xff]
    %v1066 = vld [vmem:[%s1051 + $0x70] sm:$0xff]
    %v1067 = vld [vmem:[%s1051 + $0x78] sm:$0xff]
    %v1068 = vld [vmem:[%s1051 + $0x80] sm:$0xff]
    %v1069 = vld [vmem:[%s1051 + $0x88] sm:$0xff]
    %v1070 = vld [vmem:[%s1051 + $0x90] sm:$0xff]
    %v1071 = vld [vmem:[%s1051 + $0x98] sm:$0xff]
    %v1072 = vld [vmem:[%s1051 + $0xa0] sm:$0xff]
    %v1073 = vld [vmem:[%s1051 + $0xa8] sm:$0xff]
    %v1074 = vld [vmem:[%s1051 + $0xb0] sm:$0xff]
    %v1075 = vld [vmem:[%s1051 + $0xb8] sm:$0xff]
    %v1076 = vld [vmem:[%s1051 + $0xc0] sm:$0xff]
    %v1077 = vld [vmem:[%s1051 + $0xc8] sm:$0xff]
    %v1078 = vld [vmem:[%s1051 + $0xd0] sm:$0xff]
    %v1079 = vld [vmem:[%s1051 + $0xd8] sm:$0xff]
    %v1080 = vld [vmem:[%s1051 + $0xe0] sm:$0xff]
    %v1081 = vld [vmem:[%s1051 + $0xe8] sm:$0xff]
    %v1082 = vld [vmem:[%s1051 + $0xf0] sm:$0xff]
    %v1083 = vld [vmem:[%s1051 + $0xf8] sm:$0xff]
    %v1084 = vld [vmem:[%s1051 + $0x100] sm:$0xff]
    %v1085 = vld [vmem:[%s1051 + $0x108] sm:$0xff]
    %v1086 = vld [vmem:[%s1051 + $0x110] sm:$0xff]
    %v1087 = vld [vmem:[%s1051 + $0x118] sm:$0xff]
    %v1088 = vld [vmem:[%s1051 + $0x120] sm:$0xff]
    %v1089 = vld [vmem:[%s1051 + $0x128] sm:$0xff]
    %v1090 = vld [vmem:[%s1051 + $0x130] sm:$0xff]
    %v1091 = vld [vmem:[%s1051 + $0x138] sm:$0xff]
    %v1092 = vld [vmem:[%s1051 + $0x140] sm:$0xff]
    %v1093 = vld [vmem:[%s1051 + $0x148] sm:$0xff]
    %v1094 = vld [vmem:[%s1051 + $0x150] sm:$0xff]
    %v1095 = vld [vmem:[%s1051 + $0x158] sm:$0xff]
    %v1096 = vld [vmem:[%s1051 + $0x160] sm:$0xff]
    %v1097 = vld [vmem:[%s1051 + $0x168] sm:$0xff]
    %v1098 = vld [vmem:[%s1051 + $0x170] sm:$0xff]
    %v1099 = vld [vmem:[%s1051 + $0x178] sm:$0xff]
    %s1100 = scalar_lea.vmem %s2, 1
    %v1101 = vld [vmem:[%s1100] sm:$0x1]
    %s1102 = scalar_lea.vmem %s3, 1
    %v1103 = vld [vmem:[%s1102] sm:$0x1]
    %s1104 = scalar_lea.vmem %s4, 1
    %v1105 = vld [vmem:[%s1104] sm:$0x1]
    %v1110 = vrot.slane %v904, 7
    %v1111 = vrot.slane %v907, 7
    %v1112 = vsel %vm127, %v1110, %v1111
    %v1113 = vrot.slane %v910, 7
    %v1114 = vsel %vm127, %v1111, %v1113
    %v1115 = vrot.slane %v913, 7
    %v1116 = vsel %vm127, %v1113, %v1115
    %v1121 = vsel %vm127, 0.0, %v1110
    %v1122 = vrot.slane %v904, 1
    %v1123 = vrot.slane %v907, 1
    %v1124 = vsel %vm152, %v1122, %v1123
    %v1125 = vrot.slane %v910, 1
    %v1126 = vsel %vm152, %v1123, %v1125
    %v1127 = vrot.slane %v913, 1
    %v1128 = vsel %vm152, %v1125, %v1127
    %v1133 = vsel %vm152, %v1127, 0.0
    %v1138 = vrot.slane %v933, 7
    %v1139 = vrot.slane %v936, 7
    %v1140 = vsel %vm127, %v1138, %v1139
    %v1141 = vrot.slane %v939, 7
    %v1142 = vsel %vm127, %v1139, %v1141
    %v1143 = vrot.slane %v942, 7
    %v1144 = vsel %vm127, %v1141, %v1143
    %v1149 = vsel %vm127, 0.0, %v1138
    %v1150 = vrot.slane %v933, 1
    %v1151 = vrot.slane %v936, 1
    %v1152 = vsel %vm152, %v1150, %v1151
    %v1153 = vrot.slane %v939, 1
    %v1154 = vsel %vm152, %v1151, %v1153
    %v1155 = vrot.slane %v942, 1
    %v1156 = vsel %vm152, %v1153, %v1155
    %v1161 = vsel %vm152, %v1155, 0.0
    %v1166 = vrot.slane %v962, 7
    %v1167 = vrot.slane %v965, 7
    %v1168 = vsel %vm127, %v1166, %v1167
    %v1169 = vrot.slane %v968, 7
    %v1170 = vsel %vm127, %v1167, %v1169
    %v1171 = vrot.slane %v971, 7
    %v1172 = vsel %vm127, %v1169, %v1171
    %v1177 = vsel %vm127, 0.0, %v1166
    %v1178 = vrot.slane %v962, 1
    %v1179 = vrot.slane %v965, 1
    %v1180 = vsel %vm152, %v1178, %v1179
    %v1181 = vrot.slane %v968, 1
    %v1182 = vsel %vm152, %v1179, %v1181
    %v1183 = vrot.slane %v971, 1
    %v1184 = vsel %vm152, %v1181, %v1183
    %v1189 = vsel %vm152, %v1183, 0.0
    %v1194 = vrot.slane %v991, 7
    %v1195 = vrot.slane %v994, 7
    %v1196 = vsel %vm127, %v1194, %v1195
    %v1197 = vrot.slane %v997, 7
    %v1198 = vsel %vm127, %v1195, %v1197
    %v1199 = vrot.slane %v1000, 7
    %v1200 = vsel %vm127, %v1197, %v1199
    %v1205 = vsel %vm127, 0.0, %v1194
    %v1206 = vrot.slane %v991, 1
    %v1207 = vrot.slane %v994, 1
    %v1208 = vsel %vm152, %v1206, %v1207
    %v1209 = vrot.slane %v997, 1
    %v1210 = vsel %vm152, %v1207, %v1209
    %v1211 = vrot.slane %v1000, 1
    %v1212 = vsel %vm152, %v1209, %v1211
    %v1217 = vsel %vm152, %v1211, 0.0
    %1218 = vmatpush.msra.mxu0 %v1067
    %1219 = vmatpush.msra.mxu0 %v1066
    %1220 = vmatpush.msra.mxu0 %v1065
    %1221 = vmatpush.msra.mxu0 %v1064
    %1222 = vmatpush.msra.mxu0 %v1063
    %1223 = vmatpush.msra.mxu0 %v1062
    %1224 = vmatpush.msra.mxu0 %v1061
    %1225 = vmatpush.msra.mxu0 %v1060
    %1226 = vmatpush.msra.mxu0 %v1059
    %1227 = vmatpush.msra.mxu0 %v1058
    %1228 = vmatpush.msra.mxu0 %v1057
    %1229 = vmatpush.msra.mxu0 %v1056
    %1230 = vmatpush.msra.mxu0 %v1055
    %1231 = vmatpush.msra.mxu0 %v1054
    %1232 = vmatpush.msra.mxu0 %v1053
    %1233 = vmatpush.msra.mxu0 %v1052
    %1234 = vmatmul.f32.gmra.mxu0 %v1121
    %v1235 = vpop.f32.mrf.mxu0
    %v1236 = vadd.f32 0.0, %v1235
    %1237 = vmatmul.f32.gmra.mxu0 %v1112
    %v1238 = vpop.f32.mrf.mxu0
    %v1239 = vadd.f32 0.0, %v1238
    %1240 = vmatmul.f32.gmra.mxu0 %v1114
    %v1241 = vpop.f32.mrf.mxu0
    %v1242 = vadd.f32 0.0, %v1241
    %1243 = vmatmul.f32.gmra.mxu0 %v1116
    %v1244 = vpop.f32.mrf.mxu0
    %v1245 = vadd.f32 0.0, %v1244
    %1246 = vmatmul.f32.gmra.mxu0 %v1149
    %v1247 = vpop.f32.mrf.mxu0
    %v1248 = vadd.f32 0.0, %v1247
    %1249 = vmatmul.f32.gmra.mxu0 %v1140
    %v1250 = vpop.f32.mrf.mxu0
    %v1251 = vadd.f32 0.0, %v1250
    %1252 = vmatmul.f32.gmra.mxu0 %v1142
    %v1253 = vpop.f32.mrf.mxu0
    %v1254 = vadd.f32 0.0, %v1253
    %1255 = vmatmul.f32.gmra.mxu0 %v1144
    %v1256 = vpop.f32.mrf.mxu0
    %v1257 = vadd.f32 0.0, %v1256
    %1258 = vmatmul.f32.gmra.mxu0 %v1177
    %v1259 = vpop.f32.mrf.mxu0
    %v1260 = vadd.f32 0.0, %v1259
    %1261 = vmatmul.f32.gmra.mxu0 %v1168
    %v1262 = vpop.f32.mrf.mxu0
    %v1263 = vadd.f32 0.0, %v1262
    %1264 = vmatmul.f32.gmra.mxu0 %v1170
    %v1265 = vpop.f32.mrf.mxu0
    %v1266 = vadd.f32 0.0, %v1265
    %1267 = vmatmul.f32.gmra.mxu0 %v1172
    %v1268 = vpop.f32.mrf.mxu0
    %v1269 = vadd.f32 0.0, %v1268
    %1270 = vmatmul.f32.gmra.mxu0 %v1205
    %v1271 = vpop.f32.mrf.mxu0
    %v1272 = vadd.f32 0.0, %v1271
    %1273 = vmatmul.f32.gmra.mxu0 %v1196
    %v1274 = vpop.f32.mrf.mxu0
    %v1275 = vadd.f32 0.0, %v1274
    %1276 = vmatmul.f32.gmra.mxu0 %v1198
    %v1277 = vpop.f32.mrf.mxu0
    %v1278 = vadd.f32 0.0, %v1277
    %1279 = vmatmul.f32.gmra.mxu0 %v1200
    %v1280 = vpop.f32.mrf.mxu0
    %v1281 = vadd.f32 0.0, %v1280
    %1282 = vdwg.mxu0
    %1283 = vmatpush.msra.mxu0 %v1083
    %1284 = vmatpush.msra.mxu0 %v1082
    %1285 = vmatpush.msra.mxu0 %v1081
    %1286 = vmatpush.msra.mxu0 %v1080
    %1287 = vmatpush.msra.mxu0 %v1079
    %1288 = vmatpush.msra.mxu0 %v1078
    %1289 = vmatpush.msra.mxu0 %v1077
    %1290 = vmatpush.msra.mxu0 %v1076
    %1291 = vmatpush.msra.mxu0 %v1075
    %1292 = vmatpush.msra.mxu0 %v1074
    %1293 = vmatpush.msra.mxu0 %v1073
    %1294 = vmatpush.msra.mxu0 %v1072
    %1295 = vmatpush.msra.mxu0 %v1071
    %1296 = vmatpush.msra.mxu0 %v1070
    %1297 = vmatpush.msra.mxu0 %v1069
    %1298 = vmatpush.msra.mxu0 %v1068
    %1299 = vmatmul.f32.gmra.mxu0 %v904
    %v1300 = vpop.f32.mrf.mxu0
    %v1301 = vadd.f32 %v1236, %v1300
    %1302 = vmatmul.f32.gmra.mxu0 %v907
    %v1303 = vpop.f32.mrf.mxu0
    %v1304 = vadd.f32 %v1239, %v1303
    %1305 = vmatmul.f32.gmra.mxu0 %v910
    %v1306 = vpop.f32.mrf.mxu0
    %v1307 = vadd.f32 %v1242, %v1306
    %1308 = vmatmul.f32.gmra.mxu0 %v913
    %v1309 = vpop.f32.mrf.mxu0
    %v1310 = vadd.f32 %v1245, %v1309
    %1311 = vmatmul.f32.gmra.mxu0 %v933
    %v1312 = vpop.f32.mrf.mxu0
    %v1313 = vadd.f32 %v1248, %v1312
    %1314 = vmatmul.f32.gmra.mxu0 %v936
    %v1315 = vpop.f32.mrf.mxu0
    %v1316 = vadd.f32 %v1251, %v1315
    %1317 = vmatmul.f32.gmra.mxu0 %v939
    %v1318 = vpop.f32.mrf.mxu0
    %v1319 = vadd.f32 %v1254, %v1318
    %1320 = vmatmul.f32.gmra.mxu0 %v942
    %v1321 = vpop.f32.mrf.mxu0
    %v1322 = vadd.f32 %v1257, %v1321
    %1323 = vmatmul.f32.gmra.mxu0 %v962
    %v1324 = vpop.f32.mrf.mxu0
    %v1325 = vadd.f32 %v1260, %v1324
    %1326 = vmatmul.f32.gmra.mxu0 %v965
    %v1327 = vpop.f32.mrf.mxu0
    %v1328 = vadd.f32 %v1263, %v1327
    %1329 = vmatmul.f32.gmra.mxu0 %v968
    %v1330 = vpop.f32.mrf.mxu0
    %v1331 = vadd.f32 %v1266, %v1330
    %1332 = vmatmul.f32.gmra.mxu0 %v971
    %v1333 = vpop.f32.mrf.mxu0
    %v1334 = vadd.f32 %v1269, %v1333
    %1335 = vmatmul.f32.gmra.mxu0 %v991
    %v1336 = vpop.f32.mrf.mxu0
    %v1337 = vadd.f32 %v1272, %v1336
    %1338 = vmatmul.f32.gmra.mxu0 %v994
    %v1339 = vpop.f32.mrf.mxu0
    %v1340 = vadd.f32 %v1275, %v1339
    %1341 = vmatmul.f32.gmra.mxu0 %v997
    %v1342 = vpop.f32.mrf.mxu0
    %v1343 = vadd.f32 %v1278, %v1342
    %1344 = vmatmul.f32.gmra.mxu0 %v1000
    %v1345 = vpop.f32.mrf.mxu0
    %v1346 = vadd.f32 %v1281, %v1345
    %1347 = vdwg.mxu0
    %1348 = vmatpush.msra.mxu0 %v1099
    %1349 = vmatpush.msra.mxu0 %v1098
    %1350 = vmatpush.msra.mxu0 %v1097
    %1351 = vmatpush.msra.mxu0 %v1096
    %1352 = vmatpush.msra.mxu0 %v1095
    %1353 = vmatpush.msra.mxu0 %v1094
    %1354 = vmatpush.msra.mxu0 %v1093
    %1355 = vmatpush.msra.mxu0 %v1092
    %1356 = vmatpush.msra.mxu0 %v1091
    %1357 = vmatpush.msra.mxu0 %v1090
    %1358 = vmatpush.msra.mxu0 %v1089
    %1359 = vmatpush.msra.mxu0 %v1088
    %1360 = vmatpush.msra.mxu0 %v1087
    %1361 = vmatpush.msra.mxu0 %v1086
    %1362 = vmatpush.msra.mxu0 %v1085
    %1363 = vmatpush.msra.mxu0 %v1084
    %1364 = vmatmul.f32.gmra.mxu0 %v1124
    %v1365 = vpop.f32.mrf.mxu0
    %v1366 = vadd.f32 %v1301, %v1365
    %1367 = vmatmul.f32.gmra.mxu0 %v1126
    %v1368 = vpop.f32.mrf.mxu0
    %v1369 = vadd.f32 %v1304, %v1368
    %1370 = vmatmul.f32.gmra.mxu0 %v1128
    %v1371 = vpop.f32.mrf.mxu0
    %v1372 = vadd.f32 %v1307, %v1371
    %1373 = vmatmul.f32.gmra.mxu0 %v1133
    %v1374 = vpop.f32.mrf.mxu0
    %v1375 = vadd.f32 %v1310, %v1374
    %1376 = vmatmul.f32.gmra.mxu0 %v1152
    %v1377 = vpop.f32.mrf.mxu0
    %v1378 = vadd.f32 %v1313, %v1377
    %1379 = vmatmul.f32.gmra.mxu0 %v1154
    %v1380 = vpop.f32.mrf.mxu0
    %v1381 = vadd.f32 %v1316, %v1380
    %1382 = vmatmul.f32.gmra.mxu0 %v1156
    %v1383 = vpop.f32.mrf.mxu0
    %v1384 = vadd.f32 %v1319, %v1383
    %1385 = vmatmul.f32.gmra.mxu0 %v1161
    %v1386 = vpop.f32.mrf.mxu0
    %v1387 = vadd.f32 %v1322, %v1386
    %1388 = vmatmul.f32.gmra.mxu0 %v1180
    %v1389 = vpop.f32.mrf.mxu0
    %v1390 = vadd.f32 %v1325, %v1389
    %1391 = vmatmul.f32.gmra.mxu0 %v1182
    %v1392 = vpop.f32.mrf.mxu0
    %v1393 = vadd.f32 %v1328, %v1392
    %1394 = vmatmul.f32.gmra.mxu0 %v1184
    %v1395 = vpop.f32.mrf.mxu0
    %v1396 = vadd.f32 %v1331, %v1395
    %1397 = vmatmul.f32.gmra.mxu0 %v1189
    %v1398 = vpop.f32.mrf.mxu0
    %v1399 = vadd.f32 %v1334, %v1398
    %1400 = vmatmul.f32.gmra.mxu0 %v1208
    %v1401 = vpop.f32.mrf.mxu0
    %v1402 = vadd.f32 %v1337, %v1401
    %1403 = vmatmul.f32.gmra.mxu0 %v1210
    %v1404 = vpop.f32.mrf.mxu0
    %v1405 = vadd.f32 %v1340, %v1404
    %1406 = vmatmul.f32.gmra.mxu0 %v1212
    %v1407 = vpop.f32.mrf.mxu0
    %v1408 = vadd.f32 %v1343, %v1407
    %1409 = vmatmul.f32.gmra.mxu0 %v1217
    %v1410 = vpop.f32.mrf.mxu0
    %v1411 = vadd.f32 %v1346, %v1410
    %1412 = vdwg.mxu0
    %v1414 = vperm.slane %v1101, 0
    %v1416 = vmul.f32 %v1366, %v1414
    %v1417 = vmul.f32 %v1369, %v1414
    %v1418 = vmul.f32 %v1372, %v1414
    %v1419 = vmul.f32 %v1375, %v1414
    %v1420 = vmul.f32 %v1378, %v1414
    %v1421 = vmul.f32 %v1381, %v1414
    %v1422 = vmul.f32 %v1384, %v1414
    %v1423 = vmul.f32 %v1387, %v1414
    %v1424 = vmul.f32 %v1390, %v1414
    %v1425 = vmul.f32 %v1393, %v1414
    %v1426 = vmul.f32 %v1396, %v1414
    %v1427 = vmul.f32 %v1399, %v1414
    %v1428 = vmul.f32 %v1402, %v1414
    %v1429 = vmul.f32 %v1405, %v1414
    %v1430 = vmul.f32 %v1408, %v1414
    %v1431 = vmul.f32 %v1411, %v1414
    %v1433 = vperm.slane %v1103, 0
    %v1435 = vadd.f32 %v1416, %v1433
    %v1436 = vadd.f32 %v1417, %v1433
    %v1437 = vadd.f32 %v1418, %v1433
    %v1438 = vadd.f32 %v1419, %v1433
    %v1439 = vadd.f32 %v1420, %v1433
    %v1440 = vadd.f32 %v1421, %v1433
    %v1441 = vadd.f32 %v1422, %v1433
    %v1442 = vadd.f32 %v1423, %v1433
    %v1443 = vadd.f32 %v1424, %v1433
    %v1444 = vadd.f32 %v1425, %v1433
    %v1445 = vadd.f32 %v1426, %v1433
    %v1446 = vadd.f32 %v1427, %v1433
    %v1447 = vadd.f32 %v1428, %v1433
    %v1448 = vadd.f32 %v1429, %v1433
    %v1449 = vadd.f32 %v1430, %v1433
    %v1450 = vadd.f32 %v1431, %v1433
    %vm1451 = vcmp.ge.f32.partialorder %v1435, 0.0
    %vm1452 = vcmp.ge.f32.partialorder %v1436, 0.0
    %vm1453 = vcmp.ge.f32.partialorder %v1437, 0.0
    %vm1454 = vcmp.ge.f32.partialorder %v1438, 0.0
    %vm1455 = vcmp.ge.f32.partialorder %v1439, 0.0
    %vm1456 = vcmp.ge.f32.partialorder %v1440, 0.0
    %vm1457 = vcmp.ge.f32.partialorder %v1441, 0.0
    %vm1458 = vcmp.ge.f32.partialorder %v1442, 0.0
    %vm1459 = vcmp.ge.f32.partialorder %v1443, 0.0
    %vm1460 = vcmp.ge.f32.partialorder %v1444, 0.0
    %vm1461 = vcmp.ge.f32.partialorder %v1445, 0.0
    %vm1462 = vcmp.ge.f32.partialorder %v1446, 0.0
    %vm1463 = vcmp.ge.f32.partialorder %v1447, 0.0
    %vm1464 = vcmp.ge.f32.partialorder %v1448, 0.0
    %vm1465 = vcmp.ge.f32.partialorder %v1449, 0.0
    %vm1466 = vcmp.ge.f32.partialorder %v1450, 0.0
    %v1467 = vmul.f32 %v1435, 0.01
    %v1468 = vmul.f32 %v1436, 0.01
    %v1469 = vmul.f32 %v1437, 0.01
    %v1470 = vmul.f32 %v1438, 0.01
    %v1471 = vmul.f32 %v1439, 0.01
    %v1472 = vmul.f32 %v1440, 0.01
    %v1473 = vmul.f32 %v1441, 0.01
    %v1474 = vmul.f32 %v1442, 0.01
    %v1475 = vmul.f32 %v1443, 0.01
    %v1476 = vmul.f32 %v1444, 0.01
    %v1477 = vmul.f32 %v1445, 0.01
    %v1478 = vmul.f32 %v1446, 0.01
    %v1479 = vmul.f32 %v1447, 0.01
    %v1480 = vmul.f32 %v1448, 0.01
    %v1481 = vmul.f32 %v1449, 0.01
    %v1482 = vmul.f32 %v1450, 0.01
    %v1483 = vsel %vm1451, %v1435, %v1467
    %v1484 = vsel %vm1452, %v1436, %v1468
    %v1485 = vsel %vm1453, %v1437, %v1469
    %v1486 = vsel %vm1454, %v1438, %v1470
    %v1487 = vsel %vm1455, %v1439, %v1471
    %v1488 = vsel %vm1456, %v1440, %v1472
    %v1489 = vsel %vm1457, %v1441, %v1473
    %v1490 = vsel %vm1458, %v1442, %v1474
    %v1491 = vsel %vm1459, %v1443, %v1475
    %v1492 = vsel %vm1460, %v1444, %v1476
    %v1493 = vsel %vm1461, %v1445, %v1477
    %v1494 = vsel %vm1462, %v1446, %v1478
    %v1495 = vsel %vm1463, %v1447, %v1479
    %v1496 = vsel %vm1464, %v1448, %v1480
    %v1497 = vsel %vm1465, %v1449, %v1481
    %v1498 = vsel %vm1466, %v1450, %v1482
    %vm1499 = vcmask 261120
    %v1500 = vsel %vm1499, %v869, 0
    %v1502 = vsel %vm1499, %v870, 0
    %1504 = vmatpush.msra.mxu0 0.0
    %1505 = vmatpush.msra.mxu0 0.0
    %1506 = vmatpush.msra.mxu0 0.0
    %1507 = vmatpush.msra.mxu0 0.0
    %1508 = vmatpush.msra.mxu0 0.0
    %1509 = vmatpush.msra.mxu0 0.0
    %1510 = vmatpush.msra.mxu0 0.0
    %1511 = vmatpush.msra.mxu0 0.0
    %1512 = vmatpush.msra.mxu0 0.0
    %1513 = vmatpush.msra.mxu0 0.0
    %1514 = vmatpush.msra.mxu0 0.0
    %1515 = vmatpush.msra.mxu0 0.0
    %1516 = vmatpush.msra.mxu0 %v1486
    %1517 = vmatpush.msra.mxu0 %v1485
    %1518 = vmatpush.msra.mxu0 %v1484
    %1519 = vmatpush.msra.mxu0 %v1483
    %1520 = vmatmul.f32.gmra.mxu0 %v1500
    %v1521 = vpop.f32.mrf.mxu0
    %v1522 = vadd.f32 0.0, %v1521
    %1523 = vmatmul.f32.gmra.mxu0 %v1502
    %v1524 = vpop.f32.mrf.mxu0
    %v1525 = vadd.f32 0.0, %v1524
    %1526 = vdwg.mxu0
    %1527 = vmatpush.msra.mxu0 0.0
    %1528 = vmatpush.msra.mxu0 0.0
    %1529 = vmatpush.msra.mxu0 0.0
    %1530 = vmatpush.msra.mxu0 0.0
    %1531 = vmatpush.msra.mxu0 0.0
    %1532 = vmatpush.msra.mxu0 0.0
    %1533 = vmatpush.msra.mxu0 0.0
    %1534 = vmatpush.msra.mxu0 0.0
    %1535 = vmatpush.msra.mxu0 0.0
    %1536 = vmatpush.msra.mxu0 0.0
    %1537 = vmatpush.msra.mxu0 0.0
    %1538 = vmatpush.msra.mxu0 0.0
    %1539 = vmatpush.msra.mxu0 %v1490
    %1540 = vmatpush.msra.mxu0 %v1489
    %1541 = vmatpush.msra.mxu0 %v1488
    %1542 = vmatpush.msra.mxu0 %v1487
    %1543 = vmatmul.f32.gmra.mxu0 %v1500
    %v1544 = vpop.f32.mrf.mxu0
    %v1545 = vadd.f32 0.0, %v1544
    %1546 = vmatmul.f32.gmra.mxu0 %v1502
    %v1547 = vpop.f32.mrf.mxu0
    %v1548 = vadd.f32 0.0, %v1547
    %1549 = vdwg.mxu0
    %1550 = vmatpush.msra.mxu0 0.0
    %1551 = vmatpush.msra.mxu0 0.0
    %1552 = vmatpush.msra.mxu0 0.0
    %1553 = vmatpush.msra.mxu0 0.0
    %1554 = vmatpush.msra.mxu0 0.0
    %1555 = vmatpush.msra.mxu0 0.0
    %1556 = vmatpush.msra.mxu0 0.0
    %1557 = vmatpush.msra.mxu0 0.0
    %1558 = vmatpush.msra.mxu0 0.0
    %1559 = vmatpush.msra.mxu0 0.0
    %1560 = vmatpush.msra.mxu0 0.0
    %1561 = vmatpush.msra.mxu0 0.0
    %1562 = vmatpush.msra.mxu0 %v1494
    %1563 = vmatpush.msra.mxu0 %v1493
    %1564 = vmatpush.msra.mxu0 %v1492
    %1565 = vmatpush.msra.mxu0 %v1491
    %1566 = vmatmul.f32.gmra.mxu0 %v1500
    %v1567 = vpop.f32.mrf.mxu0
    %v1568 = vadd.f32 0.0, %v1567
    %1569 = vmatmul.f32.gmra.mxu0 %v1502
    %v1570 = vpop.f32.mrf.mxu0
    %v1571 = vadd.f32 0.0, %v1570
    %1572 = vdwg.mxu0
    %1573 = vmatpush.msra.mxu0 0.0
    %1574 = vmatpush.msra.mxu0 0.0
    %1575 = vmatpush.msra.mxu0 0.0
    %1576 = vmatpush.msra.mxu0 0.0
    %1577 = vmatpush.msra.mxu0 0.0
    %1578 = vmatpush.msra.mxu0 0.0
    %1579 = vmatpush.msra.mxu0 0.0
    %1580 = vmatpush.msra.mxu0 0.0
    %1581 = vmatpush.msra.mxu0 0.0
    %1582 = vmatpush.msra.mxu0 0.0
    %1583 = vmatpush.msra.mxu0 0.0
    %1584 = vmatpush.msra.mxu0 0.0
    %1585 = vmatpush.msra.mxu0 %v1498
    %1586 = vmatpush.msra.mxu0 %v1497
    %1587 = vmatpush.msra.mxu0 %v1496
    %1588 = vmatpush.msra.mxu0 %v1495
    %1589 = vmatmul.f32.gmra.mxu0 %v1500
    %v1590 = vpop.f32.mrf.mxu0
    %v1591 = vadd.f32 0.0, %v1590
    %1592 = vmatmul.f32.gmra.mxu0 %v1502
    %v1593 = vpop.f32.mrf.mxu0
    %v1594 = vadd.f32 0.0, %v1593
    %1595 = vdwg.mxu0
    %v1596 = vsub.f32 %v1522, %v1568
    %v1597 = vsub.f32 %v1525, %v1571
    %v1599 = vperm.slane %v1105, 0
    %v1601 = vmul.f32 %v1596, %v1599
    %v1602 = vmul.f32 %v1597, %v1599
    %v1603 = vand.u32 2147483647, %v1601
    %v1604 = vand.u32 2147483647, %v1602
    %v1605 = vadd.f32 %v1603, %v1604
    %v1606 = vrot.slane %v1605, 4
    %v1607 = vadd.f32 %v1605, %v1606
    %v1608 = vrot.slane %v1607, 2
    %v1609 = vadd.f32 %v1607, %v1608
    %v1610 = vrot.slane %v1609, 1
    %v1611 = vadd.f32 %v1609, %v1610
    %v1612 = vmul.f32 %v1611, 0.001953125
    %v1613 = vadd.f32 %v1027, %v1612
    %v1614 = vsub.f32 %v1545, %v1591
    %v1615 = vsub.f32 %v1548, %v1594
    %v1616 = vmul.f32 %v1614, %v1599
    %v1617 = vmul.f32 %v1615, %v1599
    %v1618 = vand.u32 2147483647, %v1616
    %v1619 = vand.u32 2147483647, %v1617
    %v1620 = vadd.f32 %v1618, %v1619
    %v1621 = vrot.slane %v1620, 4
    %v1622 = vadd.f32 %v1620, %v1621
    %v1623 = vrot.slane %v1622, 2
    %v1624 = vadd.f32 %v1622, %v1623
    %v1625 = vrot.slane %v1624, 1
    %v1626 = vadd.f32 %v1624, %v1625
    %v1627 = vmul.f32 %v1626, 0.001953125
    %v1628 = vadd.f32 %v1050, %v1627
    %s1629 = scalar_lea.vmem [#allocation2], 768
    %v1630 = vld [vmem:[%s1629] sm:$0xff]
    %v1631 = vld [vmem:[%s1629 + $0x8] sm:$0xff]
    %v1632 = vld [vmem:[%s1629 + $0x10] sm:$0xff]
    %v1633 = vld [vmem:[%s1629 + $0x18] sm:$0xff]
    %v1634 = vld [vmem:[%s1629 + $0x20] sm:$0xff]
    %v1635 = vld [vmem:[%s1629 + $0x28] sm:$0xff]
    %v1636 = vld [vmem:[%s1629 + $0x30] sm:$0xff]
    %v1637 = vld [vmem:[%s1629 + $0x38] sm:$0xff]
    %v1638 = vld [vmem:[%s1629 + $0x40] sm:$0xff]
    %v1639 = vld [vmem:[%s1629 + $0x48] sm:$0xff]
    %v1640 = vld [vmem:[%s1629 + $0x50] sm:$0xff]
    %v1641 = vld [vmem:[%s1629 + $0x58] sm:$0xff]
    %v1642 = vld [vmem:[%s1629 + $0x60] sm:$0xff]
    %v1643 = vld [vmem:[%s1629 + $0x68] sm:$0xff]
    %v1644 = vld [vmem:[%s1629 + $0x70] sm:$0xff]
    %v1645 = vld [vmem:[%s1629 + $0x78] sm:$0xff]
    %v1646 = vld [vmem:[%s1629 + $0x80] sm:$0xff]
    %v1647 = vld [vmem:[%s1629 + $0x88] sm:$0xff]
    %v1648 = vld [vmem:[%s1629 + $0x90] sm:$0xff]
    %v1649 = vld [vmem:[%s1629 + $0x98] sm:$0xff]
    %v1650 = vld [vmem:[%s1629 + $0xa0] sm:$0xff]
    %v1651 = vld [vmem:[%s1629 + $0xa8] sm:$0xff]
    %v1652 = vld [vmem:[%s1629 + $0xb0] sm:$0xff]
    %v1653 = vld [vmem:[%s1629 + $0xb8] sm:$0xff]
    %v1654 = vld [vmem:[%s1629 + $0xc0] sm:$0xff]
    %v1655 = vld [vmem:[%s1629 + $0xc8] sm:$0xff]
    %v1656 = vld [vmem:[%s1629 + $0xd0] sm:$0xff]
    %v1657 = vld [vmem:[%s1629 + $0xd8] sm:$0xff]
    %v1658 = vld [vmem:[%s1629 + $0xe0] sm:$0xff]
    %v1659 = vld [vmem:[%s1629 + $0xe8] sm:$0xff]
    %v1660 = vld [vmem:[%s1629 + $0xf0] sm:$0xff]
    %v1661 = vld [vmem:[%s1629 + $0xf8] sm:$0xff]
    %v1662 = vld [vmem:[%s1629 + $0x100] sm:$0xff]
    %v1663 = vld [vmem:[%s1629 + $0x108] sm:$0xff]
    %v1664 = vld [vmem:[%s1629 + $0x110] sm:$0xff]
    %v1665 = vld [vmem:[%s1629 + $0x118] sm:$0xff]
    %v1666 = vld [vmem:[%s1629 + $0x120] sm:$0xff]
    %v1667 = vld [vmem:[%s1629 + $0x128] sm:$0xff]
    %v1668 = vld [vmem:[%s1629 + $0x130] sm:$0xff]
    %v1669 = vld [vmem:[%s1629 + $0x138] sm:$0xff]
    %v1670 = vld [vmem:[%s1629 + $0x140] sm:$0xff]
    %v1671 = vld [vmem:[%s1629 + $0x148] sm:$0xff]
    %v1672 = vld [vmem:[%s1629 + $0x150] sm:$0xff]
    %v1673 = vld [vmem:[%s1629 + $0x158] sm:$0xff]
    %v1674 = vld [vmem:[%s1629 + $0x160] sm:$0xff]
    %v1675 = vld [vmem:[%s1629 + $0x168] sm:$0xff]
    %v1676 = vld [vmem:[%s1629 + $0x170] sm:$0xff]
    %v1677 = vld [vmem:[%s1629 + $0x178] sm:$0xff]
    %s1678 = scalar_lea.vmem %s2, 2
    %v1679 = vld [vmem:[%s1678] sm:$0x1]
    %s1680 = scalar_lea.vmem %s3, 2
    %v1681 = vld [vmem:[%s1680] sm:$0x1]
    %s1682 = scalar_lea.vmem %s4, 2
    %v1683 = vld [vmem:[%s1682] sm:$0x1]
    %v1686 = vrot.slane %v1522, 7
    %v1687 = vrot.slane %v1525, 7
    %v1688 = vsel %vm127, %v1686, %v1687
    %v1691 = vsel %vm127, 0.0, %v1686
    %v1692 = vrot.slane %v1522, 1
    %v1693 = vrot.slane %v1525, 1
    %v1694 = vsel %vm152, %v1692, %v1693
    %v1697 = vsel %vm152, %v1693, 0.0
    %v1700 = vrot.slane %v1545, 7
    %v1701 = vrot.slane %v1548, 7
    %v1702 = vsel %vm127, %v1700, %v1701
    %v1705 = vsel %vm127, 0.0, %v1700
    %v1706 = vrot.slane %v1545, 1
    %v1707 = vrot.slane %v1548, 1
    %v1708 = vsel %vm152, %v1706, %v1707
    %v1711 = vsel %vm152, %v1707, 0.0
    %v1714 = vrot.slane %v1568, 7
    %v1715 = vrot.slane %v1571, 7
    %v1716 = vsel %vm127, %v1714, %v1715
    %v1719 = vsel %vm127, 0.0, %v1714
    %v1720 = vrot.slane %v1568, 1
    %v1721 = vrot.slane %v1571, 1
    %v1722 = vsel %vm152, %v1720, %v1721
    %v1725 = vsel %vm152, %v1721, 0.0
    %v1728 = vrot.slane %v1591, 7
    %v1729 = vrot.slane %v1594, 7
    %v1730 = vsel %vm127, %v1728, %v1729
    %v1733 = vsel %vm127, 0.0, %v1728
    %v1734 = vrot.slane %v1591, 1
    %v1735 = vrot.slane %v1594, 1
    %v1736 = vsel %vm152, %v1734, %v1735
    %v1739 = vsel %vm152, %v1735, 0.0
    %1740 = vmatpush.msra.mxu0 %v1645
    %1741 = vmatpush.msra.mxu0 %v1644
    %1742 = vmatpush.msra.mxu0 %v1643
    %1743 = vmatpush.msra.mxu0 %v1642
    %1744 = vmatpush.msra.mxu0 %v1641
    %1745 = vmatpush.msra.mxu0 %v1640
    %1746 = vmatpush.msra.mxu0 %v1639
    %1747 = vmatpush.msra.mxu0 %v1638
    %1748 = vmatpush.msra.mxu0 %v1637
    %1749 = vmatpush.msra.mxu0 %v1636
    %1750 = vmatpush.msra.mxu0 %v1635
    %1751 = vmatpush.msra.mxu0 %v1634
    %1752 = vmatpush.msra.mxu0 %v1633
    %1753 = vmatpush.msra.mxu0 %v1632
    %1754 = vmatpush.msra.mxu0 %v1631
    %1755 = vmatpush.msra.mxu0 %v1630
    %1756 = vmatmul.f32.gmra.mxu0 %v1691
    %v1757 = vpop.f32.mrf.mxu0
    %v1758 = vadd.f32 0.0, %v1757
    %1759 = vmatmul.f32.gmra.mxu0 %v1688
    %v1760 = vpop.f32.mrf.mxu0
    %v1761 = vadd.f32 0.0, %v1760
    %1762 = vmatmul.f32.gmra.mxu0 %v1705
    %v1763 = vpop.f32.mrf.mxu0
    %v1764 = vadd.f32 0.0, %v1763
    %1765 = vmatmul.f32.gmra.mxu0 %v1702
    %v1766 = vpop.f32.mrf.mxu0
    %v1767 = vadd.f32 0.0, %v1766
    %1768 = vmatmul.f32.gmra.mxu0 %v1719
    %v1769 = vpop.f32.mrf.mxu0
    %v1770 = vadd.f32 0.0, %v1769
    %1771 = vmatmul.f32.gmra.mxu0 %v1716
    %v1772 = vpop.f32.mrf.mxu0
    %v1773 = vadd.f32 0.0, %v1772
    %1774 = vmatmul.f32.gmra.mxu0 %v1733
    %v1775 = vpop.f32.mrf.mxu0
    %v1776 = vadd.f32 0.0, %v1775
    %1777 = vmatmul.f32.gmra.mxu0 %v1730
    %v1778 = vpop.f32.mrf.mxu0
    %v1779 = vadd.f32 0.0, %v1778
    %1780 = vdwg.mxu0
    %1781 = vmatpush.msra.mxu0 %v1661
    %1782 = vmatpush.msra.mxu0 %v1660
    %1783 = vmatpush.msra.mxu0 %v1659
    %1784 = vmatpush.msra.mxu0 %v1658
    %1785 = vmatpush.msra.mxu0 %v1657
    %1786 = vmatpush.msra.mxu0 %v1656
    %1787 = vmatpush.msra.mxu0 %v1655
    %1788 = vmatpush.msra.mxu0 %v1654
    %1789 = vmatpush.msra.mxu0 %v1653
    %1790 = vmatpush.msra.mxu0 %v1652
    %1791 = vmatpush.msra.mxu0 %v1651
    %1792 = vmatpush.msra.mxu0 %v1650
    %1793 = vmatpush.msra.mxu0 %v1649
    %1794 = vmatpush.msra.mxu0 %v1648
    %1795 = vmatpush.msra.mxu0 %v1647
    %1796 = vmatpush.msra.mxu0 %v1646
    %1797 = vmatmul.f32.gmra.mxu0 %v1522
    %v1798 = vpop.f32.mrf.mxu0
    %v1799 = vadd.f32 %v1758, %v1798
    %1800 = vmatmul.f32.gmra.mxu0 %v1525
    %v1801 = vpop.f32.mrf.mxu0
    %v1802 = vadd.f32 %v1761, %v1801
    %1803 = vmatmul.f32.gmra.mxu0 %v1545
    %v1804 = vpop.f32.mrf.mxu0
    %v1805 = vadd.f32 %v1764, %v1804
    %1806 = vmatmul.f32.gmra.mxu0 %v1548
    %v1807 = vpop.f32.mrf.mxu0
    %v1808 = vadd.f32 %v1767, %v1807
    %1809 = vmatmul.f32.gmra.mxu0 %v1568
    %v1810 = vpop.f32.mrf.mxu0
    %v1811 = vadd.f32 %v1770, %v1810
    %1812 = vmatmul.f32.gmra.mxu0 %v1571
    %v1813 = vpop.f32.mrf.mxu0
    %v1814 = vadd.f32 %v1773, %v1813
    %1815 = vmatmul.f32.gmra.mxu0 %v1591
    %v1816 = vpop.f32.mrf.mxu0
    %v1817 = vadd.f32 %v1776, %v1816
    %1818 = vmatmul.f32.gmra.mxu0 %v1594
    %v1819 = vpop.f32.mrf.mxu0
    %v1820 = vadd.f32 %v1779, %v1819
    %1821 = vdwg.mxu0
    %1822 = vmatpush.msra.mxu0 %v1677
    %1823 = vmatpush.msra.mxu0 %v1676
    %1824 = vmatpush.msra.mxu0 %v1675
    %1825 = vmatpush.msra.mxu0 %v1674
    %1826 = vmatpush.msra.mxu0 %v1673
    %1827 = vmatpush.msra.mxu0 %v1672
    %1828 = vmatpush.msra.mxu0 %v1671
    %1829 = vmatpush.msra.mxu0 %v1670
    %1830 = vmatpush.msra.mxu0 %v1669
    %1831 = vmatpush.msra.mxu0 %v1668
    %1832 = vmatpush.msra.mxu0 %v1667
    %1833 = vmatpush.msra.mxu0 %v1666
    %1834 = vmatpush.msra.mxu0 %v1665
    %1835 = vmatpush.msra.mxu0 %v1664
    %1836 = vmatpush.msra.mxu0 %v1663
    %1837 = vmatpush.msra.mxu0 %v1662
    %1838 = vmatmul.f32.gmra.mxu0 %v1694
    %v1839 = vpop.f32.mrf.mxu0
    %v1840 = vadd.f32 %v1799, %v1839
    %1841 = vmatmul.f32.gmra.mxu0 %v1697
    %v1842 = vpop.f32.mrf.mxu0
    %v1843 = vadd.f32 %v1802, %v1842
    %1844 = vmatmul.f32.gmra.mxu0 %v1708
    %v1845 = vpop.f32.mrf.mxu0
    %v1846 = vadd.f32 %v1805, %v1845
    %1847 = vmatmul.f32.gmra.mxu0 %v1711
    %v1848 = vpop.f32.mrf.mxu0
    %v1849 = vadd.f32 %v1808, %v1848
    %1850 = vmatmul.f32.gmra.mxu0 %v1722
    %v1851 = vpop.f32.mrf.mxu0
    %v1852 = vadd.f32 %v1811, %v1851
    %1853 = vmatmul.f32.gmra.mxu0 %v1725
    %v1854 = vpop.f32.mrf.mxu0
    %v1855 = vadd.f32 %v1814, %v1854
    %1856 = vmatmul.f32.gmra.mxu0 %v1736
    %v1857 = vpop.f32.mrf.mxu0
    %v1858 = vadd.f32 %v1817, %v1857
    %1859 = vmatmul.f32.gmra.mxu0 %v1739
    %v1860 = vpop.f32.mrf.mxu0
    %v1861 = vadd.f32 %v1820, %v1860
    %1862 = vdwg.mxu0
    %v1864 = vperm.slane %v1679, 0
    %v1866 = vmul.f32 %v1840, %v1864
    %v1867 = vmul.f32 %v1843, %v1864
    %v1868 = vmul.f32 %v1846, %v1864
    %v1869 = vmul.f32 %v1849, %v1864
    %v1870 = vmul.f32 %v1852, %v1864
    %v1871 = vmul.f32 %v1855, %v1864
    %v1872 = vmul.f32 %v1858, %v1864
    %v1873 = vmul.f32 %v1861, %v1864
    %v1875 = vperm.slane %v1681, 0
    %v1877 = vadd.f32 %v1866, %v1875
    %v1878 = vadd.f32 %v1867, %v1875
    %v1879 = vadd.f32 %v1868, %v1875
    %v1880 = vadd.f32 %v1869, %v1875
    %v1881 = vadd.f32 %v1870, %v1875
    %v1882 = vadd.f32 %v1871, %v1875
    %v1883 = vadd.f32 %v1872, %v1875
    %v1884 = vadd.f32 %v1873, %v1875
    %vm1885 = vcmp.ge.f32.partialorder %v1877, 0.0
    %vm1886 = vcmp.ge.f32.partialorder %v1878, 0.0
    %vm1887 = vcmp.ge.f32.partialorder %v1879, 0.0
    %vm1888 = vcmp.ge.f32.partialorder %v1880, 0.0
    %vm1889 = vcmp.ge.f32.partialorder %v1881, 0.0
    %vm1890 = vcmp.ge.f32.partialorder %v1882, 0.0
    %vm1891 = vcmp.ge.f32.partialorder %v1883, 0.0
    %vm1892 = vcmp.ge.f32.partialorder %v1884, 0.0
    %v1893 = vmul.f32 %v1877, 0.01
    %v1894 = vmul.f32 %v1878, 0.01
    %v1895 = vmul.f32 %v1879, 0.01
    %v1896 = vmul.f32 %v1880, 0.01
    %v1897 = vmul.f32 %v1881, 0.01
    %v1898 = vmul.f32 %v1882, 0.01
    %v1899 = vmul.f32 %v1883, 0.01
    %v1900 = vmul.f32 %v1884, 0.01
    %v1901 = vsel %vm1885, %v1877, %v1893
    %v1902 = vsel %vm1886, %v1878, %v1894
    %v1903 = vsel %vm1887, %v1879, %v1895
    %v1904 = vsel %vm1888, %v1880, %v1896
    %v1905 = vsel %vm1889, %v1881, %v1897
    %v1906 = vsel %vm1890, %v1882, %v1898
    %v1907 = vsel %vm1891, %v1883, %v1899
    %v1908 = vsel %vm1892, %v1884, %v1900
    %vm1909 = vcmask 130048
    %v1910 = vsel %vm1909, %v869, 0
    %1912 = vmatpush.msra.mxu0 0.0
    %1913 = vmatpush.msra.mxu0 0.0
    %1914 = vmatpush.msra.mxu0 0.0
    %1915 = vmatpush.msra.mxu0 0.0
    %1916 = vmatpush.msra.mxu0 0.0
    %1917 = vmatpush.msra.mxu0 0.0
    %1918 = vmatpush.msra.mxu0 0.0
    %1919 = vmatpush.msra.mxu0 0.0
    %1920 = vmatpush.msra.mxu0 0.0
    %1921 = vmatpush.msra.mxu0 0.0
    %1922 = vmatpush.msra.mxu0 0.0
    %1923 = vmatpush.msra.mxu0 0.0
    %1924 = vmatpush.msra.mxu0 0.0
    %1925 = vmatpush.msra.mxu0 0.0
    %1926 = vmatpush.msra.mxu0 %v1902
    %1927 = vmatpush.msra.mxu0 %v1901
    %1928 = vmatmul.f32.gmra.mxu0 %v1910
    %v1929 = vpop.f32.mrf.mxu0
    %v1930 = vadd.f32 0.0, %v1929
    %1931 = vdwg.mxu0
    %1932 = vmatpush.msra.mxu0 0.0
    %1933 = vmatpush.msra.mxu0 0.0
    %1934 = vmatpush.msra.mxu0 0.0
    %1935 = vmatpush.msra.mxu0 0.0
    %1936 = vmatpush.msra.mxu0 0.0
    %1937 = vmatpush.msra.mxu0 0.0
    %1938 = vmatpush.msra.mxu0 0.0
    %1939 = vmatpush.msra.mxu0 0.0
    %1940 = vmatpush.msra.mxu0 0.0
    %1941 = vmatpush.msra.mxu0 0.0
    %1942 = vmatpush.msra.mxu0 0.0
    %1943 = vmatpush.msra.mxu0 0.0
    %1944 = vmatpush.msra.mxu0 0.0
    %1945 = vmatpush.msra.mxu0 0.0
    %1946 = vmatpush.msra.mxu0 %v1904
    %1947 = vmatpush.msra.mxu0 %v1903
    %1948 = vmatmul.f32.gmra.mxu0 %v1910
    %v1949 = vpop.f32.mrf.mxu0
    %v1950 = vadd.f32 0.0, %v1949
    %1951 = vdwg.mxu0
    %1952 = vmatpush.msra.mxu0 0.0
    %1953 = vmatpush.msra.mxu0 0.0
    %1954 = vmatpush.msra.mxu0 0.0
    %1955 = vmatpush.msra.mxu0 0.0
    %1956 = vmatpush.msra.mxu0 0.0
    %1957 = vmatpush.msra.mxu0 0.0
    %1958 = vmatpush.msra.mxu0 0.0
    %1959 = vmatpush.msra.mxu0 0.0
    %1960 = vmatpush.msra.mxu0 0.0
    %1961 = vmatpush.msra.mxu0 0.0
    %1962 = vmatpush.msra.mxu0 0.0
    %1963 = vmatpush.msra.mxu0 0.0
    %1964 = vmatpush.msra.mxu0 0.0
    %1965 = vmatpush.msra.mxu0 0.0
    %1966 = vmatpush.msra.mxu0 %v1906
    %1967 = vmatpush.msra.mxu0 %v1905
    %1968 = vmatmul.f32.gmra.mxu0 %v1910
    %v1969 = vpop.f32.mrf.mxu0
    %v1970 = vadd.f32 0.0, %v1969
    %1971 = vdwg.mxu0
    %1972 = vmatpush.msra.mxu0 0.0
    %1973 = vmatpush.msra.mxu0 0.0
    %1974 = vmatpush.msra.mxu0 0.0
    %1975 = vmatpush.msra.mxu0 0.0
    %1976 = vmatpush.msra.mxu0 0.0
    %1977 = vmatpush.msra.mxu0 0.0
    %1978 = vmatpush.msra.mxu0 0.0
    %1979 = vmatpush.msra.mxu0 0.0
    %1980 = vmatpush.msra.mxu0 0.0
    %1981 = vmatpush.msra.mxu0 0.0
    %1982 = vmatpush.msra.mxu0 0.0
    %1983 = vmatpush.msra.mxu0 0.0
    %1984 = vmatpush.msra.mxu0 0.0
    %1985 = vmatpush.msra.mxu0 0.0
    %1986 = vmatpush.msra.mxu0 %v1908
    %1987 = vmatpush.msra.mxu0 %v1907
    %1988 = vmatmul.f32.gmra.mxu0 %v1910
    %v1989 = vpop.f32.mrf.mxu0
    %v1990 = vadd.f32 0.0, %v1989
    %1991 = vdwg.mxu0
    %v1992 = vsub.f32 %v1930, %v1970
    %v1994 = vperm.slane %v1683, 0
    %v1996 = vmul.f32 %v1992, %v1994
    %v1997 = vand.u32 2147483647, %v1996
    %v1998 = vrot.slane %v1997, 4
    %v1999 = vadd.f32 %v1997, %v1998
    %v2000 = vrot.slane %v1999, 2
    %v2001 = vadd.f32 %v1999, %v2000
    %v2002 = vrot.slane %v2001, 1
    %v2003 = vadd.f32 %v2001, %v2002
    %v2004 = vmul.f32 %v2003, 0.00390625
    %v2005 = vadd.f32 %v1613, %v2004
    %v2006 = vsub.f32 %v1950, %v1990
    %v2007 = vmul.f32 %v2006, %v1994
    %v2008 = vand.u32 2147483647, %v2007
    %v2009 = vrot.slane %v2008, 4
    %v2010 = vadd.f32 %v2008, %v2009
    %v2011 = vrot.slane %v2010, 2
    %v2012 = vadd.f32 %v2010, %v2011
    %v2013 = vrot.slane %v2012, 1
    %v2014 = vadd.f32 %v2012, %v2013
    %v2015 = vmul.f32 %v2014, 0.00390625
    %v2016 = vadd.f32 %v1628, %v2015
    %s2017 = scalar_lea.vmem [#allocation2], 1152
    %v2018 = vld [vmem:[%s2017] sm:$0xff]
    %v2019 = vld [vmem:[%s2017 + $0x8] sm:$0xff]
    %v2020 = vld [vmem:[%s2017 + $0x10] sm:$0xff]
    %v2021 = vld [vmem:[%s2017 + $0x18] sm:$0xff]
    %v2022 = vld [vmem:[%s2017 + $0x20] sm:$0xff]
    %v2023 = vld [vmem:[%s2017 + $0x28] sm:$0xff]
    %v2024 = vld [vmem:[%s2017 + $0x30] sm:$0xff]
    %v2025 = vld [vmem:[%s2017 + $0x38] sm:$0xff]
    %v2026 = vld [vmem:[%s2017 + $0x40] sm:$0xff]
    %v2027 = vld [vmem:[%s2017 + $0x48] sm:$0xff]
    %v2028 = vld [vmem:[%s2017 + $0x50] sm:$0xff]
    %v2029 = vld [vmem:[%s2017 + $0x58] sm:$0xff]
    %v2030 = vld [vmem:[%s2017 + $0x60] sm:$0xff]
    %v2031 = vld [vmem:[%s2017 + $0x68] sm:$0xff]
    %v2032 = vld [vmem:[%s2017 + $0x70] sm:$0xff]
    %v2033 = vld [vmem:[%s2017 + $0x78] sm:$0xff]
    %v2034 = vld [vmem:[%s2017 + $0x80] sm:$0xff]
    %v2035 = vld [vmem:[%s2017 + $0x88] sm:$0xff]
    %v2036 = vld [vmem:[%s2017 + $0x90] sm:$0xff]
    %v2037 = vld [vmem:[%s2017 + $0x98] sm:$0xff]
    %v2038 = vld [vmem:[%s2017 + $0xa0] sm:$0xff]
    %v2039 = vld [vmem:[%s2017 + $0xa8] sm:$0xff]
    %v2040 = vld [vmem:[%s2017 + $0xb0] sm:$0xff]
    %v2041 = vld [vmem:[%s2017 + $0xb8] sm:$0xff]
    %v2042 = vld [vmem:[%s2017 + $0xc0] sm:$0xff]
    %v2043 = vld [vmem:[%s2017 + $0xc8] sm:$0xff]
    %v2044 = vld [vmem:[%s2017 + $0xd0] sm:$0xff]
    %v2045 = vld [vmem:[%s2017 + $0xd8] sm:$0xff]
    %v2046 = vld [vmem:[%s2017 + $0xe0] sm:$0xff]
    %v2047 = vld [vmem:[%s2017 + $0xe8] sm:$0xff]
    %v2048 = vld [vmem:[%s2017 + $0xf0] sm:$0xff]
    %v2049 = vld [vmem:[%s2017 + $0xf8] sm:$0xff]
    %v2050 = vld [vmem:[%s2017 + $0x100] sm:$0xff]
    %v2051 = vld [vmem:[%s2017 + $0x108] sm:$0xff]
    %v2052 = vld [vmem:[%s2017 + $0x110] sm:$0xff]
    %v2053 = vld [vmem:[%s2017 + $0x118] sm:$0xff]
    %v2054 = vld [vmem:[%s2017 + $0x120] sm:$0xff]
    %v2055 = vld [vmem:[%s2017 + $0x128] sm:$0xff]
    %v2056 = vld [vmem:[%s2017 + $0x130] sm:$0xff]
    %v2057 = vld [vmem:[%s2017 + $0x138] sm:$0xff]
    %v2058 = vld [vmem:[%s2017 + $0x140] sm:$0xff]
    %v2059 = vld [vmem:[%s2017 + $0x148] sm:$0xff]
    %v2060 = vld [vmem:[%s2017 + $0x150] sm:$0xff]
    %v2061 = vld [vmem:[%s2017 + $0x158] sm:$0xff]
    %v2062 = vld [vmem:[%s2017 + $0x160] sm:$0xff]
    %v2063 = vld [vmem:[%s2017 + $0x168] sm:$0xff]
    %v2064 = vld [vmem:[%s2017 + $0x170] sm:$0xff]
    %v2065 = vld [vmem:[%s2017 + $0x178] sm:$0xff]
    %s2066 = scalar_lea.vmem %s2, 3
    %v2067 = vld [vmem:[%s2066] sm:$0x1]
    %s2068 = scalar_lea.vmem %s3, 3
    %v2069 = vld [vmem:[%s2068] sm:$0x1]
    %s2070 = scalar_lea.vmem %s4, 3
    %v2071 = vld [vmem:[%s2070] sm:$0x1]
    %v2073 = vrot.slane %v1930, 7
    %v2075 = vsel %vm127, 0.0, %v2073
    %v2076 = vrot.slane %v1930, 1
    %v2078 = vsel %vm152, %v2076, 0.0
    %v2080 = vrot.slane %v1950, 7
    %v2082 = vsel %vm127, 0.0, %v2080
    %v2083 = vrot.slane %v1950, 1
    %v2085 = vsel %vm152, %v2083, 0.0
    %v2087 = vrot.slane %v1970, 7
    %v2089 = vsel %vm127, 0.0, %v2087
    %v2090 = vrot.slane %v1970, 1
    %v2092 = vsel %vm152, %v2090, 0.0
    %v2094 = vrot.slane %v1990, 7
    %v2096 = vsel %vm127, 0.0, %v2094
    %v2097 = vrot.slane %v1990, 1
    %v2099 = vsel %vm152, %v2097, 0.0
    %2100 = vmatpush.msra.mxu0 %v2033
    %2101 = vmatpush.msra.mxu0 %v2032
    %2102 = vmatpush.msra.mxu0 %v2031
    %2103 = vmatpush.msra.mxu0 %v2030
    %2104 = vmatpush.msra.mxu0 %v2029
    %2105 = vmatpush.msra.mxu0 %v2028
    %2106 = vmatpush.msra.mxu0 %v2027
    %2107 = vmatpush.msra.mxu0 %v2026
    %2108 = vmatpush.msra.mxu0 %v2025
    %2109 = vmatpush.msra.mxu0 %v2024
    %2110 = vmatpush.msra.mxu0 %v2023
    %2111 = vmatpush.msra.mxu0 %v2022
    %2112 = vmatpush.msra.mxu0 %v2021
    %2113 = vmatpush.msra.mxu0 %v2020
    %2114 = vmatpush.msra.mxu0 %v2019
    %2115 = vmatpush.msra.mxu0 %v2018
    %2116 = vmatmul.f32.gmra.mxu0 %v2075
    %v2117 = vpop.f32.mrf.mxu0
    %v2118 = vadd.f32 0.0, %v2117
    %2119 = vmatmul.f32.gmra.mxu0 %v2082
    %v2120 = vpop.f32.mrf.mxu0
    %v2121 = vadd.f32 0.0, %v2120
    %2122 = vmatmul.f32.gmra.mxu0 %v2089
    %v2123 = vpop.f32.mrf.mxu0
    %v2124 = vadd.f32 0.0, %v2123
    %2125 = vmatmul.f32.gmra.mxu0 %v2096
    %v2126 = vpop.f32.mrf.mxu0
    %v2127 = vadd.f32 0.0, %v2126
    %2128 = vdwg.mxu0
    %2129 = vmatpush.msra.mxu0 %v2049
    %2130 = vmatpush.msra.mxu0 %v2048
    %2131 = vmatpush.msra.mxu0 %v2047
    %2132 = vmatpush.msra.mxu0 %v2046
    %2133 = vmatpush.msra.mxu0 %v2045
    %2134 = vmatpush.msra.mxu0 %v2044
    %2135 = vmatpush.msra.mxu0 %v2043
    %2136 = vmatpush.msra.mxu0 %v2042
    %2137 = vmatpush.msra.mxu0 %v2041
    %2138 = vmatpush.msra.mxu0 %v2040
    %2139 = vmatpush.msra.mxu0 %v2039
    %2140 = vmatpush.msra.mxu0 %v2038
    %2141 = vmatpush.msra.mxu0 %v2037
    %2142 = vmatpush.msra.mxu0 %v2036
    %2143 = vmatpush.msra.mxu0 %v2035
    %2144 = vmatpush.msra.mxu0 %v2034
    %2145 = vmatmul.f32.gmra.mxu0 %v1930
    %v2146 = vpop.f32.mrf.mxu0
    %v2147 = vadd.f32 %v2118, %v2146
    %2148 = vmatmul.f32.gmra.mxu0 %v1950
    %v2149 = vpop.f32.mrf.mxu0
    %v2150 = vadd.f32 %v2121, %v2149
    %2151 = vmatmul.f32.gmra.mxu0 %v1970
    %v2152 = vpop.f32.mrf.mxu0
    %v2153 = vadd.f32 %v2124, %v2152
    %2154 = vmatmul.f32.gmra.mxu0 %v1990
    %v2155 = vpop.f32.mrf.mxu0
    %v2156 = vadd.f32 %v2127, %v2155
    %2157 = vdwg.mxu0
    %2158 = vmatpush.msra.mxu0 %v2065
    %2159 = vmatpush.msra.mxu0 %v2064
    %2160 = vmatpush.msra.mxu0 %v2063
    %2161 = vmatpush.msra.mxu0 %v2062
    %2162 = vmatpush.msra.mxu0 %v2061
    %2163 = vmatpush.msra.mxu0 %v2060
    %2164 = vmatpush.msra.mxu0 %v2059
    %2165 = vmatpush.msra.mxu0 %v2058
    %2166 = vmatpush.msra.mxu0 %v2057
    %2167 = vmatpush.msra.mxu0 %v2056
    %2168 = vmatpush.msra.mxu0 %v2055
    %2169 = vmatpush.msra.mxu0 %v2054
    %2170 = vmatpush.msra.mxu0 %v2053
    %2171 = vmatpush.msra.mxu0 %v2052
    %2172 = vmatpush.msra.mxu0 %v2051
    %2173 = vmatpush.msra.mxu0 %v2050
    %2174 = vmatmul.f32.gmra.mxu0 %v2078
    %v2175 = vpop.f32.mrf.mxu0
    %v2176 = vadd.f32 %v2147, %v2175
    %2177 = vmatmul.f32.gmra.mxu0 %v2085
    %v2178 = vpop.f32.mrf.mxu0
    %v2179 = vadd.f32 %v2150, %v2178
    %2180 = vmatmul.f32.gmra.mxu0 %v2092
    %v2181 = vpop.f32.mrf.mxu0
    %v2182 = vadd.f32 %v2153, %v2181
    %2183 = vmatmul.f32.gmra.mxu0 %v2099
    %v2184 = vpop.f32.mrf.mxu0
    %v2185 = vadd.f32 %v2156, %v2184
    %2186 = vdwg.mxu0
    %v2188 = vperm.slane %v2067, 0
    %v2190 = vmul.f32 %v2176, %v2188
    %v2191 = vmul.f32 %v2179, %v2188
    %v2192 = vmul.f32 %v2182, %v2188
    %v2193 = vmul.f32 %v2185, %v2188
    %v2195 = vperm.slane %v2069, 0
    %v2197 = vadd.f32 %v2190, %v2195
    %v2198 = vadd.f32 %v2191, %v2195
    %v2199 = vadd.f32 %v2192, %v2195
    %v2200 = vadd.f32 %v2193, %v2195
    %vm2201 = vcmp.ge.f32.partialorder %v2197, 0.0
    %vm2202 = vcmp.ge.f32.partialorder %v2198, 0.0
    %vm2203 = vcmp.ge.f32.partialorder %v2199, 0.0
    %vm2204 = vcmp.ge.f32.partialorder %v2200, 0.0
    %v2205 = vmul.f32 %v2197, 0.01
    %v2206 = vmul.f32 %v2198, 0.01
    %v2207 = vmul.f32 %v2199, 0.01
    %v2208 = vmul.f32 %v2200, 0.01
    %v2209 = vsel %vm2201, %v2197, %v2205
    %v2210 = vsel %vm2202, %v2198, %v2206
    %v2211 = vsel %vm2203, %v2199, %v2207
    %v2212 = vsel %vm2204, %v2200, %v2208
    %vm2213 = vcmask 64512
    %v2214 = vsel %vm2213, %v869, 0
    %2216 = vmatpush.msra.mxu0 0.0
    %2217 = vmatpush.msra.mxu0 0.0
    %2218 = vmatpush.msra.mxu0 0.0
    %2219 = vmatpush.msra.mxu0 0.0
    %2220 = vmatpush.msra.mxu0 0.0
    %2221 = vmatpush.msra.mxu0 0.0
    %2222 = vmatpush.msra.mxu0 0.0
    %2223 = vmatpush.msra.mxu0 0.0
    %2224 = vmatpush.msra.mxu0 0.0
    %2225 = vmatpush.msra.mxu0 0.0
    %2226 = vmatpush.msra.mxu0 0.0
    %2227 = vmatpush.msra.mxu0 0.0
    %2228 = vmatpush.msra.mxu0 0.0
    %2229 = vmatpush.msra.mxu0 0.0
    %2230 = vmatpush.msra.mxu0 0.0
    %2231 = vmatpush.msra.mxu0 %v2209
    %2232 = vmatmul.f32.gmra.mxu0 %v2214
    %v2233 = vpop.f32.mrf.mxu0
    %v2234 = vadd.f32 0.0, %v2233
    %2235 = vdwg.mxu0
    %2236 = vmatpush.msra.mxu0 0.0
    %2237 = vmatpush.msra.mxu0 0.0
    %2238 = vmatpush.msra.mxu0 0.0
    %2239 = vmatpush.msra.mxu0 0.0
    %2240 = vmatpush.msra.mxu0 0.0
    %2241 = vmatpush.msra.mxu0 0.0
    %2242 = vmatpush.msra.mxu0 0.0
    %2243 = vmatpush.msra.mxu0 0.0
    %2244 = vmatpush.msra.mxu0 0.0
    %2245 = vmatpush.msra.mxu0 0.0
    %2246 = vmatpush.msra.mxu0 0.0
    %2247 = vmatpush.msra.mxu0 0.0
    %2248 = vmatpush.msra.mxu0 0.0
    %2249 = vmatpush.msra.mxu0 0.0
    %2250 = vmatpush.msra.mxu0 0.0
    %2251 = vmatpush.msra.mxu0 %v2210
    %2252 = vmatmul.f32.gmra.mxu0 %v2214
    %v2253 = vpop.f32.mrf.mxu0
    %v2254 = vadd.f32 0.0, %v2253
    %2255 = vdwg.mxu0
    %2256 = vmatpush.msra.mxu0 0.0
    %2257 = vmatpush.msra.mxu0 0.0
    %2258 = vmatpush.msra.mxu0 0.0
    %2259 = vmatpush.msra.mxu0 0.0
    %2260 = vmatpush.msra.mxu0 0.0
    %2261 = vmatpush.msra.mxu0 0.0
    %2262 = vmatpush.msra.mxu0 0.0
    %2263 = vmatpush.msra.mxu0 0.0
    %2264 = vmatpush.msra.mxu0 0.0
    %2265 = vmatpush.msra.mxu0 0.0
    %2266 = vmatpush.msra.mxu0 0.0
    %2267 = vmatpush.msra.mxu0 0.0
    %2268 = vmatpush.msra.mxu0 0.0
    %2269 = vmatpush.msra.mxu0 0.0
    %2270 = vmatpush.msra.mxu0 0.0
    %2271 = vmatpush.msra.mxu0 %v2211
    %2272 = vmatmul.f32.gmra.mxu0 %v2214
    %v2273 = vpop.f32.mrf.mxu0
    %v2274 = vadd.f32 0.0, %v2273
    %2275 = vdwg.mxu0
    %2276 = vmatpush.msra.mxu0 0.0
    %2277 = vmatpush.msra.mxu0 0.0
    %2278 = vmatpush.msra.mxu0 0.0
    %2279 = vmatpush.msra.mxu0 0.0
    %2280 = vmatpush.msra.mxu0 0.0
    %2281 = vmatpush.msra.mxu0 0.0
    %2282 = vmatpush.msra.mxu0 0.0
    %2283 = vmatpush.msra.mxu0 0.0
    %2284 = vmatpush.msra.mxu0 0.0
    %2285 = vmatpush.msra.mxu0 0.0
    %2286 = vmatpush.msra.mxu0 0.0
    %2287 = vmatpush.msra.mxu0 0.0
    %2288 = vmatpush.msra.mxu0 0.0
    %2289 = vmatpush.msra.mxu0 0.0
    %2290 = vmatpush.msra.mxu0 0.0
    %2291 = vmatpush.msra.mxu0 %v2212
    %2292 = vmatmul.f32.gmra.mxu0 %v2214
    %v2293 = vpop.f32.mrf.mxu0
    %v2294 = vadd.f32 0.0, %v2293
    %2295 = vdwg.mxu0
    %v2296 = vsub.f32 %v2234, %v2274
    %v2298 = vperm.slane %v2071, 0
    %v2300 = vmul.f32 %v2296, %v2298
    %v2301 = vand.u32 2147483647, %v2300
    %vm2302 = vcmask 1043456
    %v2303 = vsel %vm2302, %v2301, 0.0
    %v2304 = vrot.slane %v2303, 4
    %v2305 = vadd.f32 %v2303, %v2304
    %v2306 = vrot.slane %v2305, 2
    %v2307 = vadd.f32 %v2305, %v2306
    %v2308 = vrot.slane %v2307, 1
    %v2309 = vadd.f32 %v2307, %v2308
    %v2310 = vmul.f32 %v2309, 0.0078125
    %v2311 = vadd.f32 %v2005, %v2310
    %v2312 = vsub.f32 %v2254, %v2294
    %v2313 = vmul.f32 %v2312, %v2298
    %v2314 = vand.u32 2147483647, %v2313
    %v2315 = vsel %vm2302, %v2314, 0.0
    %v2316 = vrot.slane %v2315, 4
    %v2317 = vadd.f32 %v2315, %v2316
    %v2318 = vrot.slane %v2317, 2
    %v2319 = vadd.f32 %v2317, %v2318
    %v2320 = vrot.slane %v2319, 1
    %v2321 = vadd.f32 %v2319, %v2320
    %v2322 = vmul.f32 %v2321, 0.0078125
    %v2323 = vadd.f32 %v2016, %v2322
    %s2324 = scalar_lea.vmem [#allocation2], 1536
    %v2325 = vld [vmem:[%s2324] sm:$0xff]
    %v2326 = vld [vmem:[%s2324 + $0x8] sm:$0xff]
    %v2327 = vld [vmem:[%s2324 + $0x10] sm:$0xff]
    %v2328 = vld [vmem:[%s2324 + $0x18] sm:$0xff]
    %v2329 = vld [vmem:[%s2324 + $0x20] sm:$0xff]
    %v2330 = vld [vmem:[%s2324 + $0x28] sm:$0xff]
    %v2331 = vld [vmem:[%s2324 + $0x30] sm:$0xff]
    %v2332 = vld [vmem:[%s2324 + $0x38] sm:$0xff]
    %v2333 = vld [vmem:[%s2324 + $0x40] sm:$0xff]
    %v2334 = vld [vmem:[%s2324 + $0x48] sm:$0xff]
    %v2335 = vld [vmem:[%s2324 + $0x50] sm:$0xff]
    %v2336 = vld [vmem:[%s2324 + $0x58] sm:$0xff]
    %v2337 = vld [vmem:[%s2324 + $0x60] sm:$0xff]
    %v2338 = vld [vmem:[%s2324 + $0x68] sm:$0xff]
    %v2339 = vld [vmem:[%s2324 + $0x70] sm:$0xff]
    %v2340 = vld [vmem:[%s2324 + $0x78] sm:$0xff]
    %v2341 = vld [vmem:[%s2324 + $0x80] sm:$0xff]
    %v2342 = vld [vmem:[%s2324 + $0x88] sm:$0xff]
    %v2343 = vld [vmem:[%s2324 + $0x90] sm:$0xff]
    %v2344 = vld [vmem:[%s2324 + $0x98] sm:$0xff]
    %v2345 = vld [vmem:[%s2324 + $0xa0] sm:$0xff]
    %v2346 = vld [vmem:[%s2324 + $0xa8] sm:$0xff]
    %v2347 = vld [vmem:[%s2324 + $0xb0] sm:$0xff]
    %v2348 = vld [vmem:[%s2324 + $0xb8] sm:$0xff]
    %v2349 = vld [vmem:[%s2324 + $0xc0] sm:$0xff]
    %v2350 = vld [vmem:[%s2324 + $0xc8] sm:$0xff]
    %v2351 = vld [vmem:[%s2324 + $0xd0] sm:$0xff]
    %v2352 = vld [vmem:[%s2324 + $0xd8] sm:$0xff]
    %v2353 = vld [vmem:[%s2324 + $0xe0] sm:$0xff]
    %v2354 = vld [vmem:[%s2324 + $0xe8] sm:$0xff]
    %v2355 = vld [vmem:[%s2324 + $0xf0] sm:$0xff]
    %v2356 = vld [vmem:[%s2324 + $0xf8] sm:$0xff]
    %v2357 = vld [vmem:[%s2324 + $0x100] sm:$0xff]
    %v2358 = vld [vmem:[%s2324 + $0x108] sm:$0xff]
    %v2359 = vld [vmem:[%s2324 + $0x110] sm:$0xff]
    %v2360 = vld [vmem:[%s2324 + $0x118] sm:$0xff]
    %v2361 = vld [vmem:[%s2324 + $0x120] sm:$0xff]
    %v2362 = vld [vmem:[%s2324 + $0x128] sm:$0xff]
    %v2363 = vld [vmem:[%s2324 + $0x130] sm:$0xff]
    %v2364 = vld [vmem:[%s2324 + $0x138] sm:$0xff]
    %v2365 = vld [vmem:[%s2324 + $0x140] sm:$0xff]
    %v2366 = vld [vmem:[%s2324 + $0x148] sm:$0xff]
    %v2367 = vld [vmem:[%s2324 + $0x150] sm:$0xff]
    %v2368 = vld [vmem:[%s2324 + $0x158] sm:$0xff]
    %v2369 = vld [vmem:[%s2324 + $0x160] sm:$0xff]
    %v2370 = vld [vmem:[%s2324 + $0x168] sm:$0xff]
    %v2371 = vld [vmem:[%s2324 + $0x170] sm:$0xff]
    %v2372 = vld [vmem:[%s2324 + $0x178] sm:$0xff]
    %s2373 = scalar_lea.vmem %s2, 4
    %v2374 = vld [vmem:[%s2373] sm:$0x1]
    %s2375 = scalar_lea.vmem %s3, 4
    %v2376 = vld [vmem:[%s2375] sm:$0x1]
    %s2377 = scalar_lea.vmem %s4, 4
    %v2378 = vld [vmem:[%s2377] sm:$0x1]
    %v2380 = vrot.slane %v2234, 7
    %v2382 = vsel %vm127, 0.0, %v2380
    %v2383 = vrot.slane %v2234, 1
    %vm2385 = vcmask 1042432
    %v2386 = vsel %vm2385, %v2383, 0.0
    %v2388 = vrot.slane %v2254, 7
    %v2390 = vsel %vm127, 0.0, %v2388
    %v2391 = vrot.slane %v2254, 1
    %v2393 = vsel %vm2385, %v2391, 0.0
    %v2395 = vrot.slane %v2274, 7
    %v2397 = vsel %vm127, 0.0, %v2395
    %v2398 = vrot.slane %v2274, 1
    %v2400 = vsel %vm2385, %v2398, 0.0
    %v2402 = vrot.slane %v2294, 7
    %v2404 = vsel %vm127, 0.0, %v2402
    %v2405 = vrot.slane %v2294, 1
    %v2407 = vsel %vm2385, %v2405, 0.0
    %v2410 = vrot.slane %v2390, 4
    %v2411 = vrot.slane %v2254, 4
    %v2412 = vrot.slane %v2393, 4
    %v2418 = vrot.slane %v2404, 4
    %v2419 = vrot.slane %v2294, 4
    %v2420 = vrot.slane %v2407, 4
    %v2424 = vsel %vm2302, %v2382, %v2410
    %v2425 = vsel %vm2302, %v2234, %v2411
    %v2426 = vsel %vm2302, %v2386, %v2412
    %v2427 = vsel %vm2302, %v2397, %v2418
    %v2428 = vsel %vm2302, %v2274, %v2419
    %v2429 = vsel %vm2302, %v2400, %v2420
    %2430 = vmatpush.msra.mxu0 %v2340
    %2431 = vmatpush.msra.mxu0 %v2339
    %2432 = vmatpush.msra.mxu0 %v2338
    %2433 = vmatpush.msra.mxu0 %v2337
    %2434 = vmatpush.msra.mxu0 %v2336
    %2435 = vmatpush.msra.mxu0 %v2335
    %2436 = vmatpush.msra.mxu0 %v2334
    %2437 = vmatpush.msra.mxu0 %v2333
    %2438 = vmatpush.msra.mxu0 %v2332
    %2439 = vmatpush.msra.mxu0 %v2331
    %2440 = vmatpush.msra.mxu0 %v2330
    %2441 = vmatpush.msra.mxu0 %v2329
    %2442 = vmatpush.msra.mxu0 %v2328
    %2443 = vmatpush.msra.mxu0 %v2327
    %2444 = vmatpush.msra.mxu0 %v2326
    %2445 = vmatpush.msra.mxu0 %v2325
    %2446 = vmatmul.f32.gmra.mxu0 %v2424
    %v2447 = vpop.f32.mrf.mxu0
    %v2448 = vadd.f32 0.0, %v2447
    %2449 = vmatmul.f32.gmra.mxu0 %v2427
    %v2450 = vpop.f32.mrf.mxu0
    %v2451 = vadd.f32 0.0, %v2450
    %2452 = vdwg.mxu0
    %2453 = vmatpush.msra.mxu0 %v2356
    %2454 = vmatpush.msra.mxu0 %v2355
    %2455 = vmatpush.msra.mxu0 %v2354
    %2456 = vmatpush.msra.mxu0 %v2353
    %2457 = vmatpush.msra.mxu0 %v2352
    %2458 = vmatpush.msra.mxu0 %v2351
    %2459 = vmatpush.msra.mxu0 %v2350
    %2460 = vmatpush.msra.mxu0 %v2349
    %2461 = vmatpush.msra.mxu0 %v2348
    %2462 = vmatpush.msra.mxu0 %v2347
    %2463 = vmatpush.msra.mxu0 %v2346
    %2464 = vmatpush.msra.mxu0 %v2345
    %2465 = vmatpush.msra.mxu0 %v2344
    %2466 = vmatpush.msra.mxu0 %v2343
    %2467 = vmatpush.msra.mxu0 %v2342
    %2468 = vmatpush.msra.mxu0 %v2341
    %2469 = vmatmul.f32.gmra.mxu0 %v2425
    %v2470 = vpop.f32.mrf.mxu0
    %v2471 = vadd.f32 %v2448, %v2470
    %2472 = vmatmul.f32.gmra.mxu0 %v2428
    %v2473 = vpop.f32.mrf.mxu0
    %v2474 = vadd.f32 %v2451, %v2473
    %2475 = vdwg.mxu0
    %2476 = vmatpush.msra.mxu0 %v2372
    %2477 = vmatpush.msra.mxu0 %v2371
    %2478 = vmatpush.msra.mxu0 %v2370
    %2479 = vmatpush.msra.mxu0 %v2369
    %2480 = vmatpush.msra.mxu0 %v2368
    %2481 = vmatpush.msra.mxu0 %v2367
    %2482 = vmatpush.msra.mxu0 %v2366
    %2483 = vmatpush.msra.mxu0 %v2365
    %2484 = vmatpush.msra.mxu0 %v2364
    %2485 = vmatpush.msra.mxu0 %v2363
    %2486 = vmatpush.msra.mxu0 %v2362
    %2487 = vmatpush.msra.mxu0 %v2361
    %2488 = vmatpush.msra.mxu0 %v2360
    %2489 = vmatpush.msra.mxu0 %v2359
    %2490 = vmatpush.msra.mxu0 %v2358
    %2491 = vmatpush.msra.mxu0 %v2357
    %2492 = vmatmul.f32.gmra.mxu0 %v2426
    %v2493 = vpop.f32.mrf.mxu0
    %v2494 = vadd.f32 %v2471, %v2493
    %2495 = vmatmul.f32.gmra.mxu0 %v2429
    %v2496 = vpop.f32.mrf.mxu0
    %v2497 = vadd.f32 %v2474, %v2496
    %2498 = vdwg.mxu0
    %v2500 = vperm.slane %v2374, 0
    %v2502 = vmul.f32 %v2494, %v2500
    %v2503 = vmul.f32 %v2497, %v2500
    %v2505 = vperm.slane %v2376, 0
    %v2507 = vadd.f32 %v2502, %v2505
    %v2508 = vadd.f32 %v2503, %v2505
    %vm2509 = vcmp.ge.f32.partialorder %v2507, 0.0
    %vm2510 = vcmp.ge.f32.partialorder %v2508, 0.0
    %v2511 = vmul.f32 %v2507, 0.01
    %v2512 = vmul.f32 %v2508, 0.01
    %v2513 = vsel %vm2509, %v2507, %v2511
    %v2514 = vsel %vm2510, %v2508, %v2512
    %vm2515 = vcmask 31744
    %v2516 = vsel %vm2515, %v869, 0
    %v2519 = vsel %vm2302, %v2513, 0
    %2521 = vmatpush.msra.mxu0 0.0
    %2522 = vmatpush.msra.mxu0 0.0
    %2523 = vmatpush.msra.mxu0 0.0
    %2524 = vmatpush.msra.mxu0 0.0
    %2525 = vmatpush.msra.mxu0 0.0
    %2526 = vmatpush.msra.mxu0 0.0
    %2527 = vmatpush.msra.mxu0 0.0
    %2528 = vmatpush.msra.mxu0 0.0
    %2529 = vmatpush.msra.mxu0 0.0
    %2530 = vmatpush.msra.mxu0 0.0
    %2531 = vmatpush.msra.mxu0 0.0
    %2532 = vmatpush.msra.mxu0 0.0
    %2533 = vmatpush.msra.mxu0 0.0
    %2534 = vmatpush.msra.mxu0 0.0
    %2535 = vmatpush.msra.mxu0 0.0
    %2536 = vmatpush.msra.mxu0 %v2519
    %2537 = vmatmul.f32.gmra.mxu0 %v2516
    %v2538 = vpop.f32.mrf.mxu0
    %v2539 = vadd.f32 0.0, %v2538
    %2540 = vdwg.mxu0
    %v2541 = vrot.slane %v2513, 4
    %v2542 = vsel %vm2302, %v2541, 0
    %2544 = vmatpush.msra.mxu0 0.0
    %2545 = vmatpush.msra.mxu0 0.0
    %2546 = vmatpush.msra.mxu0 0.0
    %2547 = vmatpush.msra.mxu0 0.0
    %2548 = vmatpush.msra.mxu0 0.0
    %2549 = vmatpush.msra.mxu0 0.0
    %2550 = vmatpush.msra.mxu0 0.0
    %2551 = vmatpush.msra.mxu0 0.0
    %2552 = vmatpush.msra.mxu0 0.0
    %2553 = vmatpush.msra.mxu0 0.0
    %2554 = vmatpush.msra.mxu0 0.0
    %2555 = vmatpush.msra.mxu0 0.0
    %2556 = vmatpush.msra.mxu0 0.0
    %2557 = vmatpush.msra.mxu0 0.0
    %2558 = vmatpush.msra.mxu0 0.0
    %2559 = vmatpush.msra.mxu0 %v2542
    %2560 = vmatmul.f32.gmra.mxu0 %v2516
    %v2561 = vpop.f32.mrf.mxu0
    %v2562 = vadd.f32 0.0, %v2561
    %2563 = vdwg.mxu0
    %v2565 = vsel %vm2302, %v2514, 0
    %2567 = vmatpush.msra.mxu0 0.0
    %2568 = vmatpush.msra.mxu0 0.0
    %2569 = vmatpush.msra.mxu0 0.0
    %2570 = vmatpush.msra.mxu0 0.0
    %2571 = vmatpush.msra.mxu0 0.0
    %2572 = vmatpush.msra.mxu0 0.0
    %2573 = vmatpush.msra.mxu0 0.0
    %2574 = vmatpush.msra.mxu0 0.0
    %2575 = vmatpush.msra.mxu0 0.0
    %2576 = vmatpush.msra.mxu0 0.0
    %2577 = vmatpush.msra.mxu0 0.0
    %2578 = vmatpush.msra.mxu0 0.0
    %2579 = vmatpush.msra.mxu0 0.0
    %2580 = vmatpush.msra.mxu0 0.0
    %2581 = vmatpush.msra.mxu0 0.0
    %2582 = vmatpush.msra.mxu0 %v2565
    %2583 = vmatmul.f32.gmra.mxu0 %v2516
    %v2584 = vpop.f32.mrf.mxu0
    %v2585 = vadd.f32 0.0, %v2584
    %2586 = vdwg.mxu0
    %v2587 = vrot.slane %v2514, 4
    %v2588 = vsel %vm2302, %v2587, 0
    %2590 = vmatpush.msra.mxu0 0.0
    %2591 = vmatpush.msra.mxu0 0.0
    %2592 = vmatpush.msra.mxu0 0.0
    %2593 = vmatpush.msra.mxu0 0.0
    %2594 = vmatpush.msra.mxu0 0.0
    %2595 = vmatpush.msra.mxu0 0.0
    %2596 = vmatpush.msra.mxu0 0.0
    %2597 = vmatpush.msra.mxu0 0.0
    %2598 = vmatpush.msra.mxu0 0.0
    %2599 = vmatpush.msra.mxu0 0.0
    %2600 = vmatpush.msra.mxu0 0.0
    %2601 = vmatpush.msra.mxu0 0.0
    %2602 = vmatpush.msra.mxu0 0.0
    %2603 = vmatpush.msra.mxu0 0.0
    %2604 = vmatpush.msra.mxu0 0.0
    %2605 = vmatpush.msra.mxu0 %v2588
    %2606 = vmatmul.f32.gmra.mxu0 %v2516
    %v2607 = vpop.f32.mrf.mxu0
    %v2608 = vadd.f32 0.0, %v2607
    %2609 = vdwg.mxu0
    %v2610 = vsub.f32 %v2539, %v2585
    %v2612 = vperm.slane %v2378, 0
    %v2614 = vmul.f32 %v2610, %v2612
    %v2615 = vand.u32 2147483647, %v2614
    %vm2616 = vcmask 1041408
    %v2617 = vsel %vm2616, %v2615, 0.0
    %v2618 = vrot.slane %v2617, 4
    %v2619 = vadd.f32 %v2617, %v2618
    %v2620 = vrot.slane %v2619, 2
    %v2621 = vadd.f32 %v2619, %v2620
    %v2622 = vrot.slane %v2621, 1
    %v2623 = vadd.f32 %v2621, %v2622
    %v2624 = vmul.f32 %v2623, 0.0078125
    %v2625 = vadd.f32 %v2311, %v2624
    %v2626 = vsub.f32 %v2562, %v2608
    %v2627 = vmul.f32 %v2626, %v2612
    %v2628 = vand.u32 2147483647, %v2627
    %v2629 = vsel %vm2616, %v2628, 0.0
    %v2630 = vrot.slane %v2629, 4
    %v2631 = vadd.f32 %v2629, %v2630
    %v2632 = vrot.slane %v2631, 2
    %v2633 = vadd.f32 %v2631, %v2632
    %v2634 = vrot.slane %v2633, 1
    %v2635 = vadd.f32 %v2633, %v2634
    %v2636 = vmul.f32 %v2635, 0.0078125
    %v2637 = vadd.f32 %v2323, %v2636
    %s2638 = scalar_lea.vmem [#allocation2], 1920
    %v2639 = vld [vmem:[%s2638] sm:$0xff]
    %v2640 = vld [vmem:[%s2638 + $0x8] sm:$0xff]
    %v2641 = vld [vmem:[%s2638 + $0x10] sm:$0xff]
    %v2642 = vld [vmem:[%s2638 + $0x18] sm:$0xff]
    %v2643 = vld [vmem:[%s2638 + $0x20] sm:$0xff]
    %v2644 = vld [vmem:[%s2638 + $0x28] sm:$0xff]
    %v2645 = vld [vmem:[%s2638 + $0x30] sm:$0xff]
    %v2646 = vld [vmem:[%s2638 + $0x38] sm:$0xff]
    %v2647 = vld [vmem:[%s2638 + $0x40] sm:$0xff]
    %v2648 = vld [vmem:[%s2638 + $0x48] sm:$0xff]
    %v2649 = vld [vmem:[%s2638 + $0x50] sm:$0xff]
    %v2650 = vld [vmem:[%s2638 + $0x58] sm:$0xff]
    %v2651 = vld [vmem:[%s2638 + $0x60] sm:$0xff]
    %v2652 = vld [vmem:[%s2638 + $0x68] sm:$0xff]
    %v2653 = vld [vmem:[%s2638 + $0x70] sm:$0xff]
    %v2654 = vld [vmem:[%s2638 + $0x78] sm:$0xff]
    %v2655 = vld [vmem:[%s2638 + $0x80] sm:$0xff]
    %v2656 = vld [vmem:[%s2638 + $0x88] sm:$0xff]
    %v2657 = vld [vmem:[%s2638 + $0x90] sm:$0xff]
    %v2658 = vld [vmem:[%s2638 + $0x98] sm:$0xff]
    %v2659 = vld [vmem:[%s2638 + $0xa0] sm:$0xff]
    %v2660 = vld [vmem:[%s2638 + $0xa8] sm:$0xff]
    %v2661 = vld [vmem:[%s2638 + $0xb0] sm:$0xff]
    %v2662 = vld [vmem:[%s2638 + $0xb8] sm:$0xff]
    %v2663 = vld [vmem:[%s2638 + $0xc0] sm:$0xff]
    %v2664 = vld [vmem:[%s2638 + $0xc8] sm:$0xff]
    %v2665 = vld [vmem:[%s2638 + $0xd0] sm:$0xff]
    %v2666 = vld [vmem:[%s2638 + $0xd8] sm:$0xff]
    %v2667 = vld [vmem:[%s2638 + $0xe0] sm:$0xff]
    %v2668 = vld [vmem:[%s2638 + $0xe8] sm:$0xff]
    %v2669 = vld [vmem:[%s2638 + $0xf0] sm:$0xff]
    %v2670 = vld [vmem:[%s2638 + $0xf8] sm:$0xff]
    %v2671 = vld [vmem:[%s2638 + $0x100] sm:$0xff]
    %v2672 = vld [vmem:[%s2638 + $0x108] sm:$0xff]
    %v2673 = vld [vmem:[%s2638 + $0x110] sm:$0xff]
    %v2674 = vld [vmem:[%s2638 + $0x118] sm:$0xff]
    %v2675 = vld [vmem:[%s2638 + $0x120] sm:$0xff]
    %v2676 = vld [vmem:[%s2638 + $0x128] sm:$0xff]
    %v2677 = vld [vmem:[%s2638 + $0x130] sm:$0xff]
    %v2678 = vld [vmem:[%s2638 + $0x138] sm:$0xff]
    %v2679 = vld [vmem:[%s2638 + $0x140] sm:$0xff]
    %v2680 = vld [vmem:[%s2638 + $0x148] sm:$0xff]
    %v2681 = vld [vmem:[%s2638 + $0x150] sm:$0xff]
    %v2682 = vld [vmem:[%s2638 + $0x158] sm:$0xff]
    %v2683 = vld [vmem:[%s2638 + $0x160] sm:$0xff]
    %v2684 = vld [vmem:[%s2638 + $0x168] sm:$0xff]
    %v2685 = vld [vmem:[%s2638 + $0x170] sm:$0xff]
    %v2686 = vld [vmem:[%s2638 + $0x178] sm:$0xff]
    %s2687 = scalar_lea.vmem %s2, 5
    %v2688 = vld [vmem:[%s2687] sm:$0x1]
    %s2689 = scalar_lea.vmem %s3, 5
    %v2690 = vld [vmem:[%s2689] sm:$0x1]
    %s2691 = scalar_lea.vmem %s4, 5
    %v2692 = vld [vmem:[%s2691] sm:$0x1]
    %v2694 = vrot.slane %v2539, 7
    %v2696 = vsel %vm127, 0.0, %v2694
    %v2697 = vrot.slane %v2539, 1
    %v2699 = vsel %vm127, %v2697, 0.0
    %v2701 = vrot.slane %v2562, 7
    %v2703 = vsel %vm127, 0.0, %v2701
    %v2704 = vrot.slane %v2562, 1
    %v2706 = vsel %vm127, %v2704, 0.0
    %v2708 = vrot.slane %v2585, 7
    %v2710 = vsel %vm127, 0.0, %v2708
    %v2711 = vrot.slane %v2585, 1
    %v2713 = vsel %vm127, %v2711, 0.0
    %v2715 = vrot.slane %v2608, 7
    %v2717 = vsel %vm127, 0.0, %v2715
    %v2718 = vrot.slane %v2608, 1
    %v2720 = vsel %vm127, %v2718, 0.0
    %v2723 = vrot.slane %v2703, 6
    %v2724 = vrot.slane %v2562, 6
    %v2725 = vrot.slane %v2706, 6
    %v2731 = vrot.slane %v2710, 4
    %v2732 = vrot.slane %v2585, 4
    %v2733 = vrot.slane %v2713, 4
    %v2739 = vrot.slane %v2717, 2
    %v2740 = vrot.slane %v2608, 2
    %v2741 = vrot.slane %v2720, 2
    %v2745 = vsel %vm2616, %v2696, %v2723
    %v2746 = vsel %vm2616, %v2539, %v2724
    %v2747 = vsel %vm2616, %v2699, %v2725
    %v2748 = vsel %vm2302, %v2745, %v2731
    %v2749 = vsel %vm2302, %v2746, %v2732
    %v2750 = vsel %vm2302, %v2747, %v2733
    %vm2751 = vcmask 1045504
    %v2752 = vsel %vm2751, %v2748, %v2739
    %v2753 = vsel %vm2751, %v2749, %v2740
    %v2754 = vsel %vm2751, %v2750, %v2741
    %2755 = vmatpush.msra.mxu0 %v2654
    %2756 = vmatpush.msra.mxu0 %v2653
    %2757 = vmatpush.msra.mxu0 %v2652
    %2758 = vmatpush.msra.mxu0 %v2651
    %2759 = vmatpush.msra.mxu0 %v2650
    %2760 = vmatpush.msra.mxu0 %v2649
    %2761 = vmatpush.msra.mxu0 %v2648
    %2762 = vmatpush.msra.mxu0 %v2647
    %2763 = vmatpush.msra.mxu0 %v2646
    %2764 = vmatpush.msra.mxu0 %v2645
    %2765 = vmatpush.msra.mxu0 %v2644
    %2766 = vmatpush.msra.mxu0 %v2643
    %2767 = vmatpush.msra.mxu0 %v2642
    %2768 = vmatpush.msra.mxu0 %v2641
    %2769 = vmatpush.msra.mxu0 %v2640
    %2770 = vmatpush.msra.mxu0 %v2639
    %2771 = vmatmul.f32.gmra.mxu0 %v2752
    %v2772 = vpop.f32.mrf.mxu0
    %v2773 = vadd.f32 0.0, %v2772
    %2774 = vdwg.mxu0
    %2775 = vmatpush.msra.mxu0 %v2670
    %2776 = vmatpush.msra.mxu0 %v2669
    %2777 = vmatpush.msra.mxu0 %v2668
    %2778 = vmatpush.msra.mxu0 %v2667
    %2779 = vmatpush.msra.mxu0 %v2666
    %2780 = vmatpush.msra.mxu0 %v2665
    %2781 = vmatpush.msra.mxu0 %v2664
    %2782 = vmatpush.msra.mxu0 %v2663
    %2783 = vmatpush.msra.mxu0 %v2662
    %2784 = vmatpush.msra.mxu0 %v2661
    %2785 = vmatpush.msra.mxu0 %v2660
    %2786 = vmatpush.msra.mxu0 %v2659
    %2787 = vmatpush.msra.mxu0 %v2658
    %2788 = vmatpush.msra.mxu0 %v2657
    %2789 = vmatpush.msra.mxu0 %v2656
    %2790 = vmatpush.msra.mxu0 %v2655
    %2791 = vmatmul.f32.gmra.mxu0 %v2753
    %v2792 = vpop.f32.mrf.mxu0
    %v2793 = vadd.f32 %v2773, %v2792
    %2794 = vdwg.mxu0
    %2795 = vmatpush.msra.mxu0 %v2686
    %2796 = vmatpush.msra.mxu0 %v2685
    %2797 = vmatpush.msra.mxu0 %v2684
    %2798 = vmatpush.msra.mxu0 %v2683
    %2799 = vmatpush.msra.mxu0 %v2682
    %2800 = vmatpush.msra.mxu0 %v2681
    %2801 = vmatpush.msra.mxu0 %v2680
    %2802 = vmatpush.msra.mxu0 %v2679
    %2803 = vmatpush.msra.mxu0 %v2678
    %2804 = vmatpush.msra.mxu0 %v2677
    %2805 = vmatpush.msra.mxu0 %v2676
    %2806 = vmatpush.msra.mxu0 %v2675
    %2807 = vmatpush.msra.mxu0 %v2674
    %2808 = vmatpush.msra.mxu0 %v2673
    %2809 = vmatpush.msra.mxu0 %v2672
    %2810 = vmatpush.msra.mxu0 %v2671
    %2811 = vmatmul.f32.gmra.mxu0 %v2754
    %v2812 = vpop.f32.mrf.mxu0
    %v2813 = vadd.f32 %v2793, %v2812
    %2814 = vdwg.mxu0
    %v2816 = vperm.slane %v2688, 0
    %v2818 = vmul.f32 %v2813, %v2816
    %v2820 = vperm.slane %v2690, 0
    %v2822 = vadd.f32 %v2818, %v2820
    %vm2823 = vcmp.ge.f32.partialorder %v2822, 0.0
    %v2824 = vmul.f32 %v2822, 0.01
    %v2825 = vsel %vm2823, %v2822, %v2824
    %vm2826 = vcmask 15360
    %v2827 = vsel %vm2826, %v869, 0
    %v2830 = vsel %vm2616, %v2825, 0
    %2832 = vmatpush.msra.mxu0 0.0
    %2833 = vmatpush.msra.mxu0 0.0
    %2834 = vmatpush.msra.mxu0 0.0
    %2835 = vmatpush.msra.mxu0 0.0
    %2836 = vmatpush.msra.mxu0 0.0
    %2837 = vmatpush.msra.mxu0 0.0
    %2838 = vmatpush.msra.mxu0 0.0
    %2839 = vmatpush.msra.mxu0 0.0
    %2840 = vmatpush.msra.mxu0 0.0
    %2841 = vmatpush.msra.mxu0 0.0
    %2842 = vmatpush.msra.mxu0 0.0
    %2843 = vmatpush.msra.mxu0 0.0
    %2844 = vmatpush.msra.mxu0 0.0
    %2845 = vmatpush.msra.mxu0 0.0
    %2846 = vmatpush.msra.mxu0 0.0
    %2847 = vmatpush.msra.mxu0 %v2830
    %2848 = vmatmul.f32.gmra.mxu0 %v2827
    %v2849 = vpop.f32.mrf.mxu0
    %v2850 = vadd.f32 0.0, %v2849
    %2851 = vdwg.mxu0
    %v2852 = vrot.slane %v2825, 2
    %v2853 = vsel %vm2616, %v2852, 0
    %2855 = vmatpush.msra.mxu0 0.0
    %2856 = vmatpush.msra.mxu0 0.0
    %2857 = vmatpush.msra.mxu0 0.0
    %2858 = vmatpush.msra.mxu0 0.0
    %2859 = vmatpush.msra.mxu0 0.0
    %2860 = vmatpush.msra.mxu0 0.0
    %2861 = vmatpush.msra.mxu0 0.0
    %2862 = vmatpush.msra.mxu0 0.0
    %2863 = vmatpush.msra.mxu0 0.0
    %2864 = vmatpush.msra.mxu0 0.0
    %2865 = vmatpush.msra.mxu0 0.0
    %2866 = vmatpush.msra.mxu0 0.0
    %2867 = vmatpush.msra.mxu0 0.0
    %2868 = vmatpush.msra.mxu0 0.0
    %2869 = vmatpush.msra.mxu0 0.0
    %2870 = vmatpush.msra.mxu0 %v2853
    %2871 = vmatmul.f32.gmra.mxu0 %v2827
    %v2872 = vpop.f32.mrf.mxu0
    %v2873 = vadd.f32 0.0, %v2872
    %2874 = vdwg.mxu0
    %v2875 = vrot.slane %v2825, 4
    %v2876 = vsel %vm2616, %v2875, 0
    %2878 = vmatpush.msra.mxu0 0.0
    %2879 = vmatpush.msra.mxu0 0.0
    %2880 = vmatpush.msra.mxu0 0.0
    %2881 = vmatpush.msra.mxu0 0.0
    %2882 = vmatpush.msra.mxu0 0.0
    %2883 = vmatpush.msra.mxu0 0.0
    %2884 = vmatpush.msra.mxu0 0.0
    %2885 = vmatpush.msra.mxu0 0.0
    %2886 = vmatpush.msra.mxu0 0.0
    %2887 = vmatpush.msra.mxu0 0.0
    %2888 = vmatpush.msra.mxu0 0.0
    %2889 = vmatpush.msra.mxu0 0.0
    %2890 = vmatpush.msra.mxu0 0.0
    %2891 = vmatpush.msra.mxu0 0.0
    %2892 = vmatpush.msra.mxu0 0.0
    %2893 = vmatpush.msra.mxu0 %v2876
    %2894 = vmatmul.f32.gmra.mxu0 %v2827
    %v2895 = vpop.f32.mrf.mxu0
    %v2896 = vadd.f32 0.0, %v2895
    %2897 = vdwg.mxu0
    %v2898 = vrot.slane %v2825, 6
    %v2899 = vsel %vm2616, %v2898, 0
    %2901 = vmatpush.msra.mxu0 0.0
    %2902 = vmatpush.msra.mxu0 0.0
    %2903 = vmatpush.msra.mxu0 0.0
    %2904 = vmatpush.msra.mxu0 0.0
    %2905 = vmatpush.msra.mxu0 0.0
    %2906 = vmatpush.msra.mxu0 0.0
    %2907 = vmatpush.msra.mxu0 0.0
    %2908 = vmatpush.msra.mxu0 0.0
    %2909 = vmatpush.msra.mxu0 0.0
    %2910 = vmatpush.msra.mxu0 0.0
    %2911 = vmatpush.msra.mxu0 0.0
    %2912 = vmatpush.msra.mxu0 0.0
    %2913 = vmatpush.msra.mxu0 0.0
    %2914 = vmatpush.msra.mxu0 0.0
    %2915 = vmatpush.msra.mxu0 0.0
    %2916 = vmatpush.msra.mxu0 %v2899
    %2917 = vmatmul.f32.gmra.mxu0 %v2827
    %v2918 = vpop.f32.mrf.mxu0
    %v2919 = vadd.f32 0.0, %v2918
    %2920 = vdwg.mxu0
    %v2921 = vsub.f32 %v2850, %v2896
    %v2922 = vmul.f32 %v2921, %v2692
    %v2923 = vand.u32 2147483647, %v2922
    %v2924 = vadd.f32 %v2923, 0.0
    %v2925 = vmul.f32 %v2924, 0.015625
    %v2926 = vadd.f32 %v2625, %v2925
    %v2927 = vsub.f32 %v2873, %v2919
    %v2928 = vmul.f32 %v2927, %v2692
    %v2929 = vand.u32 2147483647, %v2928
    %v2930 = vadd.f32 %v2929, 0.0
    %v2931 = vmul.f32 %v2930, 0.015625
    %v2932 = vadd.f32 %v2637, %v2931
    %s2933 = scalar_lea.vmem [#allocation2], 2304
    %v2934 = vld [vmem:[%s2933] sm:$0xff]
    %v2935 = vld [vmem:[%s2933 + $0x8] sm:$0xff]
    %v2936 = vld [vmem:[%s2933 + $0x10] sm:$0xff]
    %v2937 = vld [vmem:[%s2933 + $0x18] sm:$0xff]
    %v2938 = vld [vmem:[%s2933 + $0x20] sm:$0xff]
    %v2939 = vld [vmem:[%s2933 + $0x28] sm:$0xff]
    %v2940 = vld [vmem:[%s2933 + $0x30] sm:$0xff]
    %v2941 = vld [vmem:[%s2933 + $0x38] sm:$0xff]
    %v2942 = vld [vmem:[%s2933 + $0x40] sm:$0xff]
    %v2943 = vld [vmem:[%s2933 + $0x48] sm:$0xff]
    %v2944 = vld [vmem:[%s2933 + $0x50] sm:$0xff]
    %v2945 = vld [vmem:[%s2933 + $0x58] sm:$0xff]
    %v2946 = vld [vmem:[%s2933 + $0x60] sm:$0xff]
    %v2947 = vld [vmem:[%s2933 + $0x68] sm:$0xff]
    %v2948 = vld [vmem:[%s2933 + $0x70] sm:$0xff]
    %v2949 = vld [vmem:[%s2933 + $0x78] sm:$0xff]
    %v2950 = vld [vmem:[%s2933 + $0x80] sm:$0xff]
    %v2951 = vld [vmem:[%s2933 + $0x88] sm:$0xff]
    %v2952 = vld [vmem:[%s2933 + $0x90] sm:$0xff]
    %v2953 = vld [vmem:[%s2933 + $0x98] sm:$0xff]
    %v2954 = vld [vmem:[%s2933 + $0xa0] sm:$0xff]
    %v2955 = vld [vmem:[%s2933 + $0xa8] sm:$0xff]
    %v2956 = vld [vmem:[%s2933 + $0xb0] sm:$0xff]
    %v2957 = vld [vmem:[%s2933 + $0xb8] sm:$0xff]
    %v2958 = vld [vmem:[%s2933 + $0xc0] sm:$0xff]
    %v2959 = vld [vmem:[%s2933 + $0xc8] sm:$0xff]
    %v2960 = vld [vmem:[%s2933 + $0xd0] sm:$0xff]
    %v2961 = vld [vmem:[%s2933 + $0xd8] sm:$0xff]
    %v2962 = vld [vmem:[%s2933 + $0xe0] sm:$0xff]
    %v2963 = vld [vmem:[%s2933 + $0xe8] sm:$0xff]
    %v2964 = vld [vmem:[%s2933 + $0xf0] sm:$0xff]
    %v2965 = vld [vmem:[%s2933 + $0xf8] sm:$0xff]
    %v2966 = vld [vmem:[%s2933 + $0x100] sm:$0xff]
    %v2967 = vld [vmem:[%s2933 + $0x108] sm:$0xff]
    %v2968 = vld [vmem:[%s2933 + $0x110] sm:$0xff]
    %v2969 = vld [vmem:[%s2933 + $0x118] sm:$0xff]
    %v2970 = vld [vmem:[%s2933 + $0x120] sm:$0xff]
    %v2971 = vld [vmem:[%s2933 + $0x128] sm:$0xff]
    %v2972 = vld [vmem:[%s2933 + $0x130] sm:$0xff]
    %v2973 = vld [vmem:[%s2933 + $0x138] sm:$0xff]
    %v2974 = vld [vmem:[%s2933 + $0x140] sm:$0xff]
    %v2975 = vld [vmem:[%s2933 + $0x148] sm:$0xff]
    %v2976 = vld [vmem:[%s2933 + $0x150] sm:$0xff]
    %v2977 = vld [vmem:[%s2933 + $0x158] sm:$0xff]
    %v2978 = vld [vmem:[%s2933 + $0x160] sm:$0xff]
    %v2979 = vld [vmem:[%s2933 + $0x168] sm:$0xff]
    %v2980 = vld [vmem:[%s2933 + $0x170] sm:$0xff]
    %v2981 = vld [vmem:[%s2933 + $0x178] sm:$0xff]
    %s2982 = scalar_lea.vmem %s2, 6
    %v2983 = vld [vmem:[%s2982] sm:$0x1]
    %s2984 = scalar_lea.vmem %s3, 6
    %v2985 = vld [vmem:[%s2984] sm:$0x1]
    %s2986 = scalar_lea.vmem %s4, 6
    %v2987 = vld [vmem:[%s2986] sm:$0x1]
    %v2990 = vrot.slane 0.0, 7
    %v2991 = vrot.slane %v2873, 7
    %v2995 = vrot.slane 0.0, 6
    %v2996 = vrot.slane %v2896, 6
    %v3000 = vrot.slane 0.0, 5
    %v3001 = vrot.slane %v2919, 5
    %v3004 = vsel %vm127, 0.0, %v2990
    %v3005 = vsel %vm127, %v2850, %v2991
    %v3006 = vsel %vm2616, %v3004, %v2995
    %v3007 = vsel %vm2616, %v3005, %v2996
    %v3008 = vsel %vm2385, %v3006, %v3000
    %v3009 = vsel %vm2385, %v3007, %v3001
    %3010 = vmatpush.msra.mxu0 %v2949
    %3011 = vmatpush.msra.mxu0 %v2948
    %3012 = vmatpush.msra.mxu0 %v2947
    %3013 = vmatpush.msra.mxu0 %v2946
    %3014 = vmatpush.msra.mxu0 %v2945
    %3015 = vmatpush.msra.mxu0 %v2944
    %3016 = vmatpush.msra.mxu0 %v2943
    %3017 = vmatpush.msra.mxu0 %v2942
    %3018 = vmatpush.msra.mxu0 %v2941
    %3019 = vmatpush.msra.mxu0 %v2940
    %3020 = vmatpush.msra.mxu0 %v2939
    %3021 = vmatpush.msra.mxu0 %v2938
    %3022 = vmatpush.msra.mxu0 %v2937
    %3023 = vmatpush.msra.mxu0 %v2936
    %3024 = vmatpush.msra.mxu0 %v2935
    %3025 = vmatpush.msra.mxu0 %v2934
    %3026 = vmatmul.f32.gmra.mxu0 %v3008
    %v3027 = vpop.f32.mrf.mxu0
    %v3028 = vadd.f32 0.0, %v3027
    %3029 = vdwg.mxu0
    %3030 = vmatpush.msra.mxu0 %v2965
    %3031 = vmatpush.msra.mxu0 %v2964
    %3032 = vmatpush.msra.mxu0 %v2963
    %3033 = vmatpush.msra.mxu0 %v2962
    %3034 = vmatpush.msra.mxu0 %v2961
    %3035 = vmatpush.msra.mxu0 %v2960
    %3036 = vmatpush.msra.mxu0 %v2959
    %3037 = vmatpush.msra.mxu0 %v2958
    %3038 = vmatpush.msra.mxu0 %v2957
    %3039 = vmatpush.msra.mxu0 %v2956
    %3040 = vmatpush.msra.mxu0 %v2955
    %3041 = vmatpush.msra.mxu0 %v2954
    %3042 = vmatpush.msra.mxu0 %v2953
    %3043 = vmatpush.msra.mxu0 %v2952
    %3044 = vmatpush.msra.mxu0 %v2951
    %3045 = vmatpush.msra.mxu0 %v2950
    %3046 = vmatmul.f32.gmra.mxu0 %v3009
    %v3047 = vpop.f32.mrf.mxu0
    %v3048 = vadd.f32 %v3028, %v3047
    %3049 = vdwg.mxu0
    %3050 = vmatpush.msra.mxu0 %v2981
    %3051 = vmatpush.msra.mxu0 %v2980
    %3052 = vmatpush.msra.mxu0 %v2979
    %3053 = vmatpush.msra.mxu0 %v2978
    %3054 = vmatpush.msra.mxu0 %v2977
    %3055 = vmatpush.msra.mxu0 %v2976
    %3056 = vmatpush.msra.mxu0 %v2975
    %3057 = vmatpush.msra.mxu0 %v2974
    %3058 = vmatpush.msra.mxu0 %v2973
    %3059 = vmatpush.msra.mxu0 %v2972
    %3060 = vmatpush.msra.mxu0 %v2971
    %3061 = vmatpush.msra.mxu0 %v2970
    %3062 = vmatpush.msra.mxu0 %v2969
    %3063 = vmatpush.msra.mxu0 %v2968
    %3064 = vmatpush.msra.mxu0 %v2967
    %3065 = vmatpush.msra.mxu0 %v2966
    %3066 = vmatmul.f32.gmra.mxu0 %v3008
    %v3067 = vpop.f32.mrf.mxu0
    %v3068 = vadd.f32 %v3048, %v3067
    %3069 = vdwg.mxu0
    %v3071 = vperm.slane %v2983, 0
    %v3073 = vmul.f32 %v3068, %v3071
    %v3075 = vperm.slane %v2985, 0
    %v3077 = vadd.f32 %v3073, %v3075
    %vm3078 = vcmp.ge.f32.partialorder %v3077, 0.0
    %v3079 = vmul.f32 %v3077, 0.01
    %v3080 = vsel %vm3078, %v3077, %v3079
    %v3082 = vrot.slane %v3080, 2
    %v3084 = vsub.f32 %v3080, %v3082
    %v3085 = vmul.f32 %v3084, %v2987
    %v3086 = vand.u32 2147483647, %v3085
    %v3087 = vadd.f32 %v3086, 0.0
    %v3088 = vmul.f32 %v3087, 0.015625
    %v3089 = vadd.f32 %v2926, %v3088
    %v3091 = vperm.slane %v2987, 0
    %v3093 = vmul.f32 %v3084, %v3091
    %v3094 = vand.u32 2147483647, %v3093
    %v3095 = vadd.f32 %v3094, 0.0
    %v3096 = vmul.f32 %v3095, 0.015625
    %v3098 = vrot.slane %v3096, 1
    %v3100 = vadd.f32 %v2932, %v3098
    %s3101 = scalar_lea.vmem [#allocation2], 2688
    %v3102 = vld [vmem:[%s3101] sm:$0xff]
    %v3103 = vld [vmem:[%s3101 + $0x8] sm:$0xff]
    %v3104 = vld [vmem:[%s3101 + $0x10] sm:$0xff]
    %v3105 = vld [vmem:[%s3101 + $0x18] sm:$0xff]
    %v3106 = vld [vmem:[%s3101 + $0x20] sm:$0xff]
    %v3107 = vld [vmem:[%s3101 + $0x28] sm:$0xff]
    %v3108 = vld [vmem:[%s3101 + $0x30] sm:$0xff]
    %v3109 = vld [vmem:[%s3101 + $0x38] sm:$0xff]
    %v3110 = vld [vmem:[%s3101 + $0x40] sm:$0xff]
    %v3111 = vld [vmem:[%s3101 + $0x48] sm:$0xff]
    %v3112 = vld [vmem:[%s3101 + $0x50] sm:$0xff]
    %v3113 = vld [vmem:[%s3101 + $0x58] sm:$0xff]
    %v3114 = vld [vmem:[%s3101 + $0x60] sm:$0xff]
    %v3115 = vld [vmem:[%s3101 + $0x68] sm:$0xff]
    %v3116 = vld [vmem:[%s3101 + $0x70] sm:$0xff]
    %v3117 = vld [vmem:[%s3101 + $0x78] sm:$0xff]
    %v3118 = vld [vmem:[%s3101 + $0x80] sm:$0xff]
    %v3119 = vld [vmem:[%s3101 + $0x88] sm:$0xff]
    %v3120 = vld [vmem:[%s3101 + $0x90] sm:$0xff]
    %v3121 = vld [vmem:[%s3101 + $0x98] sm:$0xff]
    %v3122 = vld [vmem:[%s3101 + $0xa0] sm:$0xff]
    %v3123 = vld [vmem:[%s3101 + $0xa8] sm:$0xff]
    %v3124 = vld [vmem:[%s3101 + $0xb0] sm:$0xff]
    %v3125 = vld [vmem:[%s3101 + $0xb8] sm:$0xff]
    %v3126 = vld [vmem:[%s3101 + $0xc0] sm:$0xff]
    %v3127 = vld [vmem:[%s3101 + $0xc8] sm:$0xff]
    %v3128 = vld [vmem:[%s3101 + $0xd0] sm:$0xff]
    %v3129 = vld [vmem:[%s3101 + $0xd8] sm:$0xff]
    %v3130 = vld [vmem:[%s3101 + $0xe0] sm:$0xff]
    %v3131 = vld [vmem:[%s3101 + $0xe8] sm:$0xff]
    %v3132 = vld [vmem:[%s3101 + $0xf0] sm:$0xff]
    %v3133 = vld [vmem:[%s3101 + $0xf8] sm:$0xff]
    %v3134 = vld [vmem:[%s3101 + $0x100] sm:$0xff]
    %v3135 = vld [vmem:[%s3101 + $0x108] sm:$0xff]
    %v3136 = vld [vmem:[%s3101 + $0x110] sm:$0xff]
    %v3137 = vld [vmem:[%s3101 + $0x118] sm:$0xff]
    %v3138 = vld [vmem:[%s3101 + $0x120] sm:$0xff]
    %v3139 = vld [vmem:[%s3101 + $0x128] sm:$0xff]
    %v3140 = vld [vmem:[%s3101 + $0x130] sm:$0xff]
    %v3141 = vld [vmem:[%s3101 + $0x138] sm:$0xff]
    %v3142 = vld [vmem:[%s3101 + $0x140] sm:$0xff]
    %v3143 = vld [vmem:[%s3101 + $0x148] sm:$0xff]
    %v3144 = vld [vmem:[%s3101 + $0x150] sm:$0xff]
    %v3145 = vld [vmem:[%s3101 + $0x158] sm:$0xff]
    %v3146 = vld [vmem:[%s3101 + $0x160] sm:$0xff]
    %v3147 = vld [vmem:[%s3101 + $0x168] sm:$0xff]
    %v3148 = vld [vmem:[%s3101 + $0x170] sm:$0xff]
    %v3149 = vld [vmem:[%s3101 + $0x178] sm:$0xff]
    %s3150 = scalar_lea.vmem %s2, 7
    %v3151 = vld [vmem:[%s3150] sm:$0x1]
    %s3152 = scalar_lea.vmem %s3, 7
    %v3153 = vld [vmem:[%s3152] sm:$0x1]
    %s3154 = scalar_lea.vmem %s4, 7
    %v3155 = vld [vmem:[%s3154] sm:$0x1]
    %v3156 = vrot.slane %v3080, 1
    %v3157 = vrot.slane %v3080, 3
    %v3158 = vrot.slane %v3156, 7
    %v3160 = vrot.slane %v3082, 6
    %v3162 = vrot.slane %v3157, 5
    %v3164 = vsel %vm127, %v3080, %v3158
    %v3165 = vsel %vm2616, %v3164, %v3160
    %v3166 = vsel %vm2385, %v3165, %v3162
    %3167 = vmatpush.msra.mxu0 %v3117
    %3168 = vmatpush.msra.mxu0 %v3116
    %3169 = vmatpush.msra.mxu0 %v3115
    %3170 = vmatpush.msra.mxu0 %v3114
    %3171 = vmatpush.msra.mxu0 %v3113
    %3172 = vmatpush.msra.mxu0 %v3112
    %3173 = vmatpush.msra.mxu0 %v3111
    %3174 = vmatpush.msra.mxu0 %v3110
    %3175 = vmatpush.msra.mxu0 %v3109
    %3176 = vmatpush.msra.mxu0 %v3108
    %3177 = vmatpush.msra.mxu0 %v3107
    %3178 = vmatpush.msra.mxu0 %v3106
    %3179 = vmatpush.msra.mxu0 %v3105
    %3180 = vmatpush.msra.mxu0 %v3104
    %3181 = vmatpush.msra.mxu0 %v3103
    %3182 = vmatpush.msra.mxu0 %v3102
    %3183 = vmatmul.f32.gmra.mxu0 %v3008
    %v3184 = vpop.f32.mrf.mxu0
    %v3185 = vadd.f32 0.0, %v3184
    %3186 = vdwg.mxu0
    %3187 = vmatpush.msra.mxu0 %v3133
    %3188 = vmatpush.msra.mxu0 %v3132
    %3189 = vmatpush.msra.mxu0 %v3131
    %3190 = vmatpush.msra.mxu0 %v3130
    %3191 = vmatpush.msra.mxu0 %v3129
    %3192 = vmatpush.msra.mxu0 %v3128
    %3193 = vmatpush.msra.mxu0 %v3127
    %3194 = vmatpush.msra.mxu0 %v3126
    %3195 = vmatpush.msra.mxu0 %v3125
    %3196 = vmatpush.msra.mxu0 %v3124
    %3197 = vmatpush.msra.mxu0 %v3123
    %3198 = vmatpush.msra.mxu0 %v3122
    %3199 = vmatpush.msra.mxu0 %v3121
    %3200 = vmatpush.msra.mxu0 %v3120
    %3201 = vmatpush.msra.mxu0 %v3119
    %3202 = vmatpush.msra.mxu0 %v3118
    %3203 = vmatmul.f32.gmra.mxu0 %v3166
    %v3204 = vpop.f32.mrf.mxu0
    %v3205 = vadd.f32 %v3185, %v3204
    %3206 = vdwg.mxu0
    %3207 = vmatpush.msra.mxu0 %v3149
    %3208 = vmatpush.msra.mxu0 %v3148
    %3209 = vmatpush.msra.mxu0 %v3147
    %3210 = vmatpush.msra.mxu0 %v3146
    %3211 = vmatpush.msra.mxu0 %v3145
    %3212 = vmatpush.msra.mxu0 %v3144
    %3213 = vmatpush.msra.mxu0 %v3143
    %3214 = vmatpush.msra.mxu0 %v3142
    %3215 = vmatpush.msra.mxu0 %v3141
    %3216 = vmatpush.msra.mxu0 %v3140
    %3217 = vmatpush.msra.mxu0 %v3139
    %3218 = vmatpush.msra.mxu0 %v3138
    %3219 = vmatpush.msra.mxu0 %v3137
    %3220 = vmatpush.msra.mxu0 %v3136
    %3221 = vmatpush.msra.mxu0 %v3135
    %3222 = vmatpush.msra.mxu0 %v3134
    %3223 = vmatmul.f32.gmra.mxu0 %v3008
    %v3224 = vpop.f32.mrf.mxu0
    %v3225 = vadd.f32 %v3205, %v3224
    %3226 = vdwg.mxu0
    %v3228 = vperm.slane %v3151, 0
    %v3230 = vmul.f32 %v3225, %v3228
    %v3232 = vperm.slane %v3153, 0
    %v3234 = vadd.f32 %v3230, %v3232
    %vm3235 = vcmp.ge.f32.partialorder %v3234, 0.0
    %v3236 = vmul.f32 %v3234, 0.01
    %v3237 = vsel %vm3235, %v3234, %v3236
    %v3239 = vrot.slane %v3237, 2
    %v3241 = vsub.f32 %v3237, %v3239
    %v3242 = vmul.f32 %v3241, %v3155
    %v3243 = vand.u32 2147483647, %v3242
    %v3244 = vadd.f32 %v3243, 0.0
    %v3245 = vmul.f32 %v3244, 0.015625
    %v3246 = vadd.f32 %v3089, %v3245
    %v3248 = vperm.slane %v3155, 0
    %v3250 = vmul.f32 %v3241, %v3248
    %v3251 = vand.u32 2147483647, %v3250
    %v3252 = vadd.f32 %v3251, 0.0
    %v3253 = vmul.f32 %v3252, 0.015625
    %v3255 = vrot.slane %v3253, 1
    %v3257 = vadd.f32 %v3100, %v3255
    %s3258 = scalar_lea.vmem [#allocation2], 3072
    %v3259 = vld [vmem:[%s3258] sm:$0xff]
    %v3260 = vld [vmem:[%s3258 + $0x8] sm:$0xff]
    %v3261 = vld [vmem:[%s3258 + $0x10] sm:$0xff]
    %v3262 = vld [vmem:[%s3258 + $0x18] sm:$0xff]
    %v3263 = vld [vmem:[%s3258 + $0x20] sm:$0xff]
    %v3264 = vld [vmem:[%s3258 + $0x28] sm:$0xff]
    %v3265 = vld [vmem:[%s3258 + $0x30] sm:$0xff]
    %v3266 = vld [vmem:[%s3258 + $0x38] sm:$0xff]
    %v3267 = vld [vmem:[%s3258 + $0x40] sm:$0xff]
    %v3268 = vld [vmem:[%s3258 + $0x48] sm:$0xff]
    %v3269 = vld [vmem:[%s3258 + $0x50] sm:$0xff]
    %v3270 = vld [vmem:[%s3258 + $0x58] sm:$0xff]
    %v3271 = vld [vmem:[%s3258 + $0x60] sm:$0xff]
    %v3272 = vld [vmem:[%s3258 + $0x68] sm:$0xff]
    %v3273 = vld [vmem:[%s3258 + $0x70] sm:$0xff]
    %v3274 = vld [vmem:[%s3258 + $0x78] sm:$0xff]
    %v3275 = vld [vmem:[%s3258 + $0x80] sm:$0xff]
    %v3276 = vld [vmem:[%s3258 + $0x88] sm:$0xff]
    %v3277 = vld [vmem:[%s3258 + $0x90] sm:$0xff]
    %v3278 = vld [vmem:[%s3258 + $0x98] sm:$0xff]
    %v3279 = vld [vmem:[%s3258 + $0xa0] sm:$0xff]
    %v3280 = vld [vmem:[%s3258 + $0xa8] sm:$0xff]
    %v3281 = vld [vmem:[%s3258 + $0xb0] sm:$0xff]
    %v3282 = vld [vmem:[%s3258 + $0xb8] sm:$0xff]
    %v3283 = vld [vmem:[%s3258 + $0xc0] sm:$0xff]
    %v3284 = vld [vmem:[%s3258 + $0xc8] sm:$0xff]
    %v3285 = vld [vmem:[%s3258 + $0xd0] sm:$0xff]
    %v3286 = vld [vmem:[%s3258 + $0xd8] sm:$0xff]
    %v3287 = vld [vmem:[%s3258 + $0xe0] sm:$0xff]
    %v3288 = vld [vmem:[%s3258 + $0xe8] sm:$0xff]
    %v3289 = vld [vmem:[%s3258 + $0xf0] sm:$0xff]
    %v3290 = vld [vmem:[%s3258 + $0xf8] sm:$0xff]
    %v3291 = vld [vmem:[%s3258 + $0x100] sm:$0xff]
    %v3292 = vld [vmem:[%s3258 + $0x108] sm:$0xff]
    %v3293 = vld [vmem:[%s3258 + $0x110] sm:$0xff]
    %v3294 = vld [vmem:[%s3258 + $0x118] sm:$0xff]
    %v3295 = vld [vmem:[%s3258 + $0x120] sm:$0xff]
    %v3296 = vld [vmem:[%s3258 + $0x128] sm:$0xff]
    %v3297 = vld [vmem:[%s3258 + $0x130] sm:$0xff]
    %v3298 = vld [vmem:[%s3258 + $0x138] sm:$0xff]
    %v3299 = vld [vmem:[%s3258 + $0x140] sm:$0xff]
    %v3300 = vld [vmem:[%s3258 + $0x148] sm:$0xff]
    %v3301 = vld [vmem:[%s3258 + $0x150] sm:$0xff]
    %v3302 = vld [vmem:[%s3258 + $0x158] sm:$0xff]
    %v3303 = vld [vmem:[%s3258 + $0x160] sm:$0xff]
    %v3304 = vld [vmem:[%s3258 + $0x168] sm:$0xff]
    %v3305 = vld [vmem:[%s3258 + $0x170] sm:$0xff]
    %v3306 = vld [vmem:[%s3258 + $0x178] sm:$0xff]
    %s3307 = scalar_lea.vmem %s2, 8
    %v3308 = vld [vmem:[%s3307] sm:$0x1]
    %s3309 = scalar_lea.vmem %s3, 8
    %v3310 = vld [vmem:[%s3309] sm:$0x1]
    %s3311 = scalar_lea.vmem %s4, 8
    %v3312 = vld [vmem:[%s3311] sm:$0x1]
    %v3313 = vrot.slane %v3237, 1
    %v3314 = vrot.slane %v3237, 3
    %v3315 = vrot.slane %v3313, 7
    %v3317 = vrot.slane %v3239, 6
    %v3319 = vrot.slane %v3314, 5
    %v3321 = vsel %vm127, %v3237, %v3315
    %v3322 = vsel %vm2616, %v3321, %v3317
    %v3323 = vsel %vm2385, %v3322, %v3319
    %3324 = vmatpush.msra.mxu0 %v3274
    %3325 = vmatpush.msra.mxu0 %v3273
    %3326 = vmatpush.msra.mxu0 %v3272
    %3327 = vmatpush.msra.mxu0 %v3271
    %3328 = vmatpush.msra.mxu0 %v3270
    %3329 = vmatpush.msra.mxu0 %v3269
    %3330 = vmatpush.msra.mxu0 %v3268
    %3331 = vmatpush.msra.mxu0 %v3267
    %3332 = vmatpush.msra.mxu0 %v3266
    %3333 = vmatpush.msra.mxu0 %v3265
    %3334 = vmatpush.msra.mxu0 %v3264
    %3335 = vmatpush.msra.mxu0 %v3263
    %3336 = vmatpush.msra.mxu0 %v3262
    %3337 = vmatpush.msra.mxu0 %v3261
    %3338 = vmatpush.msra.mxu0 %v3260
    %3339 = vmatpush.msra.mxu0 %v3259
    %3340 = vmatmul.f32.gmra.mxu0 %v3008
    %v3341 = vpop.f32.mrf.mxu0
    %v3342 = vadd.f32 0.0, %v3341
    %3343 = vdwg.mxu0
    %3344 = vmatpush.msra.mxu0 %v3290
    %3345 = vmatpush.msra.mxu0 %v3289
    %3346 = vmatpush.msra.mxu0 %v3288
    %3347 = vmatpush.msra.mxu0 %v3287
    %3348 = vmatpush.msra.mxu0 %v3286
    %3349 = vmatpush.msra.mxu0 %v3285
    %3350 = vmatpush.msra.mxu0 %v3284
    %3351 = vmatpush.msra.mxu0 %v3283
    %3352 = vmatpush.msra.mxu0 %v3282
    %3353 = vmatpush.msra.mxu0 %v3281
    %3354 = vmatpush.msra.mxu0 %v3280
    %3355 = vmatpush.msra.mxu0 %v3279
    %3356 = vmatpush.msra.mxu0 %v3278
    %3357 = vmatpush.msra.mxu0 %v3277
    %3358 = vmatpush.msra.mxu0 %v3276
    %3359 = vmatpush.msra.mxu0 %v3275
    %3360 = vmatmul.f32.gmra.mxu0 %v3323
    %v3361 = vpop.f32.mrf.mxu0
    %v3362 = vadd.f32 %v3342, %v3361
    %3363 = vdwg.mxu0
    %3364 = vmatpush.msra.mxu0 %v3306
    %3365 = vmatpush.msra.mxu0 %v3305
    %3366 = vmatpush.msra.mxu0 %v3304
    %3367 = vmatpush.msra.mxu0 %v3303
    %3368 = vmatpush.msra.mxu0 %v3302
    %3369 = vmatpush.msra.mxu0 %v3301
    %3370 = vmatpush.msra.mxu0 %v3300
    %3371 = vmatpush.msra.mxu0 %v3299
    %3372 = vmatpush.msra.mxu0 %v3298
    %3373 = vmatpush.msra.mxu0 %v3297
    %3374 = vmatpush.msra.mxu0 %v3296
    %3375 = vmatpush.msra.mxu0 %v3295
    %3376 = vmatpush.msra.mxu0 %v3294
    %3377 = vmatpush.msra.mxu0 %v3293
    %3378 = vmatpush.msra.mxu0 %v3292
    %3379 = vmatpush.msra.mxu0 %v3291
    %3380 = vmatmul.f32.gmra.mxu0 %v3008
    %v3381 = vpop.f32.mrf.mxu0
    %v3382 = vadd.f32 %v3362, %v3381
    %3383 = vdwg.mxu0
    %v3385 = vperm.slane %v3308, 0
    %v3387 = vmul.f32 %v3382, %v3385
    %v3389 = vperm.slane %v3310, 0
    %v3391 = vadd.f32 %v3387, %v3389
    %vm3392 = vcmp.ge.f32.partialorder %v3391, 0.0
    %v3393 = vmul.f32 %v3391, 0.01
    %v3394 = vsel %vm3392, %v3391, %v3393
    %v3396 = vrot.slane %v3394, 2
    %v3398 = vsub.f32 %v3394, %v3396
    %v3399 = vmul.f32 %v3398, %v3312
    %v3400 = vand.u32 2147483647, %v3399
    %v3401 = vadd.f32 %v3400, 0.0
    %v3402 = vmul.f32 %v3401, 0.015625
    %v3403 = vadd.f32 %v3246, %v3402
    %v3405 = vperm.slane %v3312, 0
    %v3407 = vmul.f32 %v3398, %v3405
    %v3408 = vand.u32 2147483647, %v3407
    %v3409 = vadd.f32 %v3408, 0.0
    %v3410 = vmul.f32 %v3409, 0.015625
    %v3412 = vrot.slane %v3410, 1
    %v3414 = vadd.f32 %v3257, %v3412
    %s3415 = scalar_lea.vmem [#allocation2], 3456
    %v3416 = vld [vmem:[%s3415] sm:$0xff]
    %v3417 = vld [vmem:[%s3415 + $0x8] sm:$0xff]
    %v3418 = vld [vmem:[%s3415 + $0x10] sm:$0xff]
    %v3419 = vld [vmem:[%s3415 + $0x18] sm:$0xff]
    %v3420 = vld [vmem:[%s3415 + $0x20] sm:$0xff]
    %v3421 = vld [vmem:[%s3415 + $0x28] sm:$0xff]
    %v3422 = vld [vmem:[%s3415 + $0x30] sm:$0xff]
    %v3423 = vld [vmem:[%s3415 + $0x38] sm:$0xff]
    %v3424 = vld [vmem:[%s3415 + $0x40] sm:$0xff]
    %v3425 = vld [vmem:[%s3415 + $0x48] sm:$0xff]
    %v3426 = vld [vmem:[%s3415 + $0x50] sm:$0xff]
    %v3427 = vld [vmem:[%s3415 + $0x58] sm:$0xff]
    %v3428 = vld [vmem:[%s3415 + $0x60] sm:$0xff]
    %v3429 = vld [vmem:[%s3415 + $0x68] sm:$0xff]
    %v3430 = vld [vmem:[%s3415 + $0x70] sm:$0xff]
    %v3431 = vld [vmem:[%s3415 + $0x78] sm:$0xff]
    %v3432 = vld [vmem:[%s3415 + $0x80] sm:$0xff]
    %v3433 = vld [vmem:[%s3415 + $0x88] sm:$0xff]
    %v3434 = vld [vmem:[%s3415 + $0x90] sm:$0xff]
    %v3435 = vld [vmem:[%s3415 + $0x98] sm:$0xff]
    %v3436 = vld [vmem:[%s3415 + $0xa0] sm:$0xff]
    %v3437 = vld [vmem:[%s3415 + $0xa8] sm:$0xff]
    %v3438 = vld [vmem:[%s3415 + $0xb0] sm:$0xff]
    %v3439 = vld [vmem:[%s3415 + $0xb8] sm:$0xff]
    %v3440 = vld [vmem:[%s3415 + $0xc0] sm:$0xff]
    %v3441 = vld [vmem:[%s3415 + $0xc8] sm:$0xff]
    %v3442 = vld [vmem:[%s3415 + $0xd0] sm:$0xff]
    %v3443 = vld [vmem:[%s3415 + $0xd8] sm:$0xff]
    %v3444 = vld [vmem:[%s3415 + $0xe0] sm:$0xff]
    %v3445 = vld [vmem:[%s3415 + $0xe8] sm:$0xff]
    %v3446 = vld [vmem:[%s3415 + $0xf0] sm:$0xff]
    %v3447 = vld [vmem:[%s3415 + $0xf8] sm:$0xff]
    %v3448 = vld [vmem:[%s3415 + $0x100] sm:$0xff]
    %v3449 = vld [vmem:[%s3415 + $0x108] sm:$0xff]
    %v3450 = vld [vmem:[%s3415 + $0x110] sm:$0xff]
    %v3451 = vld [vmem:[%s3415 + $0x118] sm:$0xff]
    %v3452 = vld [vmem:[%s3415 + $0x120] sm:$0xff]
    %v3453 = vld [vmem:[%s3415 + $0x128] sm:$0xff]
    %v3454 = vld [vmem:[%s3415 + $0x130] sm:$0xff]
    %v3455 = vld [vmem:[%s3415 + $0x138] sm:$0xff]
    %v3456 = vld [vmem:[%s3415 + $0x140] sm:$0xff]
    %v3457 = vld [vmem:[%s3415 + $0x148] sm:$0xff]
    %v3458 = vld [vmem:[%s3415 + $0x150] sm:$0xff]
    %v3459 = vld [vmem:[%s3415 + $0x158] sm:$0xff]
    %v3460 = vld [vmem:[%s3415 + $0x160] sm:$0xff]
    %v3461 = vld [vmem:[%s3415 + $0x168] sm:$0xff]
    %v3462 = vld [vmem:[%s3415 + $0x170] sm:$0xff]
    %v3463 = vld [vmem:[%s3415 + $0x178] sm:$0xff]
    %s3464 = scalar_lea.vmem %s2, 9
    %v3465 = vld [vmem:[%s3464] sm:$0x1]
    %s3466 = scalar_lea.vmem %s3, 9
    %v3467 = vld [vmem:[%s3466] sm:$0x1]
    %s3468 = scalar_lea.vmem %s4, 9
    %v3469 = vld [vmem:[%s3468] sm:$0x1]
    %v3470 = vrot.slane %v3394, 1
    %v3471 = vrot.slane %v3394, 3
    %v3472 = vrot.slane %v3470, 7
    %v3474 = vrot.slane %v3396, 6
    %v3476 = vrot.slane %v3471, 5
    %v3478 = vsel %vm127, %v3394, %v3472
    %v3479 = vsel %vm2616, %v3478, %v3474
    %v3480 = vsel %vm2385, %v3479, %v3476
    %3481 = vmatpush.msra.mxu0 %v3431
    %3482 = vmatpush.msra.mxu0 %v3430
    %3483 = vmatpush.msra.mxu0 %v3429
    %3484 = vmatpush.msra.mxu0 %v3428
    %3485 = vmatpush.msra.mxu0 %v3427
    %3486 = vmatpush.msra.mxu0 %v3426
    %3487 = vmatpush.msra.mxu0 %v3425
    %3488 = vmatpush.msra.mxu0 %v3424
    %3489 = vmatpush.msra.mxu0 %v3423
    %3490 = vmatpush.msra.mxu0 %v3422
    %3491 = vmatpush.msra.mxu0 %v3421
    %3492 = vmatpush.msra.mxu0 %v3420
    %3493 = vmatpush.msra.mxu0 %v3419
    %3494 = vmatpush.msra.mxu0 %v3418
    %3495 = vmatpush.msra.mxu0 %v3417
    %3496 = vmatpush.msra.mxu0 %v3416
    %3497 = vmatmul.f32.gmra.mxu0 %v3008
    %v3498 = vpop.f32.mrf.mxu0
    %v3499 = vadd.f32 0.0, %v3498
    %3500 = vdwg.mxu0
    %3501 = vmatpush.msra.mxu0 %v3447
    %3502 = vmatpush.msra.mxu0 %v3446
    %3503 = vmatpush.msra.mxu0 %v3445
    %3504 = vmatpush.msra.mxu0 %v3444
    %3505 = vmatpush.msra.mxu0 %v3443
    %3506 = vmatpush.msra.mxu0 %v3442
    %3507 = vmatpush.msra.mxu0 %v3441
    %3508 = vmatpush.msra.mxu0 %v3440
    %3509 = vmatpush.msra.mxu0 %v3439
    %3510 = vmatpush.msra.mxu0 %v3438
    %3511 = vmatpush.msra.mxu0 %v3437
    %3512 = vmatpush.msra.mxu0 %v3436
    %3513 = vmatpush.msra.mxu0 %v3435
    %3514 = vmatpush.msra.mxu0 %v3434
    %3515 = vmatpush.msra.mxu0 %v3433
    %3516 = vmatpush.msra.mxu0 %v3432
    %3517 = vmatmul.f32.gmra.mxu0 %v3480
    %v3518 = vpop.f32.mrf.mxu0
    %v3519 = vadd.f32 %v3499, %v3518
    %3520 = vdwg.mxu0
    %3521 = vmatpush.msra.mxu0 %v3463
    %3522 = vmatpush.msra.mxu0 %v3462
    %3523 = vmatpush.msra.mxu0 %v3461
    %3524 = vmatpush.msra.mxu0 %v3460
    %3525 = vmatpush.msra.mxu0 %v3459
    %3526 = vmatpush.msra.mxu0 %v3458
    %3527 = vmatpush.msra.mxu0 %v3457
    %3528 = vmatpush.msra.mxu0 %v3456
    %3529 = vmatpush.msra.mxu0 %v3455
    %3530 = vmatpush.msra.mxu0 %v3454
    %3531 = vmatpush.msra.mxu0 %v3453
    %3532 = vmatpush.msra.mxu0 %v3452
    %3533 = vmatpush.msra.mxu0 %v3451
    %3534 = vmatpush.msra.mxu0 %v3450
    %3535 = vmatpush.msra.mxu0 %v3449
    %3536 = vmatpush.msra.mxu0 %v3448
    %3537 = vmatmul.f32.gmra.mxu0 %v3008
    %v3538 = vpop.f32.mrf.mxu0
    %v3539 = vadd.f32 %v3519, %v3538
    %3540 = vdwg.mxu0
    %v3542 = vperm.slane %v3465, 0
    %v3544 = vmul.f32 %v3539, %v3542
    %v3546 = vperm.slane %v3467, 0
    %v3548 = vadd.f32 %v3544, %v3546
    %vm3549 = vcmp.ge.f32.partialorder %v3548, 0.0
    %v3550 = vmul.f32 %v3548, 0.01
    %v3551 = vsel %vm3549, %v3548, %v3550
    %v3553 = vrot.slane %v3551, 2
    %v3555 = vsub.f32 %v3551, %v3553
    %v3556 = vmul.f32 %v3555, %v3469
    %v3557 = vand.u32 2147483647, %v3556
    %v3558 = vadd.f32 %v3557, 0.0
    %v3559 = vmul.f32 %v3558, 0.0078125
    %v3560 = vadd.f32 %v3403, %v3559
    %v3562 = vperm.slane %v3469, 0
    %v3564 = vmul.f32 %v3555, %v3562
    %v3565 = vand.u32 2147483647, %v3564
    %v3566 = vadd.f32 %v3565, 0.0
    %v3567 = vmul.f32 %v3566, 0.0078125
    %v3569 = vrot.slane %v3567, 1
    %v3571 = vadd.f32 %v3414, %v3569
    %s3572 = scalar_lea.vmem [#allocation2], 3840
    %v3573 = vld [vmem:[%s3572] sm:$0xff]
    %v3574 = vld [vmem:[%s3572 + $0x8] sm:$0xff]
    %v3575 = vld [vmem:[%s3572 + $0x10] sm:$0xff]
    %v3576 = vld [vmem:[%s3572 + $0x18] sm:$0xff]
    %v3577 = vld [vmem:[%s3572 + $0x20] sm:$0xff]
    %v3578 = vld [vmem:[%s3572 + $0x28] sm:$0xff]
    %v3579 = vld [vmem:[%s3572 + $0x30] sm:$0xff]
    %v3580 = vld [vmem:[%s3572 + $0x38] sm:$0xff]
    %v3581 = vld [vmem:[%s3572 + $0x40] sm:$0xff]
    %v3582 = vld [vmem:[%s3572 + $0x48] sm:$0xff]
    %v3583 = vld [vmem:[%s3572 + $0x50] sm:$0xff]
    %v3584 = vld [vmem:[%s3572 + $0x58] sm:$0xff]
    %v3585 = vld [vmem:[%s3572 + $0x60] sm:$0xff]
    %v3586 = vld [vmem:[%s3572 + $0x68] sm:$0xff]
    %v3587 = vld [vmem:[%s3572 + $0x70] sm:$0xff]
    %v3588 = vld [vmem:[%s3572 + $0x78] sm:$0xff]
    %v3589 = vld [vmem:[%s3572 + $0x80] sm:$0xff]
    %v3590 = vld [vmem:[%s3572 + $0x88] sm:$0xff]
    %v3591 = vld [vmem:[%s3572 + $0x90] sm:$0xff]
    %v3592 = vld [vmem:[%s3572 + $0x98] sm:$0xff]
    %v3593 = vld [vmem:[%s3572 + $0xa0] sm:$0xff]
    %v3594 = vld [vmem:[%s3572 + $0xa8] sm:$0xff]
    %v3595 = vld [vmem:[%s3572 + $0xb0] sm:$0xff]
    %v3596 = vld [vmem:[%s3572 + $0xb8] sm:$0xff]
    %v3597 = vld [vmem:[%s3572 + $0xc0] sm:$0xff]
    %v3598 = vld [vmem:[%s3572 + $0xc8] sm:$0xff]
    %v3599 = vld [vmem:[%s3572 + $0xd0] sm:$0xff]
    %v3600 = vld [vmem:[%s3572 + $0xd8] sm:$0xff]
    %v3601 = vld [vmem:[%s3572 + $0xe0] sm:$0xff]
    %v3602 = vld [vmem:[%s3572 + $0xe8] sm:$0xff]
    %v3603 = vld [vmem:[%s3572 + $0xf0] sm:$0xff]
    %v3604 = vld [vmem:[%s3572 + $0xf8] sm:$0xff]
    %v3605 = vld [vmem:[%s3572 + $0x100] sm:$0xff]
    %v3606 = vld [vmem:[%s3572 + $0x108] sm:$0xff]
    %v3607 = vld [vmem:[%s3572 + $0x110] sm:$0xff]
    %v3608 = vld [vmem:[%s3572 + $0x118] sm:$0xff]
    %v3609 = vld [vmem:[%s3572 + $0x120] sm:$0xff]
    %v3610 = vld [vmem:[%s3572 + $0x128] sm:$0xff]
    %v3611 = vld [vmem:[%s3572 + $0x130] sm:$0xff]
    %v3612 = vld [vmem:[%s3572 + $0x138] sm:$0xff]
    %v3613 = vld [vmem:[%s3572 + $0x140] sm:$0xff]
    %v3614 = vld [vmem:[%s3572 + $0x148] sm:$0xff]
    %v3615 = vld [vmem:[%s3572 + $0x150] sm:$0xff]
    %v3616 = vld [vmem:[%s3572 + $0x158] sm:$0xff]
    %v3617 = vld [vmem:[%s3572 + $0x160] sm:$0xff]
    %v3618 = vld [vmem:[%s3572 + $0x168] sm:$0xff]
    %v3619 = vld [vmem:[%s3572 + $0x170] sm:$0xff]
    %v3620 = vld [vmem:[%s3572 + $0x178] sm:$0xff]
    %s3621 = scalar_lea.vmem %s2, 10
    %v3622 = vld [vmem:[%s3621] sm:$0x1]
    %s3623 = scalar_lea.vmem %s3, 10
    %v3624 = vld [vmem:[%s3623] sm:$0x1]
    %s3625 = scalar_lea.vmem %s4, 10
    %v3626 = vld [vmem:[%s3625] sm:$0x1]
    %v3627 = vrot.slane %v3551, 1
    %v3628 = vrot.slane %v3551, 3
    %v3629 = vrot.slane %v3627, 7
    %v3631 = vrot.slane %v3553, 6
    %v3633 = vrot.slane %v3628, 5
    %v3635 = vsel %vm127, %v3551, %v3629
    %v3636 = vsel %vm2616, %v3635, %v3631
    %v3637 = vsel %vm2385, %v3636, %v3633
    %3638 = vmatpush.msra.mxu0 %v3588
    %3639 = vmatpush.msra.mxu0 %v3587
    %3640 = vmatpush.msra.mxu0 %v3586
    %3641 = vmatpush.msra.mxu0 %v3585
    %3642 = vmatpush.msra.mxu0 %v3584
    %3643 = vmatpush.msra.mxu0 %v3583
    %3644 = vmatpush.msra.mxu0 %v3582
    %3645 = vmatpush.msra.mxu0 %v3581
    %3646 = vmatpush.msra.mxu0 %v3580
    %3647 = vmatpush.msra.mxu0 %v3579
    %3648 = vmatpush.msra.mxu0 %v3578
    %3649 = vmatpush.msra.mxu0 %v3577
    %3650 = vmatpush.msra.mxu0 %v3576
    %3651 = vmatpush.msra.mxu0 %v3575
    %3652 = vmatpush.msra.mxu0 %v3574
    %3653 = vmatpush.msra.mxu0 %v3573
    %3654 = vmatmul.f32.gmra.mxu0 %v3008
    %v3655 = vpop.f32.mrf.mxu0
    %v3656 = vadd.f32 0.0, %v3655
    %3657 = vdwg.mxu0
    %3658 = vmatpush.msra.mxu0 %v3604
    %3659 = vmatpush.msra.mxu0 %v3603
    %3660 = vmatpush.msra.mxu0 %v3602
    %3661 = vmatpush.msra.mxu0 %v3601
    %3662 = vmatpush.msra.mxu0 %v3600
    %3663 = vmatpush.msra.mxu0 %v3599
    %3664 = vmatpush.msra.mxu0 %v3598
    %3665 = vmatpush.msra.mxu0 %v3597
    %3666 = vmatpush.msra.mxu0 %v3596
    %3667 = vmatpush.msra.mxu0 %v3595
    %3668 = vmatpush.msra.mxu0 %v3594
    %3669 = vmatpush.msra.mxu0 %v3593
    %3670 = vmatpush.msra.mxu0 %v3592
    %3671 = vmatpush.msra.mxu0 %v3591
    %3672 = vmatpush.msra.mxu0 %v3590
    %3673 = vmatpush.msra.mxu0 %v3589
    %3674 = vmatmul.f32.gmra.mxu0 %v3637
    %v3675 = vpop.f32.mrf.mxu0
    %v3676 = vadd.f32 %v3656, %v3675
    %3677 = vdwg.mxu0
    %3678 = vmatpush.msra.mxu0 %v3620
    %3679 = vmatpush.msra.mxu0 %v3619
    %3680 = vmatpush.msra.mxu0 %v3618
    %3681 = vmatpush.msra.mxu0 %v3617
    %3682 = vmatpush.msra.mxu0 %v3616
    %3683 = vmatpush.msra.mxu0 %v3615
    %3684 = vmatpush.msra.mxu0 %v3614
    %3685 = vmatpush.msra.mxu0 %v3613
    %3686 = vmatpush.msra.mxu0 %v3612
    %3687 = vmatpush.msra.mxu0 %v3611
    %3688 = vmatpush.msra.mxu0 %v3610
    %3689 = vmatpush.msra.mxu0 %v3609
    %3690 = vmatpush.msra.mxu0 %v3608
    %3691 = vmatpush.msra.mxu0 %v3607
    %3692 = vmatpush.msra.mxu0 %v3606
    %3693 = vmatpush.msra.mxu0 %v3605
    %3694 = vmatmul.f32.gmra.mxu0 %v3008
    %v3695 = vpop.f32.mrf.mxu0
    %v3696 = vadd.f32 %v3676, %v3695
    %3697 = vdwg.mxu0
    %v3699 = vperm.slane %v3622, 0
    %v3701 = vmul.f32 %v3696, %v3699
    %v3703 = vperm.slane %v3624, 0
    %v3705 = vadd.f32 %v3701, %v3703
    %vm3706 = vcmp.ge.f32.partialorder %v3705, 0.0
    %v3707 = vmul.f32 %v3705, 0.01
    %v3708 = vsel %vm3706, %v3705, %v3707
    %v3710 = vrot.slane %v3708, 2
    %v3712 = vsub.f32 %v3708, %v3710
    %v3713 = vmul.f32 %v3712, %v3626
    %v3714 = vand.u32 2147483647, %v3713
    %v3715 = vadd.f32 %v3714, 0.0
    %v3716 = vmul.f32 %v3715, 0.0078125
    %v3717 = vadd.f32 %v3560, %v3716
    %v3719 = vperm.slane %v3626, 0
    %v3721 = vmul.f32 %v3712, %v3719
    %v3722 = vand.u32 2147483647, %v3721
    %v3723 = vadd.f32 %v3722, 0.0
    %v3724 = vmul.f32 %v3723, 0.0078125
    %v3726 = vrot.slane %v3724, 1
    %v3728 = vadd.f32 %v3571, %v3726
    %s3729 = scalar_lea.vmem [#allocation2], 4224
    %v3730 = vld [vmem:[%s3729] sm:$0xff]
    %v3731 = vld [vmem:[%s3729 + $0x8] sm:$0xff]
    %v3732 = vld [vmem:[%s3729 + $0x10] sm:$0xff]
    %v3733 = vld [vmem:[%s3729 + $0x18] sm:$0xff]
    %v3734 = vld [vmem:[%s3729 + $0x20] sm:$0xff]
    %v3735 = vld [vmem:[%s3729 + $0x28] sm:$0xff]
    %v3736 = vld [vmem:[%s3729 + $0x30] sm:$0xff]
    %v3737 = vld [vmem:[%s3729 + $0x38] sm:$0xff]
    %v3738 = vld [vmem:[%s3729 + $0x40] sm:$0xff]
    %v3739 = vld [vmem:[%s3729 + $0x48] sm:$0xff]
    %v3740 = vld [vmem:[%s3729 + $0x50] sm:$0xff]
    %v3741 = vld [vmem:[%s3729 + $0x58] sm:$0xff]
    %v3742 = vld [vmem:[%s3729 + $0x60] sm:$0xff]
    %v3743 = vld [vmem:[%s3729 + $0x68] sm:$0xff]
    %v3744 = vld [vmem:[%s3729 + $0x70] sm:$0xff]
    %v3745 = vld [vmem:[%s3729 + $0x78] sm:$0xff]
    %v3746 = vld [vmem:[%s3729 + $0x80] sm:$0xff]
    %v3747 = vld [vmem:[%s3729 + $0x88] sm:$0xff]
    %v3748 = vld [vmem:[%s3729 + $0x90] sm:$0xff]
    %v3749 = vld [vmem:[%s3729 + $0x98] sm:$0xff]
    %v3750 = vld [vmem:[%s3729 + $0xa0] sm:$0xff]
    %v3751 = vld [vmem:[%s3729 + $0xa8] sm:$0xff]
    %v3752 = vld [vmem:[%s3729 + $0xb0] sm:$0xff]
    %v3753 = vld [vmem:[%s3729 + $0xb8] sm:$0xff]
    %v3754 = vld [vmem:[%s3729 + $0xc0] sm:$0xff]
    %v3755 = vld [vmem:[%s3729 + $0xc8] sm:$0xff]
    %v3756 = vld [vmem:[%s3729 + $0xd0] sm:$0xff]
    %v3757 = vld [vmem:[%s3729 + $0xd8] sm:$0xff]
    %v3758 = vld [vmem:[%s3729 + $0xe0] sm:$0xff]
    %v3759 = vld [vmem:[%s3729 + $0xe8] sm:$0xff]
    %v3760 = vld [vmem:[%s3729 + $0xf0] sm:$0xff]
    %v3761 = vld [vmem:[%s3729 + $0xf8] sm:$0xff]
    %v3762 = vld [vmem:[%s3729 + $0x100] sm:$0xff]
    %v3763 = vld [vmem:[%s3729 + $0x108] sm:$0xff]
    %v3764 = vld [vmem:[%s3729 + $0x110] sm:$0xff]
    %v3765 = vld [vmem:[%s3729 + $0x118] sm:$0xff]
    %v3766 = vld [vmem:[%s3729 + $0x120] sm:$0xff]
    %v3767 = vld [vmem:[%s3729 + $0x128] sm:$0xff]
    %v3768 = vld [vmem:[%s3729 + $0x130] sm:$0xff]
    %v3769 = vld [vmem:[%s3729 + $0x138] sm:$0xff]
    %v3770 = vld [vmem:[%s3729 + $0x140] sm:$0xff]
    %v3771 = vld [vmem:[%s3729 + $0x148] sm:$0xff]
    %v3772 = vld [vmem:[%s3729 + $0x150] sm:$0xff]
    %v3773 = vld [vmem:[%s3729 + $0x158] sm:$0xff]
    %v3774 = vld [vmem:[%s3729 + $0x160] sm:$0xff]
    %v3775 = vld [vmem:[%s3729 + $0x168] sm:$0xff]
    %v3776 = vld [vmem:[%s3729 + $0x170] sm:$0xff]
    %v3777 = vld [vmem:[%s3729 + $0x178] sm:$0xff]
    %s3778 = scalar_lea.vmem %s2, 11
    %v3779 = vld [vmem:[%s3778] sm:$0x1]
    %s3780 = scalar_lea.vmem %s3, 11
    %v3781 = vld [vmem:[%s3780] sm:$0x1]
    %s3782 = scalar_lea.vmem %s4, 11
    %v3783 = vld [vmem:[%s3782] sm:$0x1]
    %v3784 = vrot.slane %v3708, 1
    %v3785 = vrot.slane %v3708, 3
    %v3786 = vrot.slane %v3784, 7
    %v3788 = vrot.slane %v3710, 6
    %v3790 = vrot.slane %v3785, 5
    %v3792 = vsel %vm127, %v3708, %v3786
    %v3793 = vsel %vm2616, %v3792, %v3788
    %v3794 = vsel %vm2385, %v3793, %v3790
    %3795 = vmatpush.msra.mxu0 %v3745
    %3796 = vmatpush.msra.mxu0 %v3744
    %3797 = vmatpush.msra.mxu0 %v3743
    %3798 = vmatpush.msra.mxu0 %v3742
    %3799 = vmatpush.msra.mxu0 %v3741
    %3800 = vmatpush.msra.mxu0 %v3740
    %3801 = vmatpush.msra.mxu0 %v3739
    %3802 = vmatpush.msra.mxu0 %v3738
    %3803 = vmatpush.msra.mxu0 %v3737
    %3804 = vmatpush.msra.mxu0 %v3736
    %3805 = vmatpush.msra.mxu0 %v3735
    %3806 = vmatpush.msra.mxu0 %v3734
    %3807 = vmatpush.msra.mxu0 %v3733
    %3808 = vmatpush.msra.mxu0 %v3732
    %3809 = vmatpush.msra.mxu0 %v3731
    %3810 = vmatpush.msra.mxu0 %v3730
    %3811 = vmatmul.f32.gmra.mxu0 %v3008
    %v3812 = vpop.f32.mrf.mxu0
    %v3813 = vadd.f32 0.0, %v3812
    %3814 = vdwg.mxu0
    %3815 = vmatpush.msra.mxu0 %v3761
    %3816 = vmatpush.msra.mxu0 %v3760
    %3817 = vmatpush.msra.mxu0 %v3759
    %3818 = vmatpush.msra.mxu0 %v3758
    %3819 = vmatpush.msra.mxu0 %v3757
    %3820 = vmatpush.msra.mxu0 %v3756
    %3821 = vmatpush.msra.mxu0 %v3755
    %3822 = vmatpush.msra.mxu0 %v3754
    %3823 = vmatpush.msra.mxu0 %v3753
    %3824 = vmatpush.msra.mxu0 %v3752
    %3825 = vmatpush.msra.mxu0 %v3751
    %3826 = vmatpush.msra.mxu0 %v3750
    %3827 = vmatpush.msra.mxu0 %v3749
    %3828 = vmatpush.msra.mxu0 %v3748
    %3829 = vmatpush.msra.mxu0 %v3747
    %3830 = vmatpush.msra.mxu0 %v3746
    %3831 = vmatmul.f32.gmra.mxu0 %v3794
    %v3832 = vpop.f32.mrf.mxu0
    %v3833 = vadd.f32 %v3813, %v3832
    %3834 = vdwg.mxu0
    %3835 = vmatpush.msra.mxu0 %v3777
    %3836 = vmatpush.msra.mxu0 %v3776
    %3837 = vmatpush.msra.mxu0 %v3775
    %3838 = vmatpush.msra.mxu0 %v3774
    %3839 = vmatpush.msra.mxu0 %v3773
    %3840 = vmatpush.msra.mxu0 %v3772
    %3841 = vmatpush.msra.mxu0 %v3771
    %3842 = vmatpush.msra.mxu0 %v3770
    %3843 = vmatpush.msra.mxu0 %v3769
    %3844 = vmatpush.msra.mxu0 %v3768
    %3845 = vmatpush.msra.mxu0 %v3767
    %3846 = vmatpush.msra.mxu0 %v3766
    %3847 = vmatpush.msra.mxu0 %v3765
    %3848 = vmatpush.msra.mxu0 %v3764
    %3849 = vmatpush.msra.mxu0 %v3763
    %3850 = vmatpush.msra.mxu0 %v3762
    %3851 = vmatmul.f32.gmra.mxu0 %v3008
    %v3852 = vpop.f32.mrf.mxu0
    %v3853 = vadd.f32 %v3833, %v3852
    %3854 = vdwg.mxu0
    %v3856 = vperm.slane %v3779, 0
    %v3858 = vmul.f32 %v3853, %v3856
    %v3860 = vperm.slane %v3781, 0
    %v3862 = vadd.f32 %v3858, %v3860
    %vm3863 = vcmp.ge.f32.partialorder %v3862, 0.0
    %v3864 = vmul.f32 %v3862, 0.01
    %v3865 = vsel %vm3863, %v3862, %v3864
    %v3867 = vrot.slane %v3865, 2
    %v3869 = vsub.f32 %v3865, %v3867
    %v3870 = vmul.f32 %v3869, %v3783
    %v3871 = vand.u32 2147483647, %v3870
    %v3872 = vadd.f32 %v3871, 0.0
    %v3873 = vmul.f32 %v3872, 0.0078125
    %v3874 = vadd.f32 %v3717, %v3873
    %v3876 = vperm.slane %v3783, 0
    %v3878 = vmul.f32 %v3869, %v3876
    %v3879 = vand.u32 2147483647, %v3878
    %v3880 = vadd.f32 %v3879, 0.0
    %v3881 = vmul.f32 %v3880, 0.0078125
    %v3883 = vrot.slane %v3881, 1
    %v3885 = vadd.f32 %v3728, %v3883
    %s3886 = scalar_lea.vmem [#allocation2], 4608
    %v3887 = vld [vmem:[%s3886] sm:$0xff]
    %v3888 = vld [vmem:[%s3886 + $0x8] sm:$0xff]
    %v3889 = vld [vmem:[%s3886 + $0x10] sm:$0xff]
    %v3890 = vld [vmem:[%s3886 + $0x18] sm:$0xff]
    %v3891 = vld [vmem:[%s3886 + $0x20] sm:$0xff]
    %v3892 = vld [vmem:[%s3886 + $0x28] sm:$0xff]
    %v3893 = vld [vmem:[%s3886 + $0x30] sm:$0xff]
    %v3894 = vld [vmem:[%s3886 + $0x38] sm:$0xff]
    %v3895 = vld [vmem:[%s3886 + $0x40] sm:$0xff]
    %v3896 = vld [vmem:[%s3886 + $0x48] sm:$0xff]
    %v3897 = vld [vmem:[%s3886 + $0x50] sm:$0xff]
    %v3898 = vld [vmem:[%s3886 + $0x58] sm:$0xff]
    %v3899 = vld [vmem:[%s3886 + $0x60] sm:$0xff]
    %v3900 = vld [vmem:[%s3886 + $0x68] sm:$0xff]
    %v3901 = vld [vmem:[%s3886 + $0x70] sm:$0xff]
    %v3902 = vld [vmem:[%s3886 + $0x78] sm:$0xff]
    %v3903 = vld [vmem:[%s3886 + $0x80] sm:$0xff]
    %v3904 = vld [vmem:[%s3886 + $0x88] sm:$0xff]
    %v3905 = vld [vmem:[%s3886 + $0x90] sm:$0xff]
    %v3906 = vld [vmem:[%s3886 + $0x98] sm:$0xff]
    %v3907 = vld [vmem:[%s3886 + $0xa0] sm:$0xff]
    %v3908 = vld [vmem:[%s3886 + $0xa8] sm:$0xff]
    %v3909 = vld [vmem:[%s3886 + $0xb0] sm:$0xff]
    %v3910 = vld [vmem:[%s3886 + $0xb8] sm:$0xff]
    %v3911 = vld [vmem:[%s3886 + $0xc0] sm:$0xff]
    %v3912 = vld [vmem:[%s3886 + $0xc8] sm:$0xff]
    %v3913 = vld [vmem:[%s3886 + $0xd0] sm:$0xff]
    %v3914 = vld [vmem:[%s3886 + $0xd8] sm:$0xff]
    %v3915 = vld [vmem:[%s3886 + $0xe0] sm:$0xff]
    %v3916 = vld [vmem:[%s3886 + $0xe8] sm:$0xff]
    %v3917 = vld [vmem:[%s3886 + $0xf0] sm:$0xff]
    %v3918 = vld [vmem:[%s3886 + $0xf8] sm:$0xff]
    %v3919 = vld [vmem:[%s3886 + $0x100] sm:$0xff]
    %v3920 = vld [vmem:[%s3886 + $0x108] sm:$0xff]
    %v3921 = vld [vmem:[%s3886 + $0x110] sm:$0xff]
    %v3922 = vld [vmem:[%s3886 + $0x118] sm:$0xff]
    %v3923 = vld [vmem:[%s3886 + $0x120] sm:$0xff]
    %v3924 = vld [vmem:[%s3886 + $0x128] sm:$0xff]
    %v3925 = vld [vmem:[%s3886 + $0x130] sm:$0xff]
    %v3926 = vld [vmem:[%s3886 + $0x138] sm:$0xff]
    %v3927 = vld [vmem:[%s3886 + $0x140] sm:$0xff]
    %v3928 = vld [vmem:[%s3886 + $0x148] sm:$0xff]
    %v3929 = vld [vmem:[%s3886 + $0x150] sm:$0xff]
    %v3930 = vld [vmem:[%s3886 + $0x158] sm:$0xff]
    %v3931 = vld [vmem:[%s3886 + $0x160] sm:$0xff]
    %v3932 = vld [vmem:[%s3886 + $0x168] sm:$0xff]
    %v3933 = vld [vmem:[%s3886 + $0x170] sm:$0xff]
    %v3934 = vld [vmem:[%s3886 + $0x178] sm:$0xff]
    %s3935 = scalar_lea.vmem %s2, 12
    %v3936 = vld [vmem:[%s3935] sm:$0x1]
    %s3937 = scalar_lea.vmem %s3, 12
    %v3938 = vld [vmem:[%s3937] sm:$0x1]
    %s3939 = scalar_lea.vmem %s4, 12
    %v3940 = vld [vmem:[%s3939] sm:$0x1]
    %v3941 = vrot.slane %v3865, 1
    %v3942 = vrot.slane %v3865, 3
    %v3943 = vrot.slane %v3941, 7
    %v3945 = vrot.slane %v3867, 6
    %v3947 = vrot.slane %v3942, 5
    %v3949 = vsel %vm127, %v3865, %v3943
    %v3950 = vsel %vm2616, %v3949, %v3945
    %v3951 = vsel %vm2385, %v3950, %v3947
    %3952 = vmatpush.msra.mxu0 %v3902
    %3953 = vmatpush.msra.mxu0 %v3901
    %3954 = vmatpush.msra.mxu0 %v3900
    %3955 = vmatpush.msra.mxu0 %v3899
    %3956 = vmatpush.msra.mxu0 %v3898
    %3957 = vmatpush.msra.mxu0 %v3897
    %3958 = vmatpush.msra.mxu0 %v3896
    %3959 = vmatpush.msra.mxu0 %v3895
    %3960 = vmatpush.msra.mxu0 %v3894
    %3961 = vmatpush.msra.mxu0 %v3893
    %3962 = vmatpush.msra.mxu0 %v3892
    %3963 = vmatpush.msra.mxu0 %v3891
    %3964 = vmatpush.msra.mxu0 %v3890
    %3965 = vmatpush.msra.mxu0 %v3889
    %3966 = vmatpush.msra.mxu0 %v3888
    %3967 = vmatpush.msra.mxu0 %v3887
    %3968 = vmatmul.f32.gmra.mxu0 %v3008
    %v3969 = vpop.f32.mrf.mxu0
    %v3970 = vadd.f32 0.0, %v3969
    %3971 = vdwg.mxu0
    %3972 = vmatpush.msra.mxu0 %v3918
    %3973 = vmatpush.msra.mxu0 %v3917
    %3974 = vmatpush.msra.mxu0 %v3916
    %3975 = vmatpush.msra.mxu0 %v3915
    %3976 = vmatpush.msra.mxu0 %v3914
    %3977 = vmatpush.msra.mxu0 %v3913
    %3978 = vmatpush.msra.mxu0 %v3912
    %3979 = vmatpush.msra.mxu0 %v3911
    %3980 = vmatpush.msra.mxu0 %v3910
    %3981 = vmatpush.msra.mxu0 %v3909
    %3982 = vmatpush.msra.mxu0 %v3908
    %3983 = vmatpush.msra.mxu0 %v3907
    %3984 = vmatpush.msra.mxu0 %v3906
    %3985 = vmatpush.msra.mxu0 %v3905
    %3986 = vmatpush.msra.mxu0 %v3904
    %3987 = vmatpush.msra.mxu0 %v3903
    %3988 = vmatmul.f32.gmra.mxu0 %v3951
    %v3989 = vpop.f32.mrf.mxu0
    %v3990 = vadd.f32 %v3970, %v3989
    %3991 = vdwg.mxu0
    %3992 = vmatpush.msra.mxu0 %v3934
    %3993 = vmatpush.msra.mxu0 %v3933
    %3994 = vmatpush.msra.mxu0 %v3932
    %3995 = vmatpush.msra.mxu0 %v3931
    %3996 = vmatpush.msra.mxu0 %v3930
    %3997 = vmatpush.msra.mxu0 %v3929
    %3998 = vmatpush.msra.mxu0 %v3928
    %3999 = vmatpush.msra.mxu0 %v3927
    %4000 = vmatpush.msra.mxu0 %v3926
    %4001 = vmatpush.msra.mxu0 %v3925
    %4002 = vmatpush.msra.mxu0 %v3924
    %4003 = vmatpush.msra.mxu0 %v3923
    %4004 = vmatpush.msra.mxu0 %v3922
    %4005 = vmatpush.msra.mxu0 %v3921
    %4006 = vmatpush.msra.mxu0 %v3920
    %4007 = vmatpush.msra.mxu0 %v3919
    %4008 = vmatmul.f32.gmra.mxu0 %v3008
    %v4009 = vpop.f32.mrf.mxu0
    %v4010 = vadd.f32 %v3990, %v4009
    %4011 = vdwg.mxu0
    %v4013 = vperm.slane %v3936, 0
    %v4015 = vmul.f32 %v4010, %v4013
    %v4017 = vperm.slane %v3938, 0
    %v4019 = vadd.f32 %v4015, %v4017
    %vm4020 = vcmp.ge.f32.partialorder %v4019, 0.0
    %v4021 = vmul.f32 %v4019, 0.01
    %v4022 = vsel %vm4020, %v4019, %v4021
    %v4024 = vrot.slane %v4022, 2
    %v4026 = vsub.f32 %v4022, %v4024
    %v4027 = vmul.f32 %v4026, %v3940
    %v4028 = vand.u32 2147483647, %v4027
    %v4029 = vadd.f32 %v4028, 0.0
    %v4030 = vmul.f32 %v4029, 0.0078125
    %v4031 = vadd.f32 %v3874, %v4030
    %v4033 = vperm.slane %v3940, 0
    %v4035 = vmul.f32 %v4026, %v4033
    %v4036 = vand.u32 2147483647, %v4035
    %v4037 = vadd.f32 %v4036, 0.0
    %v4038 = vmul.f32 %v4037, 0.0078125
    %v4040 = vrot.slane %v4038, 1
    %v4042 = vadd.f32 %v3885, %v4040
    %s4043 = scalar_lea.vmem [#allocation2], 4992
    %v4044 = vld [vmem:[%s4043] sm:$0xff]
    %v4045 = vld [vmem:[%s4043 + $0x8] sm:$0xff]
    %v4046 = vld [vmem:[%s4043 + $0x10] sm:$0xff]
    %v4047 = vld [vmem:[%s4043 + $0x18] sm:$0xff]
    %v4048 = vld [vmem:[%s4043 + $0x20] sm:$0xff]
    %v4049 = vld [vmem:[%s4043 + $0x28] sm:$0xff]
    %v4050 = vld [vmem:[%s4043 + $0x30] sm:$0xff]
    %v4051 = vld [vmem:[%s4043 + $0x38] sm:$0xff]
    %v4052 = vld [vmem:[%s4043 + $0x40] sm:$0xff]
    %v4053 = vld [vmem:[%s4043 + $0x48] sm:$0xff]
    %v4054 = vld [vmem:[%s4043 + $0x50] sm:$0xff]
    %v4055 = vld [vmem:[%s4043 + $0x58] sm:$0xff]
    %v4056 = vld [vmem:[%s4043 + $0x60] sm:$0xff]
    %v4057 = vld [vmem:[%s4043 + $0x68] sm:$0xff]
    %v4058 = vld [vmem:[%s4043 + $0x70] sm:$0xff]
    %v4059 = vld [vmem:[%s4043 + $0x78] sm:$0xff]
    %v4060 = vld [vmem:[%s4043 + $0x80] sm:$0xff]
    %v4061 = vld [vmem:[%s4043 + $0x88] sm:$0xff]
    %v4062 = vld [vmem:[%s4043 + $0x90] sm:$0xff]
    %v4063 = vld [vmem:[%s4043 + $0x98] sm:$0xff]
    %v4064 = vld [vmem:[%s4043 + $0xa0] sm:$0xff]
    %v4065 = vld [vmem:[%s4043 + $0xa8] sm:$0xff]
    %v4066 = vld [vmem:[%s4043 + $0xb0] sm:$0xff]
    %v4067 = vld [vmem:[%s4043 + $0xb8] sm:$0xff]
    %v4068 = vld [vmem:[%s4043 + $0xc0] sm:$0xff]
    %v4069 = vld [vmem:[%s4043 + $0xc8] sm:$0xff]
    %v4070 = vld [vmem:[%s4043 + $0xd0] sm:$0xff]
    %v4071 = vld [vmem:[%s4043 + $0xd8] sm:$0xff]
    %v4072 = vld [vmem:[%s4043 + $0xe0] sm:$0xff]
    %v4073 = vld [vmem:[%s4043 + $0xe8] sm:$0xff]
    %v4074 = vld [vmem:[%s4043 + $0xf0] sm:$0xff]
    %v4075 = vld [vmem:[%s4043 + $0xf8] sm:$0xff]
    %v4076 = vld [vmem:[%s4043 + $0x100] sm:$0xff]
    %v4077 = vld [vmem:[%s4043 + $0x108] sm:$0xff]
    %v4078 = vld [vmem:[%s4043 + $0x110] sm:$0xff]
    %v4079 = vld [vmem:[%s4043 + $0x118] sm:$0xff]
    %v4080 = vld [vmem:[%s4043 + $0x120] sm:$0xff]
    %v4081 = vld [vmem:[%s4043 + $0x128] sm:$0xff]
    %v4082 = vld [vmem:[%s4043 + $0x130] sm:$0xff]
    %v4083 = vld [vmem:[%s4043 + $0x138] sm:$0xff]
    %v4084 = vld [vmem:[%s4043 + $0x140] sm:$0xff]
    %v4085 = vld [vmem:[%s4043 + $0x148] sm:$0xff]
    %v4086 = vld [vmem:[%s4043 + $0x150] sm:$0xff]
    %v4087 = vld [vmem:[%s4043 + $0x158] sm:$0xff]
    %v4088 = vld [vmem:[%s4043 + $0x160] sm:$0xff]
    %v4089 = vld [vmem:[%s4043 + $0x168] sm:$0xff]
    %v4090 = vld [vmem:[%s4043 + $0x170] sm:$0xff]
    %v4091 = vld [vmem:[%s4043 + $0x178] sm:$0xff]
    %s4092 = scalar_lea.vmem %s2, 13
    %v4093 = vld [vmem:[%s4092] sm:$0x1]
    %s4094 = scalar_lea.vmem %s3, 13
    %v4095 = vld [vmem:[%s4094] sm:$0x1]
    %s4096 = scalar_lea.vmem %s4, 13
    %v4097 = vld [vmem:[%s4096] sm:$0x1]
    %v4098 = vrot.slane %v4022, 1
    %v4099 = vrot.slane %v4022, 3
    %v4100 = vrot.slane %v4098, 7
    %v4102 = vrot.slane %v4024, 6
    %v4104 = vrot.slane %v4099, 5
    %v4106 = vsel %vm127, %v4022, %v4100
    %v4107 = vsel %vm2616, %v4106, %v4102
    %v4108 = vsel %vm2385, %v4107, %v4104
    %4109 = vmatpush.msra.mxu0 %v4059
    %4110 = vmatpush.msra.mxu0 %v4058
    %4111 = vmatpush.msra.mxu0 %v4057
    %4112 = vmatpush.msra.mxu0 %v4056
    %4113 = vmatpush.msra.mxu0 %v4055
    %4114 = vmatpush.msra.mxu0 %v4054
    %4115 = vmatpush.msra.mxu0 %v4053
    %4116 = vmatpush.msra.mxu0 %v4052
    %4117 = vmatpush.msra.mxu0 %v4051
    %4118 = vmatpush.msra.mxu0 %v4050
    %4119 = vmatpush.msra.mxu0 %v4049
    %4120 = vmatpush.msra.mxu0 %v4048
    %4121 = vmatpush.msra.mxu0 %v4047
    %4122 = vmatpush.msra.mxu0 %v4046
    %4123 = vmatpush.msra.mxu0 %v4045
    %4124 = vmatpush.msra.mxu0 %v4044
    %4125 = vmatmul.f32.gmra.mxu0 %v3008
    %v4126 = vpop.f32.mrf.mxu0
    %v4127 = vadd.f32 0.0, %v4126
    %4128 = vdwg.mxu0
    %4129 = vmatpush.msra.mxu0 %v4075
    %4130 = vmatpush.msra.mxu0 %v4074
    %4131 = vmatpush.msra.mxu0 %v4073
    %4132 = vmatpush.msra.mxu0 %v4072
    %4133 = vmatpush.msra.mxu0 %v4071
    %4134 = vmatpush.msra.mxu0 %v4070
    %4135 = vmatpush.msra.mxu0 %v4069
    %4136 = vmatpush.msra.mxu0 %v4068
    %4137 = vmatpush.msra.mxu0 %v4067
    %4138 = vmatpush.msra.mxu0 %v4066
    %4139 = vmatpush.msra.mxu0 %v4065
    %4140 = vmatpush.msra.mxu0 %v4064
    %4141 = vmatpush.msra.mxu0 %v4063
    %4142 = vmatpush.msra.mxu0 %v4062
    %4143 = vmatpush.msra.mxu0 %v4061
    %4144 = vmatpush.msra.mxu0 %v4060
    %4145 = vmatmul.f32.gmra.mxu0 %v4108
    %v4146 = vpop.f32.mrf.mxu0
    %v4147 = vadd.f32 %v4127, %v4146
    %4148 = vdwg.mxu0
    %4149 = vmatpush.msra.mxu0 %v4091
    %4150 = vmatpush.msra.mxu0 %v4090
    %4151 = vmatpush.msra.mxu0 %v4089
    %4152 = vmatpush.msra.mxu0 %v4088
    %4153 = vmatpush.msra.mxu0 %v4087
    %4154 = vmatpush.msra.mxu0 %v4086
    %4155 = vmatpush.msra.mxu0 %v4085
    %4156 = vmatpush.msra.mxu0 %v4084
    %4157 = vmatpush.msra.mxu0 %v4083
    %4158 = vmatpush.msra.mxu0 %v4082
    %4159 = vmatpush.msra.mxu0 %v4081
    %4160 = vmatpush.msra.mxu0 %v4080
    %4161 = vmatpush.msra.mxu0 %v4079
    %4162 = vmatpush.msra.mxu0 %v4078
    %4163 = vmatpush.msra.mxu0 %v4077
    %4164 = vmatpush.msra.mxu0 %v4076
    %4165 = vmatmul.f32.gmra.mxu0 %v3008
    %v4166 = vpop.f32.mrf.mxu0
    %v4167 = vadd.f32 %v4147, %v4166
    %4168 = vdwg.mxu0
    %v4170 = vperm.slane %v4093, 0
    %v4172 = vmul.f32 %v4167, %v4170
    %v4174 = vperm.slane %v4095, 0
    %v4176 = vadd.f32 %v4172, %v4174
    %vm4177 = vcmp.ge.f32.partialorder %v4176, 0.0
    %v4178 = vmul.f32 %v4176, 0.01
    %v4179 = vsel %vm4177, %v4176, %v4178
    %v4181 = vrot.slane %v4179, 2
    %v4183 = vsub.f32 %v4179, %v4181
    %v4184 = vmul.f32 %v4183, %v4097
    %v4185 = vand.u32 2147483647, %v4184
    %v4186 = vadd.f32 %v4185, 0.0
    %v4187 = vmul.f32 %v4186, 0.0078125
    %v4188 = vadd.f32 %v4031, %v4187
    %v4190 = vperm.slane %v4097, 0
    %v4192 = vmul.f32 %v4183, %v4190
    %v4193 = vand.u32 2147483647, %v4192
    %v4194 = vadd.f32 %v4193, 0.0
    %v4195 = vmul.f32 %v4194, 0.0078125
    %v4197 = vrot.slane %v4195, 1
    %v4199 = vadd.f32 %v4042, %v4197
    %v4201 = vrot.slane %v4199, 7
    %v4203 = vsel %vm127, %v4188, %v4201
    %4204 = vst [vmem:[%s5] sm:$0x3] %v4203
    // Predicated region
    $region26: #{_lambda_.1} parent=1 // pred_check
      _
    $region27: #{_lambda_.1} parent=1 // pred_check_branch
      %4206 = sbr.rel (0) target = $region29
    $region28: #{_lambda_.1} parent=1 // pred_region
      _
    $region29: #{_lambda_.1} parent=1 // pred_fallthru
      _
    // Predicated region
    $region30: #{_lambda_.1} parent=1 // pred_check
      _
    $region31: #{_lambda_.1} parent=1 // pred_check_branch
      %4208 = sbr.rel (0) target = $region33
    $region32: #{_lambda_.1} parent=1 // pred_region
      _
    $region33: #{_lambda_.1} parent=1 // pred_fallthru
      _
    %4209 = vsyncpa [#allocation3], 1

</llo_original>
